<compile_context>
chip_gen: v7x
topology: tpu7x:2x2x1
jax: 0.10.0
libtpu: 0.0.40
codegen_flags: <defaults>
</compile_context>

<pallas_src>
import functools

import jax
import jax.numpy as jnp
from jax.experimental import pallas as pl
from jax.experimental.pallas import tpu as pltpu


def _round_up(x, m):
    return (x + m - 1) // m * m


def _block_kernel(x_ref, w1_ref, b1_ref, w2_ref, b2_ref, k_ref,
                  o_ref, pad_ref, *, H2, W2, TH2, PW, C2p, n_tiles, act_learn):
    """Grid = (N, n_tiles); one pooled-row band per step.

    x_ref   : [1, 4, TH2*W2, Cin]  bf16; leading-4 axis = 2x2 pool-window slot
    w1_ref  : [Cin, C1p] bf16      conv1 (1x1) weight with BN1 folded (transposed)
    b1_ref  : [1, C1p]   f32       conv1+BN1 effective bias
    w2_ref  : [C1p, C2p] bf16      conv2 (1x1) weight with BN2 folded (transposed)
    b2_ref  : [1, C2p]   f32       conv2+BN2 effective bias
    k_ref   : [49, C2p]  f32       depthwise 7x7 taps, row index = dh*7 + dw
    o_ref   : [1, H2, W2, C2p] f32 (lane-dense, padding stripped on host)
    pad_ref : VMEM scratch [H2+6, PW, C2p] f32, PW = round_up(W2+6, 8);
              persists across the tile axis (interior filled band by band).
    """
    t = pl.program_id(1)

    # --- zero only the 3-wide halo ring, once per image (interior is fully
    #     overwritten by the band stores below) -----------------------------
    @pl.when(t == 0)
    def _():
        zrow = jnp.zeros((3, PW, C2p), jnp.float32)
        pad_ref[pl.ds(0, 3), :, :] = zrow
        pad_ref[pl.ds(H2 + 3, 3), :, :] = zrow
        pad_ref[pl.ds(3, H2), pl.ds(0, 3), :] = jnp.zeros((H2, 3, C2p), jnp.float32)
        pad_ref[pl.ds(3, H2), pl.ds(W2 + 3, PW - W2 - 3), :] = (
            jnp.zeros((H2, PW - W2 - 3, C2p), jnp.float32))

    # --- 1x1 convs (bf16 MXU, f32 acc) + leaky_relu + maxpool + ReLU --------
    TQ = TH2 * W2
    x = x_ref[0]                                   # (4, TQ, Cin) bf16
    xm = x.reshape(4 * TQ, x.shape[-1])            # flatten leading dims only

    y1 = jnp.dot(xm, w1_ref[...], preferred_element_type=jnp.float32) + b1_ref[...]
    y1 = jnp.where(y1 >= 0, y1, act_learn * y1)    # leaky_relu(slope=act_learn)
    y2 = jnp.dot(y1.astype(jnp.bfloat16), w2_ref[...],
                 preferred_element_type=jnp.float32) + b2_ref[...]

    # MaxPool2d(2): the 4 window slots are 4 sublane-aligned quarters (TQ % 8 == 0)
    pooled = jnp.maximum(jnp.maximum(y2[0:TQ], y2[TQ:2 * TQ]),
                         jnp.maximum(y2[2 * TQ:3 * TQ], y2[3 * TQ:4 * TQ]))
    pooled = jnp.maximum(pooled, 0.0)              # ReLU from `activation`

    # single block store of this row band into the padded map
    pad_ref[pl.ds(3 + t * TH2, TH2), pl.ds(3, W2), :] = pooled.reshape(TH2, W2, C2p)

    # --- depthwise 7x7 conv (pad=3, groups=C) once the full map is assembled -
    @pl.when(t == n_tiles - 1)
    def _():
        kk = k_ref[...]                            # (49, C2p), loaded once
        for dh in range(7):
            band = pad_ref[pl.ds(dh, H2), :, :]    # (H2, PW, C2p): 7 loads total
            part = band[:, 0:W2, :] * kk[dh * 7]
            for dw in range(1, 7):
                # shift left by one column via XLU roll (no wrap enters [0, W2))
                band = pltpu.roll(band, shift=PW - 1, axis=1)
                part = part + band[:, 0:W2, :] * kk[dh * 7 + dw]
            if dh == 0:
                o_ref[0] = part
            else:
                o_ref[0] += part


def block_forward(x_nchw, params, *, act_learn=1.0, tile_h2=None):
    w1e, b1e, w2e, b2e, kdw = params
    N, Cin, H, W = x_nchw.shape
    H2, W2 = H // 2, W // 2
    C1 = w1e.shape[1]
    Cout = w2e.shape[1]
    C1p = _round_up(C1, 128)                       # lane-dense channel padding
    C2p = _round_up(Cout, 128)
    PW = _round_up(W2 + 6, 8)                      # padded-map width (sublane aligned)

    if tile_h2 is None:
        tile_h2 = H2
    assert H2 % tile_h2 == 0, "tile_h2 must divide H2"
    n_tiles = H2 // tile_h2

    # host-side layout plumbing only: one transpose NCHW -> (window-slot, H2, W2, C)
    # (same HBM cost as a plain NCHW->NHWC conversion, which is unavoidable).
    x6 = x_nchw.reshape(N, Cin, H2, 2, W2, 2)
    x4 = jnp.transpose(x6, (0, 3, 5, 2, 4, 1)).reshape(N, 4, H2 * W2, Cin)
    x4 = x4.astype(jnp.bfloat16)

    # pad params to lane-dense channel counts; weights in bf16, biases/taps f32
    w1p = jnp.pad(w1e, ((0, 0), (0, C1p - C1))).astype(jnp.bfloat16)
    b1p = jnp.pad(b1e, ((0, 0), (0, C1p - C1)))
    w2p = jnp.pad(w2e, ((0, C1p - C1), (0, C2p - Cout))).astype(jnp.bfloat16)
    b2p = jnp.pad(b2e, ((0, 0), (0, C2p - Cout)))
    kp = jnp.pad(kdw, ((0, 0), (0, C2p - Cout)))

    kernel = functools.partial(_block_kernel, H2=H2, W2=W2, TH2=tile_h2, PW=PW,
                               C2p=C2p, n_tiles=n_tiles, act_learn=float(act_learn))

    out_p = pl.pallas_call(
        kernel,
        out_shape=jax.ShapeDtypeStruct((N, H2, W2, C2p), jnp.float32),
        grid_spec=pltpu.PrefetchScalarGridSpec(
            num_scalar_prefetch=0,
            grid=(N, n_tiles),
            in_specs=[
                pl.BlockSpec((1, 4, tile_h2 * W2, Cin), lambda n, t: (n, 0, t, 0)),
                pl.BlockSpec((Cin, C1p), lambda n, t: (0, 0)),
                pl.BlockSpec((1, C1p), lambda n, t: (0, 0)),
                pl.BlockSpec((C1p, C2p), lambda n, t: (0, 0)),
                pl.BlockSpec((1, C2p), lambda n, t: (0, 0)),
                pl.BlockSpec((49, C2p), lambda n, t: (0, 0)),
            ],
            out_specs=pl.BlockSpec((1, H2, W2, C2p), lambda n, t: (n, 0, 0, 0)),
            scratch_shapes=[pltpu.VMEM((H2 + 6, PW, C2p), jnp.float32)],
        ),
        compiler_params=pltpu.CompilerParams(
            dimension_semantics=("parallel", "arbitrary"),
            vmem_limit_bytes=32 * 1024 * 1024,
        ),
    )(x4, w1p, b1p, w2p, b2p, kp)

    return out_p[..., :Cout]                       # strip channel padding on host


def init_params(key, dim, dim_out, act_num=3, eps=1e-6):
    """Deterministic synthetic parameters; BN (eval mode) folded into the 1x1 convs."""
    ks = jax.random.split(key, 13)
    # conv1: Conv2d(dim, dim, 1)
    w1 = 0.2 * jax.random.normal(ks[0], (dim, dim), jnp.float32)
    b1 = 0.1 * jax.random.normal(ks[1], (dim,), jnp.float32)
    g1 = 1.0 + 0.1 * jax.random.normal(ks[2], (dim,), jnp.float32)
    be1 = 0.1 * jax.random.normal(ks[3], (dim,), jnp.float32)
    m1 = 0.1 * jax.random.normal(ks[4], (dim,), jnp.float32)
    v1 = 0.5 + jnp.abs(jax.random.normal(ks[5], (dim,), jnp.float32))
    # conv2: Conv2d(dim, dim_out, 1)
    w2 = 0.2 * jax.random.normal(ks[6], (dim_out, dim), jnp.float32)
    b2 = 0.1 * jax.random.normal(ks[7], (dim_out,), jnp.float32)
    g2 = 1.0 + 0.1 * jax.random.normal(ks[8], (dim_out,), jnp.float32)
    be2 = 0.1 * jax.random.normal(ks[9], (dim_out,), jnp.float32)
    m2 = 0.1 * jax.random.normal(ks[10], (dim_out,), jnp.float32)
    v2 = 0.5 + jnp.abs(jax.random.normal(ks[11], (dim_out,), jnp.float32))
    # activation.weight: depthwise [dim_out, 1, 7, 7]
    khw = act_num * 2 + 1
    wact = jax.random.normal(ks[12], (dim_out, 1, khw, khw), jnp.float32)

    s1 = g1 / jnp.sqrt(v1 + eps)
    w1e = (w1 * s1[:, None]).T                     # [Cin, dim]
    b1e = (s1 * (b1 - m1) + be1)[None, :]          # [1, dim]
    s2 = g2 / jnp.sqrt(v2 + eps)
    w2e = (w2 * s2[:, None]).T                     # [dim, dim_out]
    b2e = (s2 * (b2 - m2) + be2)[None, :]          # [1, dim_out]
    kdw = jnp.transpose(wact[:, 0], (1, 2, 0)).reshape(khw * khw, dim_out)  # [49, Cout]
    return w1e, b1e, w2e, b2e, kdw


def block_reference(x_nchw, params, act_learn=1.0):
    """Plain-JAX reference (mirrors the kernel's bf16 matmul inputs)."""
    w1e, b1e, w2e, b2e, kdw = params
    N, Cin, H, W = x_nchw.shape
    Cout = w2e.shape[1]
    H2, W2 = H // 2, W // 2
    x = jnp.transpose(x_nchw, (0, 2, 3, 1)).astype(jnp.bfloat16)
    y1 = jnp.dot(x, w1e.astype(jnp.bfloat16),
                 preferred_element_type=jnp.float32) + b1e[0]
    y1 = jnp.where(y1 >= 0, y1, act_learn * y1)
    y2 = jnp.dot(y1.astype(jnp.bfloat16), w2e.astype(jnp.bfloat16),
                 preferred_element_type=jnp.float32) + b2e[0]
    p = y2.reshape(N, H2, 2, W2, 2, Cout).max(axis=(2, 4))
    r = jnp.maximum(p, 0.0)
    rp = jnp.pad(r, ((0, 0), (3, 3), (3, 3), (0, 0)))
    k = kdw.reshape(7, 7, Cout)
    out = jnp.zeros((N, H2, W2, Cout), jnp.float32)
    for dh in range(7):
        for dw in range(7):
            out = out + rp[:, dh:dh + H2, dw:dw + W2, :] * k[dh, dw][None, None, None, :]
    return out


if __name__ == "__main__":
    N, dim, dim_out, H, W = 2, 4, 8, 16, 16
    key = jax.random.PRNGKey(0)
    kx, kp = jax.random.split(key)
    x = jax.random.normal(kx, (N, dim, H, W), jnp.float32)     # NCHW, like the PyTorch module
    params = init_params(kp, dim, dim_out)

    # tile_h2=4 -> 2 spatial tiles per image (exercises the band pipeline)
    out = block_forward(x, params, act_learn=1.0, tile_h2=4)
    out = jax.block_until_ready(out)
    assert out.shape == (N, H // 2, W // 2, dim_out)

    ref = block_reference(x, params, act_learn=1.0)
    if not jnp.allclose(out, ref, atol=5e-3, rtol=5e-3):
        raise SystemExit("mismatch vs plain-JAX reference")
    print("KERNEL_OK")
</pallas_src>

<mosaic_0001>
module attributes {stable_mosaic.version = 11 : i64} {
  func.func @_block_kernel(%arg0: i32, %arg1: i32, %arg2: memref<1x4x32x4xbf16, #tpu.memory_space<vmem>>, %arg3: memref<4x128xbf16, #tpu.memory_space<vmem>>, %arg4: memref<1x128xf32, #tpu.memory_space<vmem>>, %arg5: memref<128x128xbf16, #tpu.memory_space<vmem>>, %arg6: memref<1x128xf32, #tpu.memory_space<vmem>>, %arg7: memref<49x128xf32, #tpu.memory_space<vmem>>, %arg8: memref<1x8x8x128xf32, #tpu.memory_space<vmem>>, %arg9: memref<14x16x128xf32, #tpu.memory_space<vmem>>) attributes {dimension_semantics = [#tpu.dimension_semantics<parallel>, #tpu.dimension_semantics<arbitrary>], iteration_bounds = array<i64: 2, 2>, scalar_prefetch = 0 : i64, scratch_operands = 1 : i64, tpu.core_type = #tpu.core_type<tc>, window_params = [{transform_indices = @transform_0, window_bounds = array<i64: 1, 4, 32, 4>}, {pipeline_mode = #tpu.pipeline_mode<synchronous>, transform_indices = @transform_1, window_bounds = array<i64: 4, 128>}, {pipeline_mode = #tpu.pipeline_mode<synchronous>, transform_indices = @transform_2, window_bounds = array<i64: 1, 128>}, {pipeline_mode = #tpu.pipeline_mode<synchronous>, transform_indices = @transform_3, window_bounds = array<i64: 128, 128>}, {pipeline_mode = #tpu.pipeline_mode<synchronous>, transform_indices = @transform_4, window_bounds = array<i64: 1, 128>}, {pipeline_mode = #tpu.pipeline_mode<synchronous>, transform_indices = @transform_5, window_bounds = array<i64: 49, 128>}, {transform_indices = @transform_6, window_bounds = array<i64: 1, 8, 8, 128>}]} {
    %c0_i32 = arith.constant 0 : i32
    %0 = arith.cmpi eq, %arg1, %c0_i32 : i32
    %1 = arith.extui %0 : i1 to i32
    %c0_i32_0 = arith.constant 0 : i32
    %2 = arith.cmpi ne, %1, %c0_i32_0 : i32
    scf.if %2 {
      %cst_18 = arith.constant 0.000000e+00 : f32
      %39 = vector.broadcast %cst_18 : f32 to vector<3x16x128xf32>
      %c0_19 = arith.constant 0 : index
      %c0_20 = arith.constant 0 : index
      %c0_21 = arith.constant 0 : index
      %40 = vector.load %arg9[%c0_19, %c0_20, %c0_21] : memref<14x16x128xf32, #tpu.memory_space<vmem>>, vector<3x16x128xf32>
      tpu.vector_store %arg9[%c0_19, %c0_20, %c0_21], %39 {strides = array<i32>} : memref<14x16x128xf32, #tpu.memory_space<vmem>>, vector<3x16x128xf32>,
      %c11 = arith.constant 11 : index
      %c0_22 = arith.constant 0 : index
      %c0_23 = arith.constant 0 : index
      %41 = vector.load %arg9[%c11, %c0_22, %c0_23] : memref<14x16x128xf32, #tpu.memory_space<vmem>>, vector<3x16x128xf32>
      tpu.vector_store %arg9[%c11, %c0_22, %c0_23], %39 {strides = array<i32>} : memref<14x16x128xf32, #tpu.memory_space<vmem>>, vector<3x16x128xf32>,
      %cst_24 = arith.constant 0.000000e+00 : f32
      %42 = vector.broadcast %cst_24 : f32 to vector<8x3x128xf32>
      %c3_25 = arith.constant 3 : index
      %c0_26 = arith.constant 0 : index
      %c0_27 = arith.constant 0 : index
      %43 = vector.load %arg9[%c3_25, %c0_26, %c0_27] : memref<14x16x128xf32, #tpu.memory_space<vmem>>, vector<8x3x128xf32>
      tpu.vector_store %arg9[%c3_25, %c0_26, %c0_27], %42 {strides = array<i32>} : memref<14x16x128xf32, #tpu.memory_space<vmem>>, vector<8x3x128xf32>,
      %cst_28 = arith.constant 0.000000e+00 : f32
      %44 = vector.broadcast %cst_28 : f32 to vector<8x5x128xf32>
      %c3_29 = arith.constant 3 : index
      %c11_30 = arith.constant 11 : index
      %c0_31 = arith.constant 0 : index
      %45 = vector.load %arg9[%c3_29, %c11_30, %c0_31] : memref<14x16x128xf32, #tpu.memory_space<vmem>>, vector<8x5x128xf32>
      tpu.vector_store %arg9[%c3_29, %c11_30, %c0_31], %44 {strides = array<i32>} : memref<14x16x128xf32, #tpu.memory_space<vmem>>, vector<8x5x128xf32>,
    } else {
    }
    %c0 = arith.constant 0 : index
    %c0_1 = arith.constant 0 : index
    %c0_2 = arith.constant 0 : index
    %c0_3 = arith.constant 0 : index
    %3 = vector.load %arg2[%c0, %c0_1, %c0_2, %c0_3] : memref<1x4x32x4xbf16, #tpu.memory_space<vmem>>, vector<1x4x32x4xbf16>
    %4 = vector.shape_cast %3 : vector<1x4x32x4xbf16> to vector<4x32x4xbf16>
    %5 = vector.shape_cast %4 : vector<4x32x4xbf16> to vector<128x4xbf16>
    %c0_4 = arith.constant 0 : index
    %c0_5 = arith.constant 0 : index
    %6 = vector.load %arg3[%c0_4, %c0_5] : memref<4x128xbf16, #tpu.memory_space<vmem>>, vector<4x128xbf16>
    %cst = arith.constant dense<0.000000e+00> : vector<128x128xf32>
    %7 = tpu.matmul %5, %6, %cst {dimension_numbers = #tpu.dot_dimension_numbers<[1], [0], [0], [1], [0, 0, 1, 1], [], []>} : vector<128x4xbf16>, vector<4x128xbf16>, vector<128x128xf32> -> vector<128x128xf32>
    %c0_6 = arith.constant 0 : index
    %c0_7 = arith.constant 0 : index
    %8 = vector.load %arg4[%c0_6, %c0_7] : memref<1x128xf32, #tpu.memory_space<vmem>>, vector<1x128xf32>
    %9 = vector.broadcast %8 : vector<1x128xf32> to vector<128x128xf32>
    %10 = arith.addf %7, %9 : vector<128x128xf32>
    %cst_8 = arith.constant 0.000000e+00 : f32
    %11 = vector.broadcast %cst_8 : f32 to vector<128x128xf32>
    %12 = arith.cmpf oge, %10, %11 : vector<128x128xf32>
    %cst_9 = arith.constant 1.000000e+00 : f32
    %13 = vector.broadcast %cst_9 : f32 to vector<128x128xf32>
    %14 = arith.mulf %13, %10 : vector<128x128xf32>
    %15 = arith.select %12, %10, %14 : vector<128x128xi1>, vector<128x128xf32>
    %16 = arith.truncf %15 : vector<128x128xf32> to vector<128x128xbf16>
    %c0_10 = arith.constant 0 : index
    %c0_11 = arith.constant 0 : index
    %17 = vector.load %arg5[%c0_10, %c0_11] : memref<128x128xbf16, #tpu.memory_space<vmem>>, vector<128x128xbf16>
    %cst_12 = arith.constant dense<0.000000e+00> : vector<128x128xf32>
    %18 = tpu.matmul %16, %17, %cst_12 {dimension_numbers = #tpu.dot_dimension_numbers<[1], [0], [0], [1], [0, 0, 1, 1], [], []>} : vector<128x128xbf16>, vector<128x128xbf16>, vector<128x128xf32> -> vector<128x128xf32>
    %c0_13 = arith.constant 0 : index
    %c0_14 = arith.constant 0 : index
    %19 = vector.load %arg6[%c0_13, %c0_14] : memref<1x128xf32, #tpu.memory_space<vmem>>, vector<1x128xf32>
    %20 = vector.broadcast %19 : vector<1x128xf32> to vector<128x128xf32>
    %21 = arith.addf %18, %20 : vector<128x128xf32>
    %22 = vector.extract_strided_slice %21 {offsets = [0, 0], sizes = [32, 128], strides = [1, 1]} : vector<128x128xf32> to vector<32x128xf32>
    %23 = vector.extract_strided_slice %21 {offsets = [32, 0], sizes = [32, 128], strides = [1, 1]} : vector<128x128xf32> to vector<32x128xf32>
    %24 = arith.maximumf %22, %23 : vector<32x128xf32>
    %25 = vector.extract_strided_slice %21 {offsets = [64, 0], sizes = [32, 128], strides = [1, 1]} : vector<128x128xf32> to vector<32x128xf32>
    %26 = vector.extract_strided_slice %21 {offsets = [96, 0], sizes = [32, 128], strides = [1, 1]} : vector<128x128xf32> to vector<32x128xf32>
    %27 = arith.maximumf %25, %26 : vector<32x128xf32>
    %28 = arith.maximumf %24, %27 : vector<32x128xf32>
    %cst_15 = arith.constant 0.000000e+00 : f32
    %29 = vector.broadcast %cst_15 : f32 to vector<32x128xf32>
    %30 = arith.maximumf %28, %29 : vector<32x128xf32>
    %31 = vector.shape_cast %30 : vector<32x128xf32> to vector<4x8x128xf32>
    %c4_i32 = arith.constant 4 : i32
    %32 = arith.muli %arg1, %c4_i32 : i32
    %c3_i32 = arith.constant 3 : i32
    %33 = arith.addi %c3_i32, %32 : i32
    %34 = arith.index_cast %33 : i32 to index
    %c3 = arith.constant 3 : index
    %c0_16 = arith.constant 0 : index
    %35 = vector.load %arg9[%34, %c3, %c0_16] : memref<14x16x128xf32, #tpu.memory_space<vmem>>, vector<4x8x128xf32>
    tpu.vector_store %arg9[%34, %c3, %c0_16], %31 {strides = array<i32>} : memref<14x16x128xf32, #tpu.memory_space<vmem>>, vector<4x8x128xf32>,
    %c1_i32 = arith.constant 1 : i32
    %36 = arith.cmpi eq, %arg1, %c1_i32 : i32
    %37 = arith.extui %36 : i1 to i32
    %c0_i32_17 = arith.constant 0 : i32
    %38 = arith.cmpi ne, %37, %c0_i32_17 : i32
    scf.if %38 {
      %c0_18 = arith.constant 0 : index
      %c0_19 = arith.constant 0 : index
      %39 = vector.load %arg7[%c0_18, %c0_19] : memref<49x128xf32, #tpu.memory_space<vmem>>, vector<49x128xf32>
      %c0_20 = arith.constant 0 : index
      %c0_21 = arith.constant 0 : index
      %c0_22 = arith.constant 0 : index
      %40 = vector.load %arg9[%c0_20, %c0_21, %c0_22] : memref<14x16x128xf32, #tpu.memory_space<vmem>>, vector<8x16x128xf32>
      %41 = vector.extract_strided_slice %40 {offsets = [0, 0, 0], sizes = [8, 8, 128], strides = [1, 1, 1]} : vector<8x16x128xf32> to vector<8x8x128xf32>
      %42 = vector.extract_strided_slice %39 {offsets = [0, 0], sizes = [1, 128], strides = [1, 1]} : vector<49x128xf32> to vector<1x128xf32>
      %43 = vector.shape_cast %42 : vector<1x128xf32> to vector<128xf32>
      %44 = vector.shape_cast %43 : vector<128xf32> to vector<1x1x128xf32>
      %45 = vector.broadcast %44 : vector<1x1x128xf32> to vector<8x8x128xf32>
      %46 = arith.mulf %41, %45 : vector<8x8x128xf32>
      %c15_i32 = arith.constant 15 : i32
      %47 = tpu.dynamic_rotate %40 by %c15_i32 dim 1 : vector<8x16x128xf32>, i32 -> vector<8x16x128xf32>
      %48 = vector.extract_strided_slice %47 {offsets = [0, 0, 0], sizes = [8, 8, 128], strides = [1, 1, 1]} : vector<8x16x128xf32> to vector<8x8x128xf32>
      %49 = vector.extract_strided_slice %39 {offsets = [1, 0], sizes = [1, 128], strides = [1, 1]} : vector<49x128xf32> to vector<1x128xf32>
      %50 = vector.shape_cast %49 : vector<1x128xf32> to vector<128xf32>
      %51 = vector.shape_cast %50 : vector<128xf32> to vector<1x1x128xf32>
      %52 = vector.broadcast %51 : vector<1x1x128xf32> to vector<8x8x128xf32>
      %53 = arith.mulf %48, %52 : vector<8x8x128xf32>
      %54 = arith.addf %46, %53 : vector<8x8x128xf32>
      %c15_i32_23 = arith.constant 15 : i32
      %55 = tpu.dynamic_rotate %47 by %c15_i32_23 dim 1 : vector<8x16x128xf32>, i32 -> vector<8x16x128xf32>
      %56 = vector.extract_strided_slice %55 {offsets = [0, 0, 0], sizes = [8, 8, 128], strides = [1, 1, 1]} : vector<8x16x128xf32> to vector<8x8x128xf32>
      %57 = vector.extract_strided_slice %39 {offsets = [2, 0], sizes = [1, 128], strides = [1, 1]} : vector<49x128xf32> to vector<1x128xf32>
      %58 = vector.shape_cast %57 : vector<1x128xf32> to vector<128xf32>
      %59 = vector.shape_cast %58 : vector<128xf32> to vector<1x1x128xf32>
      %60 = vector.broadcast %59 : vector<1x1x128xf32> to vector<8x8x128xf32>
      %61 = arith.mulf %56, %60 : vector<8x8x128xf32>
      %62 = arith.addf %54, %61 : vector<8x8x128xf32>
      %c15_i32_24 = arith.constant 15 : i32
      %63 = tpu.dynamic_rotate %55 by %c15_i32_24 dim 1 : vector<8x16x128xf32>, i32 -> vector<8x16x128xf32>
      %64 = vector.extract_strided_slice %63 {offsets = [0, 0, 0], sizes = [8, 8, 128], strides = [1, 1, 1]} : vector<8x16x128xf32> to vector<8x8x128xf32>
      %65 = vector.extract_strided_slice %39 {offsets = [3, 0], sizes = [1, 128], strides = [1, 1]} : vector<49x128xf32> to vector<1x128xf32>
      %66 = vector.shape_cast %65 : vector<1x128xf32> to vector<128xf32>
      %67 = vector.shape_cast %66 : vector<128xf32> to vector<1x1x128xf32>
      %68 = vector.broadcast %67 : vector<1x1x128xf32> to vector<8x8x128xf32>
      %69 = arith.mulf %64, %68 : vector<8x8x128xf32>
      %70 = arith.addf %62, %69 : vector<8x8x128xf32>
      %c15_i32_25 = arith.constant 15 : i32
      %71 = tpu.dynamic_rotate %63 by %c15_i32_25 dim 1 : vector<8x16x128xf32>, i32 -> vector<8x16x128xf32>
      %72 = vector.extract_strided_slice %71 {offsets = [0, 0, 0], sizes = [8, 8, 128], strides = [1, 1, 1]} : vector<8x16x128xf32> to vector<8x8x128xf32>
      %73 = vector.extract_strided_slice %39 {offsets = [4, 0], sizes = [1, 128], strides = [1, 1]} : vector<49x128xf32> to vector<1x128xf32>
      %74 = vector.shape_cast %73 : vector<1x128xf32> to vector<128xf32>
      %75 = vector.shape_cast %74 : vector<128xf32> to vector<1x1x128xf32>
      %76 = vector.broadcast %75 : vector<1x1x128xf32> to vector<8x8x128xf32>
      %77 = arith.mulf %72, %76 : vector<8x8x128xf32>
      %78 = arith.addf %70, %77 : vector<8x8x128xf32>
      %c15_i32_26 = arith.constant 15 : i32
      %79 = tpu.dynamic_rotate %71 by %c15_i32_26 dim 1 : vector<8x16x128xf32>, i32 -> vector<8x16x128xf32>
      %80 = vector.extract_strided_slice %79 {offsets = [0, 0, 0], sizes = [8, 8, 128], strides = [1, 1, 1]} : vector<8x16x128xf32> to vector<8x8x128xf32>
      %81 = vector.extract_strided_slice %39 {offsets = [5, 0], sizes = [1, 128], strides = [1, 1]} : vector<49x128xf32> to vector<1x128xf32>
      %82 = vector.shape_cast %81 : vector<1x128xf32> to vector<128xf32>
      %83 = vector.shape_cast %82 : vector<128xf32> to vector<1x1x128xf32>
      %84 = vector.broadcast %83 : vector<1x1x128xf32> to vector<8x8x128xf32>
      %85 = arith.mulf %80, %84 : vector<8x8x128xf32>
      %86 = arith.addf %78, %85 : vector<8x8x128xf32>
      %c15_i32_27 = arith.constant 15 : i32
      %87 = tpu.dynamic_rotate %79 by %c15_i32_27 dim 1 : vector<8x16x128xf32>, i32 -> vector<8x16x128xf32>
      %88 = vector.extract_strided_slice %87 {offsets = [0, 0, 0], sizes = [8, 8, 128], strides = [1, 1, 1]} : vector<8x16x128xf32> to vector<8x8x128xf32>
      %89 = vector.extract_strided_slice %39 {offsets = [6, 0], sizes = [1, 128], strides = [1, 1]} : vector<49x128xf32> to vector<1x128xf32>
      %90 = vector.shape_cast %89 : vector<1x128xf32> to vector<128xf32>
      %91 = vector.shape_cast %90 : vector<128xf32> to vector<1x1x128xf32>
      %92 = vector.broadcast %91 : vector<1x1x128xf32> to vector<8x8x128xf32>
      %93 = arith.mulf %88, %92 : vector<8x8x128xf32>
      %94 = arith.addf %86, %93 : vector<8x8x128xf32>
      %c0_28 = arith.constant 0 : index
      %c0_29 = arith.constant 0 : index
      %c0_30 = arith.constant 0 : index
      %c0_31 = arith.constant 0 : index
      %95 = vector.load %arg8[%c0_28, %c0_29, %c0_30, %c0_31] : memref<1x8x8x128xf32, #tpu.memory_space<vmem>>, vector<1x8x8x128xf32>
      %96 = vector.shape_cast %95 : vector<1x8x8x128xf32> to vector<8x8x128xf32>
      %97 = vector.shape_cast %94 : vector<8x8x128xf32> to vector<1x8x8x128xf32>
      tpu.vector_store %arg8[%c0_28, %c0_29, %c0_30, %c0_31], %97 {strides = array<i32>} : memref<1x8x8x128xf32, #tpu.memory_space<vmem>>, vector<1x8x8x128xf32>,
      %c1 = arith.constant 1 : index
      %c0_32 = arith.constant 0 : index
      %c0_33 = arith.constant 0 : index
      %98 = vector.load %arg9[%c1, %c0_32, %c0_33] : memref<14x16x128xf32, #tpu.memory_space<vmem>>, vector<8x16x128xf32>
      %99 = vector.extract_strided_slice %98 {offsets = [0, 0, 0], sizes = [8, 8, 128], strides = [1, 1, 1]} : vector<8x16x128xf32> to vector<8x8x128xf32>
      %100 = vector.extract_strided_slice %39 {offsets = [7, 0], sizes = [1, 128], strides = [1, 1]} : vector<49x128xf32> to vector<1x128xf32>
      %101 = vector.shape_cast %100 : vector<1x128xf32> to vector<128xf32>
      %102 = vector.shape_cast %101 : vector<128xf32> to vector<1x1x128xf32>
      %103 = vector.broadcast %102 : vector<1x1x128xf32> to vector<8x8x128xf32>
      %104 = arith.mulf %99, %103 : vector<8x8x128xf32>
      %c15_i32_34 = arith.constant 15 : i32
      %105 = tpu.dynamic_rotate %98 by %c15_i32_34 dim 1 : vector<8x16x128xf32>, i32 -> vector<8x16x128xf32>
      %106 = vector.extract_strided_slice %105 {offsets = [0, 0, 0], sizes = [8, 8, 128], strides = [1, 1, 1]} : vector<8x16x128xf32> to vector<8x8x128xf32>
      %107 = vector.extract_strided_slice %39 {offsets = [8, 0], sizes = [1, 128], strides = [1, 1]} : vector<49x128xf32> to vector<1x128xf32>
      %108 = vector.shape_cast %107 : vector<1x128xf32> to vector<128xf32>
      %109 = vector.shape_cast %108 : vector<128xf32> to vector<1x1x128xf32>
      %110 = vector.broadcast %109 : vector<1x1x128xf32> to vector<8x8x128xf32>
      %111 = arith.mulf %106, %110 : vector<8x8x128xf32>
      %112 = arith.addf %104, %111 : vector<8x8x128xf32>
      %c15_i32_35 = arith.constant 15 : i32
      %113 = tpu.dynamic_rotate %105 by %c15_i32_35 dim 1 : vector<8x16x128xf32>, i32 -> vector<8x16x128xf32>
      %114 = vector.extract_strided_slice %113 {offsets = [0, 0, 0], sizes = [8, 8, 128], strides = [1, 1, 1]} : vector<8x16x128xf32> to vector<8x8x128xf32>
      %115 = vector.extract_strided_slice %39 {offsets = [9, 0], sizes = [1, 128], strides = [1, 1]} : vector<49x128xf32> to vector<1x128xf32>
      %116 = vector.shape_cast %115 : vector<1x128xf32> to vector<128xf32>
      %117 = vector.shape_cast %116 : vector<128xf32> to vector<1x1x128xf32>
      %118 = vector.broadcast %117 : vector<1x1x128xf32> to vector<8x8x128xf32>
      %119 = arith.mulf %114, %118 : vector<8x8x128xf32>
      %120 = arith.addf %112, %119 : vector<8x8x128xf32>
      %c15_i32_36 = arith.constant 15 : i32
      %121 = tpu.dynamic_rotate %113 by %c15_i32_36 dim 1 : vector<8x16x128xf32>, i32 -> vector<8x16x128xf32>
      %122 = vector.extract_strided_slice %121 {offsets = [0, 0, 0], sizes = [8, 8, 128], strides = [1, 1, 1]} : vector<8x16x128xf32> to vector<8x8x128xf32>
      %123 = vector.extract_strided_slice %39 {offsets = [10, 0], sizes = [1, 128], strides = [1, 1]} : vector<49x128xf32> to vector<1x128xf32>
      %124 = vector.shape_cast %123 : vector<1x128xf32> to vector<128xf32>
      %125 = vector.shape_cast %124 : vector<128xf32> to vector<1x1x128xf32>
      %126 = vector.broadcast %125 : vector<1x1x128xf32> to vector<8x8x128xf32>
      %127 = arith.mulf %122, %126 : vector<8x8x128xf32>
      %128 = arith.addf %120, %127 : vector<8x8x128xf32>
      %c15_i32_37 = arith.constant 15 : i32
      %129 = tpu.dynamic_rotate %121 by %c15_i32_37 dim 1 : vector<8x16x128xf32>, i32 -> vector<8x16x128xf32>
      %130 = vector.extract_strided_slice %129 {offsets = [0, 0, 0], sizes = [8, 8, 128], strides = [1, 1, 1]} : vector<8x16x128xf32> to vector<8x8x128xf32>
      %131 = vector.extract_strided_slice %39 {offsets = [11, 0], sizes = [1, 128], strides = [1, 1]} : vector<49x128xf32> to vector<1x128xf32>
      %132 = vector.shape_cast %131 : vector<1x128xf32> to vector<128xf32>
      %133 = vector.shape_cast %132 : vector<128xf32> to vector<1x1x128xf32>
      %134 = vector.broadcast %133 : vector<1x1x128xf32> to vector<8x8x128xf32>
      %135 = arith.mulf %130, %134 : vector<8x8x128xf32>
      %136 = arith.addf %128, %135 : vector<8x8x128xf32>
      %c15_i32_38 = arith.constant 15 : i32
      %137 = tpu.dynamic_rotate %129 by %c15_i32_38 dim 1 : vector<8x16x128xf32>, i32 -> vector<8x16x128xf32>
      %138 = vector.extract_strided_slice %137 {offsets = [0, 0, 0], sizes = [8, 8, 128], strides = [1, 1, 1]} : vector<8x16x128xf32> to vector<8x8x128xf32>
      %139 = vector.extract_strided_slice %39 {offsets = [12, 0], sizes = [1, 128], strides = [1, 1]} : vector<49x128xf32> to vector<1x128xf32>
      %140 = vector.shape_cast %139 : vector<1x128xf32> to vector<128xf32>
      %141 = vector.shape_cast %140 : vector<128xf32> to vector<1x1x128xf32>
      %142 = vector.broadcast %141 : vector<1x1x128xf32> to vector<8x8x128xf32>
      %143 = arith.mulf %138, %142 : vector<8x8x128xf32>
      %144 = arith.addf %136, %143 : vector<8x8x128xf32>
      %c15_i32_39 = arith.constant 15 : i32
      %145 = tpu.dynamic_rotate %137 by %c15_i32_39 dim 1 : vector<8x16x128xf32>, i32 -> vector<8x16x128xf32>
      %146 = vector.extract_strided_slice %145 {offsets = [0, 0, 0], sizes = [8, 8, 128], strides = [1, 1, 1]} : vector<8x16x128xf32> to vector<8x8x128xf32>
      %147 = vector.extract_strided_slice %39 {offsets = [13, 0], sizes = [1, 128], strides = [1, 1]} : vector<49x128xf32> to vector<1x128xf32>
      %148 = vector.shape_cast %147 : vector<1x128xf32> to vector<128xf32>
      %149 = vector.shape_cast %148 : vector<128xf32> to vector<1x1x128xf32>
      %150 = vector.broadcast %149 : vector<1x1x128xf32> to vector<8x8x128xf32>
      %151 = arith.mulf %146, %150 : vector<8x8x128xf32>
      %152 = arith.addf %144, %151 : vector<8x8x128xf32>
      %c0_40 = arith.constant 0 : index
      %c0_41 = arith.constant 0 : index
      %c0_42 = arith.constant 0 : index
      %c0_43 = arith.constant 0 : index
      %153 = vector.load %arg8[%c0_40, %c0_41, %c0_42, %c0_43] : memref<1x8x8x128xf32, #tpu.memory_space<vmem>>, vector<1x8x8x128xf32>
      %154 = vector.shape_cast %153 : vector<1x8x8x128xf32> to vector<8x8x128xf32>
      %155 = arith.addf %154, %152 : vector<8x8x128xf32>
      %c0_44 = arith.constant 0 : index
      %c0_45 = arith.constant 0 : index
      %c0_46 = arith.constant 0 : index
      %c0_47 = arith.constant 0 : index
      %156 = vector.load %arg8[%c0_44, %c0_45, %c0_46, %c0_47] : memref<1x8x8x128xf32, #tpu.memory_space<vmem>>, vector<1x8x8x128xf32>
      %157 = vector.shape_cast %156 : vector<1x8x8x128xf32> to vector<8x8x128xf32>
      %158 = vector.shape_cast %155 : vector<8x8x128xf32> to vector<1x8x8x128xf32>
      tpu.vector_store %arg8[%c0_44, %c0_45, %c0_46, %c0_47], %158 {strides = array<i32>} : memref<1x8x8x128xf32, #tpu.memory_space<vmem>>, vector<1x8x8x128xf32>,
      %c2 = arith.constant 2 : index
      %c0_48 = arith.constant 0 : index
      %c0_49 = arith.constant 0 : index
      %159 = vector.load %arg9[%c2, %c0_48, %c0_49] : memref<14x16x128xf32, #tpu.memory_space<vmem>>, vector<8x16x128xf32>
      %160 = vector.extract_strided_slice %159 {offsets = [0, 0, 0], sizes = [8, 8, 128], strides = [1, 1, 1]} : vector<8x16x128xf32> to vector<8x8x128xf32>
      %161 = vector.extract_strided_slice %39 {offsets = [14, 0], sizes = [1, 128], strides = [1, 1]} : vector<49x128xf32> to vector<1x128xf32>
      %162 = vector.shape_cast %161 : vector<1x128xf32> to vector<128xf32>
      %163 = vector.shape_cast %162 : vector<128xf32> to vector<1x1x128xf32>
      %164 = vector.broadcast %163 : vector<1x1x128xf32> to vector<8x8x128xf32>
      %165 = arith.mulf %160, %164 : vector<8x8x128xf32>
      %c15_i32_50 = arith.constant 15 : i32
      %166 = tpu.dynamic_rotate %159 by %c15_i32_50 dim 1 : vector<8x16x128xf32>, i32 -> vector<8x16x128xf32>
      %167 = vector.extract_strided_slice %166 {offsets = [0, 0, 0], sizes = [8, 8, 128], strides = [1, 1, 1]} : vector<8x16x128xf32> to vector<8x8x128xf32>
      %168 = vector.extract_strided_slice %39 {offsets = [15, 0], sizes = [1, 128], strides = [1, 1]} : vector<49x128xf32> to vector<1x128xf32>
      %169 = vector.shape_cast %168 : vector<1x128xf32> to vector<128xf32>
      %170 = vector.shape_cast %169 : vector<128xf32> to vector<1x1x128xf32>
      %171 = vector.broadcast %170 : vector<1x1x128xf32> to vector<8x8x128xf32>
      %172 = arith.mulf %167, %171 : vector<8x8x128xf32>
      %173 = arith.addf %165, %172 : vector<8x8x128xf32>
      %c15_i32_51 = arith.constant 15 : i32
      %174 = tpu.dynamic_rotate %166 by %c15_i32_51 dim 1 : vector<8x16x128xf32>, i32 -> vector<8x16x128xf32>
      %175 = vector.extract_strided_slice %174 {offsets = [0, 0, 0], sizes = [8, 8, 128], strides = [1, 1, 1]} : vector<8x16x128xf32> to vector<8x8x128xf32>
      %176 = vector.extract_strided_slice %39 {offsets = [16, 0], sizes = [1, 128], strides = [1, 1]} : vector<49x128xf32> to vector<1x128xf32>
      %177 = vector.shape_cast %176 : vector<1x128xf32> to vector<128xf32>
      %178 = vector.shape_cast %177 : vector<128xf32> to vector<1x1x128xf32>
      %179 = vector.broadcast %178 : vector<1x1x128xf32> to vector<8x8x128xf32>
      %180 = arith.mulf %175, %179 : vector<8x8x128xf32>
      %181 = arith.addf %173, %180 : vector<8x8x128xf32>
      %c15_i32_52 = arith.constant 15 : i32
      %182 = tpu.dynamic_rotate %174 by %c15_i32_52 dim 1 : vector<8x16x128xf32>, i32 -> vector<8x16x128xf32>
      %183 = vector.extract_strided_slice %182 {offsets = [0, 0, 0], sizes = [8, 8, 128], strides = [1, 1, 1]} : vector<8x16x128xf32> to vector<8x8x128xf32>
      %184 = vector.extract_strided_slice %39 {offsets = [17, 0], sizes = [1, 128], strides = [1, 1]} : vector<49x128xf32> to vector<1x128xf32>
      %185 = vector.shape_cast %184 : vector<1x128xf32> to vector<128xf32>
      %186 = vector.shape_cast %185 : vector<128xf32> to vector<1x1x128xf32>
      %187 = vector.broadcast %186 : vector<1x1x128xf32> to vector<8x8x128xf32>
      %188 = arith.mulf %183, %187 : vector<8x8x128xf32>
      %189 = arith.addf %181, %188 : vector<8x8x128xf32>
      %c15_i32_53 = arith.constant 15 : i32
      %190 = tpu.dynamic_rotate %182 by %c15_i32_53 dim 1 : vector<8x16x128xf32>, i32 -> vector<8x16x128xf32>
      %191 = vector.extract_strided_slice %190 {offsets = [0, 0, 0], sizes = [8, 8, 128], strides = [1, 1, 1]} : vector<8x16x128xf32> to vector<8x8x128xf32>
      %192 = vector.extract_strided_slice %39 {offsets = [18, 0], sizes = [1, 128], strides = [1, 1]} : vector<49x128xf32> to vector<1x128xf32>
      %193 = vector.shape_cast %192 : vector<1x128xf32> to vector<128xf32>
      %194 = vector.shape_cast %193 : vector<128xf32> to vector<1x1x128xf32>
      %195 = vector.broadcast %194 : vector<1x1x128xf32> to vector<8x8x128xf32>
      %196 = arith.mulf %191, %195 : vector<8x8x128xf32>
      %197 = arith.addf %189, %196 : vector<8x8x128xf32>
      %c15_i32_54 = arith.constant 15 : i32
      %198 = tpu.dynamic_rotate %190 by %c15_i32_54 dim 1 : vector<8x16x128xf32>, i32 -> vector<8x16x128xf32>
      %199 = vector.extract_strided_slice %198 {offsets = [0, 0, 0], sizes = [8, 8, 128], strides = [1, 1, 1]} : vector<8x16x128xf32> to vector<8x8x128xf32>
      %200 = vector.extract_strided_slice %39 {offsets = [19, 0], sizes = [1, 128], strides = [1, 1]} : vector<49x128xf32> to vector<1x128xf32>
      %201 = vector.shape_cast %200 : vector<1x128xf32> to vector<128xf32>
      %202 = vector.shape_cast %201 : vector<128xf32> to vector<1x1x128xf32>
      %203 = vector.broadcast %202 : vector<1x1x128xf32> to vector<8x8x128xf32>
      %204 = arith.mulf %199, %203 : vector<8x8x128xf32>
      %205 = arith.addf %197, %204 : vector<8x8x128xf32>
      %c15_i32_55 = arith.constant 15 : i32
      %206 = tpu.dynamic_rotate %198 by %c15_i32_55 dim 1 : vector<8x16x128xf32>, i32 -> vector<8x16x128xf32>
      %207 = vector.extract_strided_slice %206 {offsets = [0, 0, 0], sizes = [8, 8, 128], strides = [1, 1, 1]} : vector<8x16x128xf32> to vector<8x8x128xf32>
      %208 = vector.extract_strided_slice %39 {offsets = [20, 0], sizes = [1, 128], strides = [1, 1]} : vector<49x128xf32> to vector<1x128xf32>
      %209 = vector.shape_cast %208 : vector<1x128xf32> to vector<128xf32>
      %210 = vector.shape_cast %209 : vector<128xf32> to vector<1x1x128xf32>
      %211 = vector.broadcast %210 : vector<1x1x128xf32> to vector<8x8x128xf32>
      %212 = arith.mulf %207, %211 : vector<8x8x128xf32>
      %213 = arith.addf %205, %212 : vector<8x8x128xf32>
      %c0_56 = arith.constant 0 : index
      %c0_57 = arith.constant 0 : index
      %c0_58 = arith.constant 0 : index
      %c0_59 = arith.constant 0 : index
      %214 = vector.load %arg8[%c0_56, %c0_57, %c0_58, %c0_59] : memref<1x8x8x128xf32, #tpu.memory_space<vmem>>, vector<1x8x8x128xf32>
      %215 = vector.shape_cast %214 : vector<1x8x8x128xf32> to vector<8x8x128xf32>
      %216 = arith.addf %215, %213 : vector<8x8x128xf32>
      %c0_60 = arith.constant 0 : index
      %c0_61 = arith.constant 0 : index
      %c0_62 = arith.constant 0 : index
      %c0_63 = arith.constant 0 : index
      %217 = vector.load %arg8[%c0_60, %c0_61, %c0_62, %c0_63] : memref<1x8x8x128xf32, #tpu.memory_space<vmem>>, vector<1x8x8x128xf32>
      %218 = vector.shape_cast %217 : vector<1x8x8x128xf32> to vector<8x8x128xf32>
      %219 = vector.shape_cast %216 : vector<8x8x128xf32> to vector<1x8x8x128xf32>
      tpu.vector_store %arg8[%c0_60, %c0_61, %c0_62, %c0_63], %219 {strides = array<i32>} : memref<1x8x8x128xf32, #tpu.memory_space<vmem>>, vector<1x8x8x128xf32>,
      %c3_64 = arith.constant 3 : index
      %c0_65 = arith.constant 0 : index
      %c0_66 = arith.constant 0 : index
      %220 = vector.load %arg9[%c3_64, %c0_65, %c0_66] : memref<14x16x128xf32, #tpu.memory_space<vmem>>, vector<8x16x128xf32>
      %221 = vector.extract_strided_slice %220 {offsets = [0, 0, 0], sizes = [8, 8, 128], strides = [1, 1, 1]} : vector<8x16x128xf32> to vector<8x8x128xf32>
      %222 = vector.extract_strided_slice %39 {offsets = [21, 0], sizes = [1, 128], strides = [1, 1]} : vector<49x128xf32> to vector<1x128xf32>
      %223 = vector.shape_cast %222 : vector<1x128xf32> to vector<128xf32>
      %224 = vector.shape_cast %223 : vector<128xf32> to vector<1x1x128xf32>
      %225 = vector.broadcast %224 : vector<1x1x128xf32> to vector<8x8x128xf32>
      %226 = arith.mulf %221, %225 : vector<8x8x128xf32>
      %c15_i32_67 = arith.constant 15 : i32
      %227 = tpu.dynamic_rotate %220 by %c15_i32_67 dim 1 : vector<8x16x128xf32>, i32 -> vector<8x16x128xf32>
      %228 = vector.extract_strided_slice %227 {offsets = [0, 0, 0], sizes = [8, 8, 128], strides = [1, 1, 1]} : vector<8x16x128xf32> to vector<8x8x128xf32>
      %229 = vector.extract_strided_slice %39 {offsets = [22, 0], sizes = [1, 128], strides = [1, 1]} : vector<49x128xf32> to vector<1x128xf32>
      %230 = vector.shape_cast %229 : vector<1x128xf32> to vector<128xf32>
      %231 = vector.shape_cast %230 : vector<128xf32> to vector<1x1x128xf32>
      %232 = vector.broadcast %231 : vector<1x1x128xf32> to vector<8x8x128xf32>
      %233 = arith.mulf %228, %232 : vector<8x8x128xf32>
      %234 = arith.addf %226, %233 : vector<8x8x128xf32>
      %c15_i32_68 = arith.constant 15 : i32
      %235 = tpu.dynamic_rotate %227 by %c15_i32_68 dim 1 : vector<8x16x128xf32>, i32 -> vector<8x16x128xf32>
      %236 = vector.extract_strided_slice %235 {offsets = [0, 0, 0], sizes = [8, 8, 128], strides = [1, 1, 1]} : vector<8x16x128xf32> to vector<8x8x128xf32>
      %237 = vector.extract_strided_slice %39 {offsets = [23, 0], sizes = [1, 128], strides = [1, 1]} : vector<49x128xf32> to vector<1x128xf32>
      %238 = vector.shape_cast %237 : vector<1x128xf32> to vector<128xf32>
      %239 = vector.shape_cast %238 : vector<128xf32> to vector<1x1x128xf32>
      %240 = vector.broadcast %239 : vector<1x1x128xf32> to vector<8x8x128xf32>
      %241 = arith.mulf %236, %240 : vector<8x8x128xf32>
      %242 = arith.addf %234, %241 : vector<8x8x128xf32>
      %c15_i32_69 = arith.constant 15 : i32
      %243 = tpu.dynamic_rotate %235 by %c15_i32_69 dim 1 : vector<8x16x128xf32>, i32 -> vector<8x16x128xf32>
      %244 = vector.extract_strided_slice %243 {offsets = [0, 0, 0], sizes = [8, 8, 128], strides = [1, 1, 1]} : vector<8x16x128xf32> to vector<8x8x128xf32>
      %245 = vector.extract_strided_slice %39 {offsets = [24, 0], sizes = [1, 128], strides = [1, 1]} : vector<49x128xf32> to vector<1x128xf32>
      %246 = vector.shape_cast %245 : vector<1x128xf32> to vector<128xf32>
      %247 = vector.shape_cast %246 : vector<128xf32> to vector<1x1x128xf32>
      %248 = vector.broadcast %247 : vector<1x1x128xf32> to vector<8x8x128xf32>
      %249 = arith.mulf %244, %248 : vector<8x8x128xf32>
      %250 = arith.addf %242, %249 : vector<8x8x128xf32>
      %c15_i32_70 = arith.constant 15 : i32
      %251 = tpu.dynamic_rotate %243 by %c15_i32_70 dim 1 : vector<8x16x128xf32>, i32 -> vector<8x16x128xf32>
      %252 = vector.extract_strided_slice %251 {offsets = [0, 0, 0], sizes = [8, 8, 128], strides = [1, 1, 1]} : vector<8x16x128xf32> to vector<8x8x128xf32>
      %253 = vector.extract_strided_slice %39 {offsets = [25, 0], sizes = [1, 128], strides = [1, 1]} : vector<49x128xf32> to vector<1x128xf32>
      %254 = vector.shape_cast %253 : vector<1x128xf32> to vector<128xf32>
      %255 = vector.shape_cast %254 : vector<128xf32> to vector<1x1x128xf32>
      %256 = vector.broadcast %255 : vector<1x1x128xf32> to vector<8x8x128xf32>
      %257 = arith.mulf %252, %256 : vector<8x8x128xf32>
      %258 = arith.addf %250, %257 : vector<8x8x128xf32>
      %c15_i32_71 = arith.constant 15 : i32
      %259 = tpu.dynamic_rotate %251 by %c15_i32_71 dim 1 : vector<8x16x128xf32>, i32 -> vector<8x16x128xf32>
      %260 = vector.extract_strided_slice %259 {offsets = [0, 0, 0], sizes = [8, 8, 128], strides = [1, 1, 1]} : vector<8x16x128xf32> to vector<8x8x128xf32>
      %261 = vector.extract_strided_slice %39 {offsets = [26, 0], sizes = [1, 128], strides = [1, 1]} : vector<49x128xf32> to vector<1x128xf32>
      %262 = vector.shape_cast %261 : vector<1x128xf32> to vector<128xf32>
      %263 = vector.shape_cast %262 : vector<128xf32> to vector<1x1x128xf32>
      %264 = vector.broadcast %263 : vector<1x1x128xf32> to vector<8x8x128xf32>
      %265 = arith.mulf %260, %264 : vector<8x8x128xf32>
      %266 = arith.addf %258, %265 : vector<8x8x128xf32>
      %c15_i32_72 = arith.constant 15 : i32
      %267 = tpu.dynamic_rotate %259 by %c15_i32_72 dim 1 : vector<8x16x128xf32>, i32 -> vector<8x16x128xf32>
      %268 = vector.extract_strided_slice %267 {offsets = [0, 0, 0], sizes = [8, 8, 128], strides = [1, 1, 1]} : vector<8x16x128xf32> to vector<8x8x128xf32>
      %269 = vector.extract_strided_slice %39 {offsets = [27, 0], sizes = [1, 128], strides = [1, 1]} : vector<49x128xf32> to vector<1x128xf32>
      %270 = vector.shape_cast %269 : vector<1x128xf32> to vector<128xf32>
      %271 = vector.shape_cast %270 : vector<128xf32> to vector<1x1x128xf32>
      %272 = vector.broadcast %271 : vector<1x1x128xf32> to vector<8x8x128xf32>
      %273 = arith.mulf %268, %272 : vector<8x8x128xf32>
      %274 = arith.addf %266, %273 : vector<8x8x128xf32>
      %c0_73 = arith.constant 0 : index
      %c0_74 = arith.constant 0 : index
      %c0_75 = arith.constant 0 : index
      %c0_76 = arith.constant 0 : index
      %275 = vector.load %arg8[%c0_73, %c0_74, %c0_75, %c0_76] : memref<1x8x8x128xf32, #tpu.memory_space<vmem>>, vector<1x8x8x128xf32>
      %276 = vector.shape_cast %275 : vector<1x8x8x128xf32> to vector<8x8x128xf32>
      %277 = arith.addf %276, %274 : vector<8x8x128xf32>
      %c0_77 = arith.constant 0 : index
      %c0_78 = arith.constant 0 : index
      %c0_79 = arith.constant 0 : index
      %c0_80 = arith.constant 0 : index
      %278 = vector.load %arg8[%c0_77, %c0_78, %c0_79, %c0_80] : memref<1x8x8x128xf32, #tpu.memory_space<vmem>>, vector<1x8x8x128xf32>
      %279 = vector.shape_cast %278 : vector<1x8x8x128xf32> to vector<8x8x128xf32>
      %280 = vector.shape_cast %277 : vector<8x8x128xf32> to vector<1x8x8x128xf32>
      tpu.vector_store %arg8[%c0_77, %c0_78, %c0_79, %c0_80], %280 {strides = array<i32>} : memref<1x8x8x128xf32, #tpu.memory_space<vmem>>, vector<1x8x8x128xf32>,
      %c4 = arith.constant 4 : index
      %c0_81 = arith.constant 0 : index
      %c0_82 = arith.constant 0 : index
      %281 = vector.load %arg9[%c4, %c0_81, %c0_82] : memref<14x16x128xf32, #tpu.memory_space<vmem>>, vector<8x16x128xf32>
      %282 = vector.extract_strided_slice %281 {offsets = [0, 0, 0], sizes = [8, 8, 128], strides = [1, 1, 1]} : vector<8x16x128xf32> to vector<8x8x128xf32>
      %283 = vector.extract_strided_slice %39 {offsets = [28, 0], sizes = [1, 128], strides = [1, 1]} : vector<49x128xf32> to vector<1x128xf32>
      %284 = vector.shape_cast %283 : vector<1x128xf32> to vector<128xf32>
      %285 = vector.shape_cast %284 : vector<128xf32> to vector<1x1x128xf32>
      %286 = vector.broadcast %285 : vector<1x1x128xf32> to vector<8x8x128xf32>
      %287 = arith.mulf %282, %286 : vector<8x8x128xf32>
      %c15_i32_83 = arith.constant 15 : i32
      %288 = tpu.dynamic_rotate %281 by %c15_i32_83 dim 1 : vector<8x16x128xf32>, i32 -> vector<8x16x128xf32>
      %289 = vector.extract_strided_slice %288 {offsets = [0, 0, 0], sizes = [8, 8, 128], strides = [1, 1, 1]} : vector<8x16x128xf32> to vector<8x8x128xf32>
      %290 = vector.extract_strided_slice %39 {offsets = [29, 0], sizes = [1, 128], strides = [1, 1]} : vector<49x128xf32> to vector<1x128xf32>
      %291 = vector.shape_cast %290 : vector<1x128xf32> to vector<128xf32>
      %292 = vector.shape_cast %291 : vector<128xf32> to vector<1x1x128xf32>
      %293 = vector.broadcast %292 : vector<1x1x128xf32> to vector<8x8x128xf32>
      %294 = arith.mulf %289, %293 : vector<8x8x128xf32>
      %295 = arith.addf %287, %294 : vector<8x8x128xf32>
      %c15_i32_84 = arith.constant 15 : i32
      %296 = tpu.dynamic_rotate %288 by %c15_i32_84 dim 1 : vector<8x16x128xf32>, i32 -> vector<8x16x128xf32>
      %297 = vector.extract_strided_slice %296 {offsets = [0, 0, 0], sizes = [8, 8, 128], strides = [1, 1, 1]} : vector<8x16x128xf32> to vector<8x8x128xf32>
      %298 = vector.extract_strided_slice %39 {offsets = [30, 0], sizes = [1, 128], strides = [1, 1]} : vector<49x128xf32> to vector<1x128xf32>
      %299 = vector.shape_cast %298 : vector<1x128xf32> to vector<128xf32>
      %300 = vector.shape_cast %299 : vector<128xf32> to vector<1x1x128xf32>
      %301 = vector.broadcast %300 : vector<1x1x128xf32> to vector<8x8x128xf32>
      %302 = arith.mulf %297, %301 : vector<8x8x128xf32>
      %303 = arith.addf %295, %302 : vector<8x8x128xf32>
      %c15_i32_85 = arith.constant 15 : i32
      %304 = tpu.dynamic_rotate %296 by %c15_i32_85 dim 1 : vector<8x16x128xf32>, i32 -> vector<8x16x128xf32>
      %305 = vector.extract_strided_slice %304 {offsets = [0, 0, 0], sizes = [8, 8, 128], strides = [1, 1, 1]} : vector<8x16x128xf32> to vector<8x8x128xf32>
      %306 = vector.extract_strided_slice %39 {offsets = [31, 0], sizes = [1, 128], strides = [1, 1]} : vector<49x128xf32> to vector<1x128xf32>
      %307 = vector.shape_cast %306 : vector<1x128xf32> to vector<128xf32>
      %308 = vector.shape_cast %307 : vector<128xf32> to vector<1x1x128xf32>
      %309 = vector.broadcast %308 : vector<1x1x128xf32> to vector<8x8x128xf32>
      %310 = arith.mulf %305, %309 : vector<8x8x128xf32>
      %311 = arith.addf %303, %310 : vector<8x8x128xf32>
      %c15_i32_86 = arith.constant 15 : i32
      %312 = tpu.dynamic_rotate %304 by %c15_i32_86 dim 1 : vector<8x16x128xf32>, i32 -> vector<8x16x128xf32>
      %313 = vector.extract_strided_slice %312 {offsets = [0, 0, 0], sizes = [8, 8, 128], strides = [1, 1, 1]} : vector<8x16x128xf32> to vector<8x8x128xf32>
      %314 = vector.extract_strided_slice %39 {offsets = [32, 0], sizes = [1, 128], strides = [1, 1]} : vector<49x128xf32> to vector<1x128xf32>
      %315 = vector.shape_cast %314 : vector<1x128xf32> to vector<128xf32>
      %316 = vector.shape_cast %315 : vector<128xf32> to vector<1x1x128xf32>
      %317 = vector.broadcast %316 : vector<1x1x128xf32> to vector<8x8x128xf32>
      %318 = arith.mulf %313, %317 : vector<8x8x128xf32>
      %319 = arith.addf %311, %318 : vector<8x8x128xf32>
      %c15_i32_87 = arith.constant 15 : i32
      %320 = tpu.dynamic_rotate %312 by %c15_i32_87 dim 1 : vector<8x16x128xf32>, i32 -> vector<8x16x128xf32>
      %321 = vector.extract_strided_slice %320 {offsets = [0, 0, 0], sizes = [8, 8, 128], strides = [1, 1, 1]} : vector<8x16x128xf32> to vector<8x8x128xf32>
      %322 = vector.extract_strided_slice %39 {offsets = [33, 0], sizes = [1, 128], strides = [1, 1]} : vector<49x128xf32> to vector<1x128xf32>
      %323 = vector.shape_cast %322 : vector<1x128xf32> to vector<128xf32>
      %324 = vector.shape_cast %323 : vector<128xf32> to vector<1x1x128xf32>
      %325 = vector.broadcast %324 : vector<1x1x128xf32> to vector<8x8x128xf32>
      %326 = arith.mulf %321, %325 : vector<8x8x128xf32>
      %327 = arith.addf %319, %326 : vector<8x8x128xf32>
      %c15_i32_88 = arith.constant 15 : i32
      %328 = tpu.dynamic_rotate %320 by %c15_i32_88 dim 1 : vector<8x16x128xf32>, i32 -> vector<8x16x128xf32>
      %329 = vector.extract_strided_slice %328 {offsets = [0, 0, 0], sizes = [8, 8, 128], strides = [1, 1, 1]} : vector<8x16x128xf32> to vector<8x8x128xf32>
      %330 = vector.extract_strided_slice %39 {offsets = [34, 0], sizes = [1, 128], strides = [1, 1]} : vector<49x128xf32> to vector<1x128xf32>
      %331 = vector.shape_cast %330 : vector<1x128xf32> to vector<128xf32>
      %332 = vector.shape_cast %331 : vector<128xf32> to vector<1x1x128xf32>
      %333 = vector.broadcast %332 : vector<1x1x128xf32> to vector<8x8x128xf32>
      %334 = arith.mulf %329, %333 : vector<8x8x128xf32>
      %335 = arith.addf %327, %334 : vector<8x8x128xf32>
      %c0_89 = arith.constant 0 : index
      %c0_90 = arith.constant 0 : index
      %c0_91 = arith.constant 0 : index
      %c0_92 = arith.constant 0 : index
      %336 = vector.load %arg8[%c0_89, %c0_90, %c0_91, %c0_92] : memref<1x8x8x128xf32, #tpu.memory_space<vmem>>, vector<1x8x8x128xf32>
      %337 = vector.shape_cast %336 : vector<1x8x8x128xf32> to vector<8x8x128xf32>
      %338 = arith.addf %337, %335 : vector<8x8x128xf32>
      %c0_93 = arith.constant 0 : index
      %c0_94 = arith.constant 0 : index
      %c0_95 = arith.constant 0 : index
      %c0_96 = arith.constant 0 : index
      %339 = vector.load %arg8[%c0_93, %c0_94, %c0_95, %c0_96] : memref<1x8x8x128xf32, #tpu.memory_space<vmem>>, vector<1x8x8x128xf32>
      %340 = vector.shape_cast %339 : vector<1x8x8x128xf32> to vector<8x8x128xf32>
      %341 = vector.shape_cast %338 : vector<8x8x128xf32> to vector<1x8x8x128xf32>
      tpu.vector_store %arg8[%c0_93, %c0_94, %c0_95, %c0_96], %341 {strides = array<i32>} : memref<1x8x8x128xf32, #tpu.memory_space<vmem>>, vector<1x8x8x128xf32>,
      %c5 = arith.constant 5 : index
      %c0_97 = arith.constant 0 : index
      %c0_98 = arith.constant 0 : index
      %342 = vector.load %arg9[%c5, %c0_97, %c0_98] : memref<14x16x128xf32, #tpu.memory_space<vmem>>, vector<8x16x128xf32>
      %343 = vector.extract_strided_slice %342 {offsets = [0, 0, 0], sizes = [8, 8, 128], strides = [1, 1, 1]} : vector<8x16x128xf32> to vector<8x8x128xf32>
      %344 = vector.extract_strided_slice %39 {offsets = [35, 0], sizes = [1, 128], strides = [1, 1]} : vector<49x128xf32> to vector<1x128xf32>
      %345 = vector.shape_cast %344 : vector<1x128xf32> to vector<128xf32>
      %346 = vector.shape_cast %345 : vector<128xf32> to vector<1x1x128xf32>
      %347 = vector.broadcast %346 : vector<1x1x128xf32> to vector<8x8x128xf32>
      %348 = arith.mulf %343, %347 : vector<8x8x128xf32>
      %c15_i32_99 = arith.constant 15 : i32
      %349 = tpu.dynamic_rotate %342 by %c15_i32_99 dim 1 : vector<8x16x128xf32>, i32 -> vector<8x16x128xf32>
      %350 = vector.extract_strided_slice %349 {offsets = [0, 0, 0], sizes = [8, 8, 128], strides = [1, 1, 1]} : vector<8x16x128xf32> to vector<8x8x128xf32>
      %351 = vector.extract_strided_slice %39 {offsets = [36, 0], sizes = [1, 128], strides = [1, 1]} : vector<49x128xf32> to vector<1x128xf32>
      %352 = vector.shape_cast %351 : vector<1x128xf32> to vector<128xf32>
      %353 = vector.shape_cast %352 : vector<128xf32> to vector<1x1x128xf32>
      %354 = vector.broadcast %353 : vector<1x1x128xf32> to vector<8x8x128xf32>
      %355 = arith.mulf %350, %354 : vector<8x8x128xf32>
      %356 = arith.addf %348, %355 : vector<8x8x128xf32>
      %c15_i32_100 = arith.constant 15 : i32
      %357 = tpu.dynamic_rotate %349 by %c15_i32_100 dim 1 : vector<8x16x128xf32>, i32 -> vector<8x16x128xf32>
      %358 = vector.extract_strided_slice %357 {offsets = [0, 0, 0], sizes = [8, 8, 128], strides = [1, 1, 1]} : vector<8x16x128xf32> to vector<8x8x128xf32>
      %359 = vector.extract_strided_slice %39 {offsets = [37, 0], sizes = [1, 128], strides = [1, 1]} : vector<49x128xf32> to vector<1x128xf32>
      %360 = vector.shape_cast %359 : vector<1x128xf32> to vector<128xf32>
      %361 = vector.shape_cast %360 : vector<128xf32> to vector<1x1x128xf32>
      %362 = vector.broadcast %361 : vector<1x1x128xf32> to vector<8x8x128xf32>
      %363 = arith.mulf %358, %362 : vector<8x8x128xf32>
      %364 = arith.addf %356, %363 : vector<8x8x128xf32>
      %c15_i32_101 = arith.constant 15 : i32
      %365 = tpu.dynamic_rotate %357 by %c15_i32_101 dim 1 : vector<8x16x128xf32>, i32 -> vector<8x16x128xf32>
      %366 = vector.extract_strided_slice %365 {offsets = [0, 0, 0], sizes = [8, 8, 128], strides = [1, 1, 1]} : vector<8x16x128xf32> to vector<8x8x128xf32>
      %367 = vector.extract_strided_slice %39 {offsets = [38, 0], sizes = [1, 128], strides = [1, 1]} : vector<49x128xf32> to vector<1x128xf32>
      %368 = vector.shape_cast %367 : vector<1x128xf32> to vector<128xf32>
      %369 = vector.shape_cast %368 : vector<128xf32> to vector<1x1x128xf32>
      %370 = vector.broadcast %369 : vector<1x1x128xf32> to vector<8x8x128xf32>
      %371 = arith.mulf %366, %370 : vector<8x8x128xf32>
      %372 = arith.addf %364, %371 : vector<8x8x128xf32>
      %c15_i32_102 = arith.constant 15 : i32
      %373 = tpu.dynamic_rotate %365 by %c15_i32_102 dim 1 : vector<8x16x128xf32>, i32 -> vector<8x16x128xf32>
      %374 = vector.extract_strided_slice %373 {offsets = [0, 0, 0], sizes = [8, 8, 128], strides = [1, 1, 1]} : vector<8x16x128xf32> to vector<8x8x128xf32>
      %375 = vector.extract_strided_slice %39 {offsets = [39, 0], sizes = [1, 128], strides = [1, 1]} : vector<49x128xf32> to vector<1x128xf32>
      %376 = vector.shape_cast %375 : vector<1x128xf32> to vector<128xf32>
      %377 = vector.shape_cast %376 : vector<128xf32> to vector<1x1x128xf32>
      %378 = vector.broadcast %377 : vector<1x1x128xf32> to vector<8x8x128xf32>
      %379 = arith.mulf %374, %378 : vector<8x8x128xf32>
      %380 = arith.addf %372, %379 : vector<8x8x128xf32>
      %c15_i32_103 = arith.constant 15 : i32
      %381 = tpu.dynamic_rotate %373 by %c15_i32_103 dim 1 : vector<8x16x128xf32>, i32 -> vector<8x16x128xf32>
      %382 = vector.extract_strided_slice %381 {offsets = [0, 0, 0], sizes = [8, 8, 128], strides = [1, 1, 1]} : vector<8x16x128xf32> to vector<8x8x128xf32>
      %383 = vector.extract_strided_slice %39 {offsets = [40, 0], sizes = [1, 128], strides = [1, 1]} : vector<49x128xf32> to vector<1x128xf32>
      %384 = vector.shape_cast %383 : vector<1x128xf32> to vector<128xf32>
      %385 = vector.shape_cast %384 : vector<128xf32> to vector<1x1x128xf32>
      %386 = vector.broadcast %385 : vector<1x1x128xf32> to vector<8x8x128xf32>
      %387 = arith.mulf %382, %386 : vector<8x8x128xf32>
      %388 = arith.addf %380, %387 : vector<8x8x128xf32>
      %c15_i32_104 = arith.constant 15 : i32
      %389 = tpu.dynamic_rotate %381 by %c15_i32_104 dim 1 : vector<8x16x128xf32>, i32 -> vector<8x16x128xf32>
      %390 = vector.extract_strided_slice %389 {offsets = [0, 0, 0], sizes = [8, 8, 128], strides = [1, 1, 1]} : vector<8x16x128xf32> to vector<8x8x128xf32>
      %391 = vector.extract_strided_slice %39 {offsets = [41, 0], sizes = [1, 128], strides = [1, 1]} : vector<49x128xf32> to vector<1x128xf32>
      %392 = vector.shape_cast %391 : vector<1x128xf32> to vector<128xf32>
      %393 = vector.shape_cast %392 : vector<128xf32> to vector<1x1x128xf32>
      %394 = vector.broadcast %393 : vector<1x1x128xf32> to vector<8x8x128xf32>
      %395 = arith.mulf %390, %394 : vector<8x8x128xf32>
      %396 = arith.addf %388, %395 : vector<8x8x128xf32>
      %c0_105 = arith.constant 0 : index
      %c0_106 = arith.constant 0 : index
      %c0_107 = arith.constant 0 : index
      %c0_108 = arith.constant 0 : index
      %397 = vector.load %arg8[%c0_105, %c0_106, %c0_107, %c0_108] : memref<1x8x8x128xf32, #tpu.memory_space<vmem>>, vector<1x8x8x128xf32>
      %398 = vector.shape_cast %397 : vector<1x8x8x128xf32> to vector<8x8x128xf32>
      %399 = arith.addf %398, %396 : vector<8x8x128xf32>
      %c0_109 = arith.constant 0 : index
      %c0_110 = arith.constant 0 : index
      %c0_111 = arith.constant 0 : index
      %c0_112 = arith.constant 0 : index
      %400 = vector.load %arg8[%c0_109, %c0_110, %c0_111, %c0_112] : memref<1x8x8x128xf32, #tpu.memory_space<vmem>>, vector<1x8x8x128xf32>
      %401 = vector.shape_cast %400 : vector<1x8x8x128xf32> to vector<8x8x128xf32>
      %402 = vector.shape_cast %399 : vector<8x8x128xf32> to vector<1x8x8x128xf32>
      tpu.vector_store %arg8[%c0_109, %c0_110, %c0_111, %c0_112], %402 {strides = array<i32>} : memref<1x8x8x128xf32, #tpu.memory_space<vmem>>, vector<1x8x8x128xf32>,
      %c6 = arith.constant 6 : index
      %c0_113 = arith.constant 0 : index
      %c0_114 = arith.constant 0 : index
      %403 = vector.load %arg9[%c6, %c0_113, %c0_114] : memref<14x16x128xf32, #tpu.memory_space<vmem>>, vector<8x16x128xf32>
      %404 = vector.extract_strided_slice %403 {offsets = [0, 0, 0], sizes = [8, 8, 128], strides = [1, 1, 1]} : vector<8x16x128xf32> to vector<8x8x128xf32>
      %405 = vector.extract_strided_slice %39 {offsets = [42, 0], sizes = [1, 128], strides = [1, 1]} : vector<49x128xf32> to vector<1x128xf32>
      %406 = vector.shape_cast %405 : vector<1x128xf32> to vector<128xf32>
      %407 = vector.shape_cast %406 : vector<128xf32> to vector<1x1x128xf32>
      %408 = vector.broadcast %407 : vector<1x1x128xf32> to vector<8x8x128xf32>
      %409 = arith.mulf %404, %408 : vector<8x8x128xf32>
      %c15_i32_115 = arith.constant 15 : i32
      %410 = tpu.dynamic_rotate %403 by %c15_i32_115 dim 1 : vector<8x16x128xf32>, i32 -> vector<8x16x128xf32>
      %411 = vector.extract_strided_slice %410 {offsets = [0, 0, 0], sizes = [8, 8, 128], strides = [1, 1, 1]} : vector<8x16x128xf32> to vector<8x8x128xf32>
      %412 = vector.extract_strided_slice %39 {offsets = [43, 0], sizes = [1, 128], strides = [1, 1]} : vector<49x128xf32> to vector<1x128xf32>
      %413 = vector.shape_cast %412 : vector<1x128xf32> to vector<128xf32>
      %414 = vector.shape_cast %413 : vector<128xf32> to vector<1x1x128xf32>
      %415 = vector.broadcast %414 : vector<1x1x128xf32> to vector<8x8x128xf32>
      %416 = arith.mulf %411, %415 : vector<8x8x128xf32>
      %417 = arith.addf %409, %416 : vector<8x8x128xf32>
      %c15_i32_116 = arith.constant 15 : i32
      %418 = tpu.dynamic_rotate %410 by %c15_i32_116 dim 1 : vector<8x16x128xf32>, i32 -> vector<8x16x128xf32>
      %419 = vector.extract_strided_slice %418 {offsets = [0, 0, 0], sizes = [8, 8, 128], strides = [1, 1, 1]} : vector<8x16x128xf32> to vector<8x8x128xf32>
      %420 = vector.extract_strided_slice %39 {offsets = [44, 0], sizes = [1, 128], strides = [1, 1]} : vector<49x128xf32> to vector<1x128xf32>
      %421 = vector.shape_cast %420 : vector<1x128xf32> to vector<128xf32>
      %422 = vector.shape_cast %421 : vector<128xf32> to vector<1x1x128xf32>
      %423 = vector.broadcast %422 : vector<1x1x128xf32> to vector<8x8x128xf32>
      %424 = arith.mulf %419, %423 : vector<8x8x128xf32>
      %425 = arith.addf %417, %424 : vector<8x8x128xf32>
      %c15_i32_117 = arith.constant 15 : i32
      %426 = tpu.dynamic_rotate %418 by %c15_i32_117 dim 1 : vector<8x16x128xf32>, i32 -> vector<8x16x128xf32>
      %427 = vector.extract_strided_slice %426 {offsets = [0, 0, 0], sizes = [8, 8, 128], strides = [1, 1, 1]} : vector<8x16x128xf32> to vector<8x8x128xf32>
      %428 = vector.extract_strided_slice %39 {offsets = [45, 0], sizes = [1, 128], strides = [1, 1]} : vector<49x128xf32> to vector<1x128xf32>
      %429 = vector.shape_cast %428 : vector<1x128xf32> to vector<128xf32>
      %430 = vector.shape_cast %429 : vector<128xf32> to vector<1x1x128xf32>
      %431 = vector.broadcast %430 : vector<1x1x128xf32> to vector<8x8x128xf32>
      %432 = arith.mulf %427, %431 : vector<8x8x128xf32>
      %433 = arith.addf %425, %432 : vector<8x8x128xf32>
      %c15_i32_118 = arith.constant 15 : i32
      %434 = tpu.dynamic_rotate %426 by %c15_i32_118 dim 1 : vector<8x16x128xf32>, i32 -> vector<8x16x128xf32>
      %435 = vector.extract_strided_slice %434 {offsets = [0, 0, 0], sizes = [8, 8, 128], strides = [1, 1, 1]} : vector<8x16x128xf32> to vector<8x8x128xf32>
      %436 = vector.extract_strided_slice %39 {offsets = [46, 0], sizes = [1, 128], strides = [1, 1]} : vector<49x128xf32> to vector<1x128xf32>
      %437 = vector.shape_cast %436 : vector<1x128xf32> to vector<128xf32>
      %438 = vector.shape_cast %437 : vector<128xf32> to vector<1x1x128xf32>
      %439 = vector.broadcast %438 : vector<1x1x128xf32> to vector<8x8x128xf32>
      %440 = arith.mulf %435, %439 : vector<8x8x128xf32>
      %441 = arith.addf %433, %440 : vector<8x8x128xf32>
      %c15_i32_119 = arith.constant 15 : i32
      %442 = tpu.dynamic_rotate %434 by %c15_i32_119 dim 1 : vector<8x16x128xf32>, i32 -> vector<8x16x128xf32>
      %443 = vector.extract_strided_slice %442 {offsets = [0, 0, 0], sizes = [8, 8, 128], strides = [1, 1, 1]} : vector<8x16x128xf32> to vector<8x8x128xf32>
      %444 = vector.extract_strided_slice %39 {offsets = [47, 0], sizes = [1, 128], strides = [1, 1]} : vector<49x128xf32> to vector<1x128xf32>
      %445 = vector.shape_cast %444 : vector<1x128xf32> to vector<128xf32>
      %446 = vector.shape_cast %445 : vector<128xf32> to vector<1x1x128xf32>
      %447 = vector.broadcast %446 : vector<1x1x128xf32> to vector<8x8x128xf32>
      %448 = arith.mulf %443, %447 : vector<8x8x128xf32>
      %449 = arith.addf %441, %448 : vector<8x8x128xf32>
      %c15_i32_120 = arith.constant 15 : i32
      %450 = tpu.dynamic_rotate %442 by %c15_i32_120 dim 1 : vector<8x16x128xf32>, i32 -> vector<8x16x128xf32>
      %451 = vector.extract_strided_slice %450 {offsets = [0, 0, 0], sizes = [8, 8, 128], strides = [1, 1, 1]} : vector<8x16x128xf32> to vector<8x8x128xf32>
      %452 = vector.extract_strided_slice %39 {offsets = [48, 0], sizes = [1, 128], strides = [1, 1]} : vector<49x128xf32> to vector<1x128xf32>
      %453 = vector.shape_cast %452 : vector<1x128xf32> to vector<128xf32>
      %454 = vector.shape_cast %453 : vector<128xf32> to vector<1x1x128xf32>
      %455 = vector.broadcast %454 : vector<1x1x128xf32> to vector<8x8x128xf32>
      %456 = arith.mulf %451, %455 : vector<8x8x128xf32>
      %457 = arith.addf %449, %456 : vector<8x8x128xf32>
      %c0_121 = arith.constant 0 : index
      %c0_122 = arith.constant 0 : index
      %c0_123 = arith.constant 0 : index
      %c0_124 = arith.constant 0 : index
      %458 = vector.load %arg8[%c0_121, %c0_122, %c0_123, %c0_124] : memref<1x8x8x128xf32, #tpu.memory_space<vmem>>, vector<1x8x8x128xf32>
      %459 = vector.shape_cast %458 : vector<1x8x8x128xf32> to vector<8x8x128xf32>
      %460 = arith.addf %459, %457 : vector<8x8x128xf32>
      %c0_125 = arith.constant 0 : index
      %c0_126 = arith.constant 0 : index
      %c0_127 = arith.constant 0 : index
      %c0_128 = arith.constant 0 : index
      %461 = vector.load %arg8[%c0_125, %c0_126, %c0_127, %c0_128] : memref<1x8x8x128xf32, #tpu.memory_space<vmem>>, vector<1x8x8x128xf32>
      %462 = vector.shape_cast %461 : vector<1x8x8x128xf32> to vector<8x8x128xf32>
      %463 = vector.shape_cast %460 : vector<8x8x128xf32> to vector<1x8x8x128xf32>
      tpu.vector_store %arg8[%c0_125, %c0_126, %c0_127, %c0_128], %463 {strides = array<i32>} : memref<1x8x8x128xf32, #tpu.memory_space<vmem>>, vector<1x8x8x128xf32>,
    } else {
    }
    return
  }
  func.func @transform_0(%arg0: i32, %arg1: i32) -> (i32, i32, i32, i32) {
    %c0_i32 = arith.constant 0 : i32
    %c0_i32_0 = arith.constant 0 : i32
    %c0_i32_1 = arith.constant 0 : i32
    return %arg0, %c0_i32, %arg1, %c0_i32_0 : i32, i32, i32, i32
  }
  func.func @transform_1(%arg0: i32, %arg1: i32) -> (i32, i32) {
    %c0_i32 = arith.constant 0 : i32
    %c0_i32_0 = arith.constant 0 : i32
    %c0_i32_1 = arith.constant 0 : i32
    return %c0_i32, %c0_i32_0 : i32, i32
  }
  func.func @transform_2(%arg0: i32, %arg1: i32) -> (i32, i32) {
    %c0_i32 = arith.constant 0 : i32
    %c0_i32_0 = arith.constant 0 : i32
    %c0_i32_1 = arith.constant 0 : i32
    return %c0_i32, %c0_i32_0 : i32, i32
  }
  func.func @transform_3(%arg0: i32, %arg1: i32) -> (i32, i32) {
    %c0_i32 = arith.constant 0 : i32
    %c0_i32_0 = arith.constant 0 : i32
    %c0_i32_1 = arith.constant 0 : i32
    return %c0_i32, %c0_i32_0 : i32, i32
  }
  func.func @transform_4(%arg0: i32, %arg1: i32) -> (i32, i32) {
    %c0_i32 = arith.constant 0 : i32
    %c0_i32_0 = arith.constant 0 : i32
    %c0_i32_1 = arith.constant 0 : i32
    return %c0_i32, %c0_i32_0 : i32, i32
  }
  func.func @transform_5(%arg0: i32, %arg1: i32) -> (i32, i32) {
    %c0_i32 = arith.constant 0 : i32
    %c0_i32_0 = arith.constant 0 : i32
    %c0_i32_1 = arith.constant 0 : i32
    return %c0_i32, %c0_i32_0 : i32, i32
  }
  func.func @transform_6(%arg0: i32, %arg1: i32) -> (i32, i32, i32, i32) {
    %c0_i32 = arith.constant 0 : i32
    %c0_i32_0 = arith.constant 0 : i32
    %c0_i32_1 = arith.constant 0 : i32
    %c0_i32_2 = arith.constant 0 : i32
    return %arg0, %c0_i32, %c0_i32_0, %c0_i32_1 : i32, i32, i32, i32
  }
}

</mosaic_0001>

<llo_original>
// kernel: tpu_custom_call.1
$region0: #{tpu_custom_call.1}
  #allocation0 [shape = 'u32[]', space=smem, size = 0x4, offset = 0x4, fixed_abs, tag = 'smem constant byte address 0x4 - core index']
  #allocation1 [shape = 'u32[144,128]{1,0:T(1,128)}', space=vmem, size = 0x12000, scoped, tag = 'internal scratch']
  #allocation2 [shape = 'f32[14,16,128]{2,1,0:T(8,128)}', space=vmem, size = 0x1c000, scoped, tag = 'scratch operand']
  %s0 = inlined_call_operand.vmem [shape: bf16[2,4,64,4], index: 0, kind: input, shape index: {}]
  %s1 = inlined_call_operand.vmem [shape: bf16[4,128], index: 1, kind: input, shape index: {}]
  %s2 = inlined_call_operand.vmem [shape: f32[1,128], index: 2, kind: input, shape index: {}]
  %s3 = inlined_call_operand.vmem [shape: bf16[128,128], index: 3, kind: input, shape index: {}]
  %s4 = inlined_call_operand.vmem [shape: f32[1,128], index: 4, kind: input, shape index: {}]
  %s5 = inlined_call_operand.vmem [shape: f32[49,128], index: 5, kind: input, shape index: {}]
  %s6 = inlined_call_operand.hbm [shape: f32[2,8,8,128], index: 6, kind: output, shape index: {}]
  %s7 = sld [smem:[#allocation0]]
  $region106: #{tpu_custom_call.1} parent=0
    _
  %s9 = ssub.s32 1, %s7
  %s10 = scalar_select 0, %s9, %s7
  $region1: #{tpu_custom_call.1} parent=0
    #allocation3 [shape = 'u8[65536]{0}', space=vmem, size = 0x10000, scoped, tag = 'input window, operand 0']
    #allocation4 [shape = 'u8[65536]{0}', space=vmem, size = 0x10000, scoped, tag = 'output window, operand 0']
    #allocation5 [shape = 's32[2]{0}', space=sflag, size = 0x8, scoped, tag = 'scoped memory for tpu_custom_call.1']
    %11 = vsyncpa [#allocation5], 0
    %s12 = scalar_lea.sflag [#allocation5], 1
    %13 = vsyncpa %s12, 0
    loop: start=0, step=1, limit=6
    $region2: #{tpu_custom_call.1} parent=1 // loop_pre_header
      _
    $region3: #{tpu_custom_call.1} parent=1 // loop_header
      %s15 = sphi 0, %s19
      %p16 = scmp.ge.s32.totalorder %s15, 6
      %s22 = sphi 0, %s34
      %s23 = sphi 0, %s30
      %s24 = sphi 0, %s22
      %s25 = sphi 0, %s23
      %s26 = sphi 0, %s24
      %s27 = sphi 0, %s25
      %s39 = sphi 0, %s41
      %s42 = sphi 0, %s39
      %s43 = sphi 0, %s42
      %s59 = sphi 0, %s43
      %s63 = sphi 0, %s63
      %s65 = sphi 0, %s63
      %s66 = sphi 0, %s65
      %s80 = sphi 0, %s66
      %s84 = sphi 0, %s84
      %s86 = sphi 0, %s84
      %s87 = sphi 0, %s86
      %s101 = sphi 0, %s87
      %s105 = sphi 0, %s105
      %s107 = sphi 0, %s105
      %s108 = sphi 0, %s107
      %s122 = sphi 0, %s108
      %s126 = sphi 0, %s126
      %s128 = sphi 0, %s126
      %s129 = sphi 0, %s128
      %s143 = sphi 0, %s129
      %s147 = sphi 0, %s147
      %s149 = sphi 0, %s147
      %s150 = sphi 0, %s149
      %s164 = sphi 0, %s150
      %s170 = sphi 0, %s172
      %s173 = sphi 0, %s170
      %s174 = sphi 0, %s173
      %s190 = sphi 0, %s174
    $region4: #{tpu_custom_call.1} parent=1 // loop_header_branch
      %18 = sbr.rel (%p16) target = $region8
    $region5: #{tpu_custom_call.1} parent=1 // loop_body
      %s20 = ssub.s32 %s15, 1
      %s21 = ssub.s32 %s15, 2
      %s28 = sadd.s32 1, %s23
      %p29 = scmp.ge.s32.totalorder %s28, 2
      %s30 = scalar_select %p29, 0, %s28
      %s31 = sadd.s32 1, %s22
      %s32 = scalar_select %p29, %s31, %s22
      %p33 = scmp.ge.s32.totalorder %s32, 2
      %s34 = scalar_select %p33, 0, %s32
      %s35 = ssub.s32 %s22, %s34
      %s36 = ssub.s32 %s23, %s30
      %s37 = sor.u32 %s35, %s36
      %p38 = scmp.eq.s32.totalorder %s37, 0
      %s40 = sadd.s32 %s39, 1
      %s41 = scalar_select %p38, %s39, %s40
      %p44 = pneg %p38
      %p45 = scmp.eq.s32.totalorder %s15, 3
      %p46 = por %p44, %p45
      %p47 = scmp.ne.s32.totalorder %s39, %s42
      %p48 = scmp.eq.s32.totalorder %s15, 0
      %p49 = por %p47, %p48
      %p50 = scmp.ne.s32.totalorder %s39, %s42
      %p51 = scmp.eq.s32.totalorder %s20, 3
      %p52 = por %p50, %p51
      %p53 = scmp.ne.s32.totalorder %s42, %s43
      %p54 = scmp.eq.s32.totalorder %s20, 0
      %p55 = por %p53, %p54
      %p56 = scmp.ne.s32.totalorder %s42, %s43
      %p57 = scmp.eq.s32.totalorder %s21, 3
      %p58 = por %p56, %p57
      %p60 = scmp.ne.s32.totalorder %s43, %s59
      %p61 = scmp.eq.s32.totalorder %s21, 0
      %p62 = por %p60, %p61
      %s64 = sadd.s32 %s63, 1
      %p67 = scmp.eq.s32.totalorder %s15, 3
      %p68 = scmp.ne.s32.totalorder %s63, %s65
      %p69 = scmp.eq.s32.totalorder %s15, 0
      %p70 = por %p68, %p69
      %p71 = scmp.ne.s32.totalorder %s63, %s65
      %p72 = scmp.eq.s32.totalorder %s20, 3
      %p73 = por %p71, %p72
      %p74 = scmp.ne.s32.totalorder %s65, %s66
      %p75 = scmp.eq.s32.totalorder %s20, 0
      %p76 = por %p74, %p75
      %p77 = scmp.ne.s32.totalorder %s65, %s66
      %p78 = scmp.eq.s32.totalorder %s21, 3
      %p79 = por %p77, %p78
      %p81 = scmp.ne.s32.totalorder %s66, %s80
      %p82 = scmp.eq.s32.totalorder %s21, 0
      %p83 = por %p81, %p82
      %s85 = sadd.s32 %s84, 1
      %p88 = scmp.eq.s32.totalorder %s15, 3
      %p89 = scmp.ne.s32.totalorder %s84, %s86
      %p90 = scmp.eq.s32.totalorder %s15, 0
      %p91 = por %p89, %p90
      %p92 = scmp.ne.s32.totalorder %s84, %s86
      %p93 = scmp.eq.s32.totalorder %s20, 3
      %p94 = por %p92, %p93
      %p95 = scmp.ne.s32.totalorder %s86, %s87
      %p96 = scmp.eq.s32.totalorder %s20, 0
      %p97 = por %p95, %p96
      %p98 = scmp.ne.s32.totalorder %s86, %s87
      %p99 = scmp.eq.s32.totalorder %s21, 3
      %p100 = por %p98, %p99
      %p102 = scmp.ne.s32.totalorder %s87, %s101
      %p103 = scmp.eq.s32.totalorder %s21, 0
      %p104 = por %p102, %p103
      %s106 = sadd.s32 %s105, 1
      %p109 = scmp.eq.s32.totalorder %s15, 3
      %p110 = scmp.ne.s32.totalorder %s105, %s107
      %p111 = scmp.eq.s32.totalorder %s15, 0
      %p112 = por %p110, %p111
      %p113 = scmp.ne.s32.totalorder %s105, %s107
      %p114 = scmp.eq.s32.totalorder %s20, 3
      %p115 = por %p113, %p114
      %p116 = scmp.ne.s32.totalorder %s107, %s108
      %p117 = scmp.eq.s32.totalorder %s20, 0
      %p118 = por %p116, %p117
      %p119 = scmp.ne.s32.totalorder %s107, %s108
      %p120 = scmp.eq.s32.totalorder %s21, 3
      %p121 = por %p119, %p120
      %p123 = scmp.ne.s32.totalorder %s108, %s122
      %p124 = scmp.eq.s32.totalorder %s21, 0
      %p125 = por %p123, %p124
      %s127 = sadd.s32 %s126, 1
      %p130 = scmp.eq.s32.totalorder %s15, 3
      %p131 = scmp.ne.s32.totalorder %s126, %s128
      %p132 = scmp.eq.s32.totalorder %s15, 0
      %p133 = por %p131, %p132
      %p134 = scmp.ne.s32.totalorder %s126, %s128
      %p135 = scmp.eq.s32.totalorder %s20, 3
      %p136 = por %p134, %p135
      %p137 = scmp.ne.s32.totalorder %s128, %s129
      %p138 = scmp.eq.s32.totalorder %s20, 0
      %p139 = por %p137, %p138
      %p140 = scmp.ne.s32.totalorder %s128, %s129
      %p141 = scmp.eq.s32.totalorder %s21, 3
      %p142 = por %p140, %p141
      %p144 = scmp.ne.s32.totalorder %s129, %s143
      %p145 = scmp.eq.s32.totalorder %s21, 0
      %p146 = por %p144, %p145
      %s148 = sadd.s32 %s147, 1
      %p151 = scmp.eq.s32.totalorder %s15, 3
      %p152 = scmp.ne.s32.totalorder %s147, %s149
      %p153 = scmp.eq.s32.totalorder %s15, 0
      %p154 = por %p152, %p153
      %p155 = scmp.ne.s32.totalorder %s147, %s149
      %p156 = scmp.eq.s32.totalorder %s20, 3
      %p157 = por %p155, %p156
      %p158 = scmp.ne.s32.totalorder %s149, %s150
      %p159 = scmp.eq.s32.totalorder %s20, 0
      %p160 = por %p158, %p159
      %p161 = scmp.ne.s32.totalorder %s149, %s150
      %p162 = scmp.eq.s32.totalorder %s21, 3
      %p163 = por %p161, %p162
      %p165 = scmp.ne.s32.totalorder %s150, %s164
      %p166 = scmp.eq.s32.totalorder %s21, 0
      %p167 = por %p165, %p166
      %s168 = ssub.s32 %s22, %s34
      %p169 = scmp.eq.s32.totalorder %s168, 0
      %s171 = sadd.s32 %s170, 1
      %s172 = scalar_select %p169, %s170, %s171
      %p175 = pneg %p169
      %p176 = scmp.eq.s32.totalorder %s15, 3
      %p177 = por %p175, %p176
      %p178 = scmp.ne.s32.totalorder %s170, %s173
      %p179 = scmp.eq.s32.totalorder %s15, 0
      %p180 = por %p178, %p179
      %p181 = scmp.ne.s32.totalorder %s170, %s173
      %p182 = scmp.eq.s32.totalorder %s20, 3
      %p183 = por %p181, %p182
      %p184 = scmp.ne.s32.totalorder %s173, %s174
      %p185 = scmp.eq.s32.totalorder %s20, 0
      %p186 = por %p184, %p185
      %p187 = scmp.ne.s32.totalorder %s173, %s174
      %p188 = scmp.eq.s32.totalorder %s21, 3
      %p189 = por %p187, %p188
      %p191 = scmp.ne.s32.totalorder %s174, %s190
      %p192 = scmp.eq.s32.totalorder %s21, 0
      %p193 = por %p191, %p192
      %p194 = scmp.le.s32.totalorder 1, %s15
      %p195 = scmp.lt.s32.totalorder %s15, 5
      %p196 = pnand %p194, %p195
      %p197 = pneg %p196
      // Predicated region
      $region9: #{tpu_custom_call.1} parent=5 // pred_check
        _
      $region10: #{tpu_custom_call.1} parent=5 // pred_check_branch
        %199 = sbr.rel (%p196) target = $region12
      $region11: #{tpu_custom_call.1} parent=5 // pred_region
        %s200 = ssub.s32 %s15, 1
        // Predicated region
        $region13: #{tpu_custom_call.1} parent=11 // pred_check
          %p201 = pneg %p76
        $region14: #{tpu_custom_call.1} parent=11 // pred_check_branch
          %203 = sbr.rel (%p201) target = $region16
        $region15: #{tpu_custom_call.1} parent=11 // pred_region
          _
        $region16: #{tpu_custom_call.1} parent=11 // pred_fallthru
          _
        // Predicated region
        $region17: #{tpu_custom_call.1} parent=11 // pred_check
          %p204 = pneg %p97
        $region18: #{tpu_custom_call.1} parent=11 // pred_check_branch
          %206 = sbr.rel (%p204) target = $region20
        $region19: #{tpu_custom_call.1} parent=11 // pred_region
          _
        $region20: #{tpu_custom_call.1} parent=11 // pred_fallthru
          _
        // Predicated region
        $region21: #{tpu_custom_call.1} parent=11 // pred_check
          %p207 = pneg %p118
        $region22: #{tpu_custom_call.1} parent=11 // pred_check_branch
          %209 = sbr.rel (%p207) target = $region24
        $region23: #{tpu_custom_call.1} parent=11 // pred_region
          _
        $region24: #{tpu_custom_call.1} parent=11 // pred_fallthru
          _
        // Predicated region
        $region25: #{tpu_custom_call.1} parent=11 // pred_check
          %p210 = pneg %p139
        $region26: #{tpu_custom_call.1} parent=11 // pred_check_branch
          %212 = sbr.rel (%p210) target = $region28
        $region27: #{tpu_custom_call.1} parent=11 // pred_region
          _
        $region28: #{tpu_custom_call.1} parent=11 // pred_fallthru
          _
        // Predicated region
        $region29: #{tpu_custom_call.1} parent=11 // pred_check
          %p213 = pneg %p160
        $region30: #{tpu_custom_call.1} parent=11 // pred_check_branch
          %215 = sbr.rel (%p213) target = $region32
        $region31: #{tpu_custom_call.1} parent=11 // pred_region
          _
        $region32: #{tpu_custom_call.1} parent=11 // pred_fallthru
          _
      $region12: #{tpu_custom_call.1} parent=5 // pred_fallthru
        _
      %p216 = scmp.lt.s32.totalorder %s15, 4
      // Predicated region
      $region33: #{tpu_custom_call.1} parent=5 // pred_check
        %p217 = pneg %p216
      $region34: #{tpu_custom_call.1} parent=5 // pred_check_branch
        %219 = sbr.rel (%p217) target = $region36
      $region35: #{tpu_custom_call.1} parent=5 // pred_region
        // Predicated region
        $region37: #{tpu_custom_call.1} parent=35 // pred_check
          %p220 = pneg %p49
        $region38: #{tpu_custom_call.1} parent=35 // pred_check_branch
          %222 = sbr.rel (%p220) target = $region40
        $region39: #{tpu_custom_call.1} parent=35 // pred_region
          %s223 = sand.u32 %s39, 1
          %s224 = sand.u32 %s39, 1
          %s225 = smul.addr %s224, 64
          %s226 = scalar_lea.vmem [#allocation3], %s225
          %s227 = smul.u32 4, %s23
          %s228 = smul.addr %s22, 32
          %s229 = sadd.s32 %s227, %s228
          %s230 = smul.addr %s229, 4
          %s231 = scalar_lea.vmem %s0, %s230
          // Predicated region
          $region41: #{tpu_custom_call.1} parent=39 // pred_check
            _
          $region42: #{tpu_custom_call.1} parent=39 // pred_check_branch
            %233 = sbr.rel (0) target = $region44
          $region43: #{tpu_custom_call.1} parent=39 // pred_region
            // Predicated region
            $region45: #{tpu_custom_call.1} parent=43 // pred_check
              _
            $region46: #{tpu_custom_call.1} parent=43 // pred_check_branch
              %235 = sbr.rel target = $region48
            $region47: #{tpu_custom_call.1} parent=43 // pred_region
              // Predicated region
              $region60: #{tpu_custom_call.1} parent=47 // pred_check
                _
              $region61: #{tpu_custom_call.1} parent=47 // pred_check_branch
                %280 = sbr.rel (0) target = $region63
              $region62: #{tpu_custom_call.1} parent=47 // pred_region
                loop: start=0, step=1, limit=1
                $region64: #{tpu_custom_call.1} parent=62 // loop_pre_header
                  _
                $region65: #{tpu_custom_call.1} parent=62 // loop_header
                  %s282 = sphi 0, %s286
                  %p283 = scmp.ge.s32.totalorder %s282, 1
                  %s287 = sphi %s231, %s231
                  %s288 = sphi %s226, %s226
                $region66: #{tpu_custom_call.1} parent=62 // loop_header_branch
                  %285 = sbr.rel (%p283) target = $region70
                $region67: #{tpu_custom_call.1} parent=62 // loop_body
                  _
                $region68: #{tpu_custom_call.1} parent=62 // loop_footer
                  %s286 = sadd.s32 1, %s282
                $region69: #{tpu_custom_call.1} parent=62 // loop_footer_branch
                  %281 = sbr.rel target = $region65
                $region70: #{tpu_custom_call.1} parent=62 // loop_exit
                  _
                loop: start=0, step=1, limit=1
                $region71: #{tpu_custom_call.1} parent=62 // loop_pre_header
                  _
                $region72: #{tpu_custom_call.1} parent=62 // loop_header
                  %s291 = sphi 0, %s295
                  %p292 = scmp.ge.s32.totalorder %s291, 1
                  %s296 = sphi %s231, %s231
                  %s297 = sphi %s226, %s226
                $region73: #{tpu_custom_call.1} parent=62 // loop_header_branch
                  %294 = sbr.rel (%p292) target = $region77
                $region74: #{tpu_custom_call.1} parent=62 // loop_body
                  %v298 = vld [vmem:[%s296] sm:$0xf]
                  %299 = vst [vmem:[%s297] sm:$0xf] %v298
                  %v300 = vld [vmem:[%s296 + $0x4] sm:$0xf]
                  %301 = vst [vmem:[%s297 + $0x4] sm:$0xf] %v300
                  %v302 = vld [vmem:[%s296 + $0x8] sm:$0xf]
                  %303 = vst [vmem:[%s297 + $0x8] sm:$0xf] %v302
                  %v304 = vld [vmem:[%s296 + $0xc] sm:$0xf]
                  %305 = vst [vmem:[%s297 + $0xc] sm:$0xf] %v304
                  %v306 = vld [vmem:[%s296 + $0x20] sm:$0xf]
                  %307 = vst [vmem:[%s297 + $0x10] sm:$0xf] %v306
                  %v308 = vld [vmem:[%s296 + $0x24] sm:$0xf]
                  %309 = vst [vmem:[%s297 + $0x14] sm:$0xf] %v308
                  %v310 = vld [vmem:[%s296 + $0x28] sm:$0xf]
                  %311 = vst [vmem:[%s297 + $0x18] sm:$0xf] %v310
                  %v312 = vld [vmem:[%s296 + $0x2c] sm:$0xf]
                  %313 = vst [vmem:[%s297 + $0x1c] sm:$0xf] %v312
                  %v314 = vld [vmem:[%s296 + $0x40] sm:$0xf]
                  %315 = vst [vmem:[%s297 + $0x20] sm:$0xf] %v314
                  %v316 = vld [vmem:[%s296 + $0x44] sm:$0xf]
                  %317 = vst [vmem:[%s297 + $0x24] sm:$0xf] %v316
                  %v318 = vld [vmem:[%s296 + $0x48] sm:$0xf]
                  %319 = vst [vmem:[%s297 + $0x28] sm:$0xf] %v318
                  %v320 = vld [vmem:[%s296 + $0x4c] sm:$0xf]
                  %321 = vst [vmem:[%s297 + $0x2c] sm:$0xf] %v320
                  %v322 = vld [vmem:[%s296 + $0x60] sm:$0xf]
                  %323 = vst [vmem:[%s297 + $0x30] sm:$0xf] %v322
                  %v324 = vld [vmem:[%s296 + $0x64] sm:$0xf]
                  %325 = vst [vmem:[%s297 + $0x34] sm:$0xf] %v324
                  %v326 = vld [vmem:[%s296 + $0x68] sm:$0xf]
                  %327 = vst [vmem:[%s297 + $0x38] sm:$0xf] %v326
                  %v328 = vld [vmem:[%s296 + $0x6c] sm:$0xf]
                  %329 = vst [vmem:[%s297 + $0x3c] sm:$0xf] %v328
                $region75: #{tpu_custom_call.1} parent=62 // loop_footer
                  %s295 = sadd.s32 1, %s291
                $region76: #{tpu_custom_call.1} parent=62 // loop_footer_branch
                  %290 = sbr.rel target = $region72
                $region77: #{tpu_custom_call.1} parent=62 // loop_exit
                  _
              $region63: #{tpu_custom_call.1} parent=47 // pred_fallthru
                _
            $region48: #{tpu_custom_call.1} parent=43 // pred_fallthru
              _
            // Predicated region
            $region49: #{tpu_custom_call.1} parent=43 // pred_check
              _
            $region50: #{tpu_custom_call.1} parent=43 // pred_check_branch
              %237 = sbr.rel (0) target = $region52
            $region51: #{tpu_custom_call.1} parent=43 // pred_region
              loop: start=0, step=1, limit=1
              $region53: #{tpu_custom_call.1} parent=51 // loop_pre_header
                _
              $region54: #{tpu_custom_call.1} parent=51 // loop_header
                %s240 = sphi 0, %s244
                %p241 = scmp.ge.s32.totalorder %s240, 1
                %s245 = sphi %s231, %s231
                %s246 = sphi %s226, %s226
              $region55: #{tpu_custom_call.1} parent=51 // loop_header_branch
                %243 = sbr.rel (%p241) target = $region59
              $region56: #{tpu_custom_call.1} parent=51 // loop_body
                %v247 = vld [vmem:[%s245] sm:$0xf]
                %248 = vst [vmem:[%s246] sm:$0xf] %v247
                %v249 = vld [vmem:[%s245 + $0x4] sm:$0xf]
                %250 = vst [vmem:[%s246 + $0x4] sm:$0xf] %v249
                %v251 = vld [vmem:[%s245 + $0x8] sm:$0xf]
                %252 = vst [vmem:[%s246 + $0x8] sm:$0xf] %v251
                %v253 = vld [vmem:[%s245 + $0xc] sm:$0xf]
                %254 = vst [vmem:[%s246 + $0xc] sm:$0xf] %v253
                %v255 = vld [vmem:[%s245 + $0x20] sm:$0xf]
                %256 = vst [vmem:[%s246 + $0x10] sm:$0xf] %v255
                %v257 = vld [vmem:[%s245 + $0x24] sm:$0xf]
                %258 = vst [vmem:[%s246 + $0x14] sm:$0xf] %v257
                %v259 = vld [vmem:[%s245 + $0x28] sm:$0xf]
                %260 = vst [vmem:[%s246 + $0x18] sm:$0xf] %v259
                %v261 = vld [vmem:[%s245 + $0x2c] sm:$0xf]
                %262 = vst [vmem:[%s246 + $0x1c] sm:$0xf] %v261
                %v263 = vld [vmem:[%s245 + $0x40] sm:$0xf]
                %264 = vst [vmem:[%s246 + $0x20] sm:$0xf] %v263
                %v265 = vld [vmem:[%s245 + $0x44] sm:$0xf]
                %266 = vst [vmem:[%s246 + $0x24] sm:$0xf] %v265
                %v267 = vld [vmem:[%s245 + $0x48] sm:$0xf]
                %268 = vst [vmem:[%s246 + $0x28] sm:$0xf] %v267
                %v269 = vld [vmem:[%s245 + $0x4c] sm:$0xf]
                %270 = vst [vmem:[%s246 + $0x2c] sm:$0xf] %v269
                %v271 = vld [vmem:[%s245 + $0x60] sm:$0xf]
                %272 = vst [vmem:[%s246 + $0x30] sm:$0xf] %v271
                %v273 = vld [vmem:[%s245 + $0x64] sm:$0xf]
                %274 = vst [vmem:[%s246 + $0x34] sm:$0xf] %v273
                %v275 = vld [vmem:[%s245 + $0x68] sm:$0xf]
                %276 = vst [vmem:[%s246 + $0x38] sm:$0xf] %v275
                %v277 = vld [vmem:[%s245 + $0x6c] sm:$0xf]
                %278 = vst [vmem:[%s246 + $0x3c] sm:$0xf] %v277
              $region57: #{tpu_custom_call.1} parent=51 // loop_footer
                %s244 = sadd.s32 1, %s240
              $region58: #{tpu_custom_call.1} parent=51 // loop_footer_branch
                %239 = sbr.rel target = $region54
              $region59: #{tpu_custom_call.1} parent=51 // loop_exit
                _
            $region52: #{tpu_custom_call.1} parent=43 // pred_fallthru
              _
          $region44: #{tpu_custom_call.1} parent=39 // pred_fallthru
            _
          %330 = vnop
        $region40: #{tpu_custom_call.1} parent=35 // pred_fallthru
          _
      $region36: #{tpu_custom_call.1} parent=5 // pred_fallthru
        _
      %p331 = scmp.le.s32.totalorder 1, %s15
      %p332 = scmp.lt.s32.totalorder %s15, 5
      %p333 = pnand %p331, %p332
      %p334 = pneg %p333
      // Predicated region
      $region78: #{tpu_custom_call.1} parent=5 // pred_check
        _
      $region79: #{tpu_custom_call.1} parent=5 // pred_check_branch
        %336 = sbr.rel (%p333) target = $region81
      $region80: #{tpu_custom_call.1} parent=5 // pred_region
        %s337 = ssub.s32 %s15, 1
        %s338 = sand.u32 %s42, 1
        %s339 = sand.u32 %s42, 1
        %s340 = smul.addr %s339, 64
        %s341 = scalar_lea.vmem [#allocation3], %s340
        // Predicated region
        $region82: #{tpu_custom_call.1} parent=80 // pred_check
          %p342 = pneg %p55
        $region83: #{tpu_custom_call.1} parent=80 // pred_check_branch
          %344 = sbr.rel (%p342) target = $region85
        $region84: #{tpu_custom_call.1} parent=80 // pred_region
          _
        $region85: #{tpu_custom_call.1} parent=80 // pred_fallthru
          _
        %s345 = sand.u32 %s42, 1
        %s346 = sand.u32 %s42, 1
        %s347 = smul.addr %s346, 64
        %s348 = scalar_lea.vmem [#allocation3], %s347
        %p349 = pneg %p55
        %p350 = pneg %p52
        %p351 = pneg %p76
        %p352 = pneg %p73
        %p353 = pneg %p97
        %p354 = pneg %p94
        %p355 = pneg %p118
        %p356 = pneg %p115
        %p357 = pneg %p139
        %p358 = pneg %p136
        %p359 = pneg %p160
        %p360 = pneg %p157
        %p361 = pneg %p186
        %p362 = pneg %p183
        %s363 = sand.u32 %s173, 1
        %s364 = scalar_lea.sflag [#allocation5], %s363
        %s365 = sand.u32 %s173, 1
        %s366 = smul.addr %s365, 64
        %s367 = scalar_lea.vmem [#allocation4], %s366
        %s368 = smul.u32 4, %s25
        %p370 = scmp.eq.s32.totalorder %s25, 0
        // Predicated region
        $region86: #{tpu_custom_call.1} parent=80 // pred_check
          %p371 = pneg %p370
        $region87: #{tpu_custom_call.1} parent=80 // pred_check_branch
          %373 = sbr.rel (%p371) target = $region89
        $region88: #{tpu_custom_call.1} parent=80 // pred_region
          %374 = vst [vmem:[#allocation2] sm:$0xff] 0.0
          %375 = vst [vmem:[#allocation2 + $0x8] sm:$0xff] 0.0
          %376 = vst [vmem:[#allocation2 + $0x10] sm:$0xff] 0.0
          %377 = vst [vmem:[#allocation2 + $0x18] sm:$0xff] 0.0
          %378 = vst [vmem:[#allocation2 + $0x20] sm:$0xff] 0.0
          %379 = vst [vmem:[#allocation2 + $0x28] sm:$0xff] 0.0
          %s380 = scalar_lea.vmem [#allocation2], 176
          %381 = vst [vmem:[%s380] sm:$0xff] 0.0
          %382 = vst [vmem:[%s380 + $0x8] sm:$0xff] 0.0
          %383 = vst [vmem:[%s380 + $0x10] sm:$0xff] 0.0
          %384 = vst [vmem:[%s380 + $0x18] sm:$0xff] 0.0
          %385 = vst [vmem:[%s380 + $0x20] sm:$0xff] 0.0
          %386 = vst [vmem:[%s380 + $0x28] sm:$0xff] 0.0
          %s387 = scalar_lea.vmem [#allocation2], 48
          %388 = vst [vmem:[%s387] sm:$0x7] 0.0
          %389 = vst [vmem:[%s387 + $0x10] sm:$0x7] 0.0
          %390 = vst [vmem:[%s387 + $0x20] sm:$0x7] 0.0
          %391 = vst [vmem:[%s387 + $0x30] sm:$0x7] 0.0
          %392 = vst [vmem:[%s387 + $0x40] sm:$0x7] 0.0
          %393 = vst [vmem:[%s387 + $0x50] sm:$0x7] 0.0
          %394 = vst [vmem:[%s387 + $0x60] sm:$0x7] 0.0
          %395 = vst [vmem:[%s387 + $0x70] sm:$0x7] 0.0
          %396 = vst [vmem:[%s387 + $0xb] sm:$0x1f] 0.0
          %397 = vst [vmem:[%s387 + $0x1b] sm:$0x1f] 0.0
          %398 = vst [vmem:[%s387 + $0x2b] sm:$0x1f] 0.0
          %399 = vst [vmem:[%s387 + $0x3b] sm:$0x1f] 0.0
          %400 = vst [vmem:[%s387 + $0x4b] sm:$0x1f] 0.0
          %401 = vst [vmem:[%s387 + $0x5b] sm:$0x1f] 0.0
          %402 = vst [vmem:[%s387 + $0x6b] sm:$0x1f] 0.0
          %403 = vst [vmem:[%s387 + $0x7b] sm:$0x1f] 0.0
        $region89: #{tpu_custom_call.1} parent=80 // pred_fallthru
          _
        %v404 = vld [vmem:[%s341] sm:$0xf]
        %v405 = vld [vmem:[%s341 + $0x4] sm:$0xf]
        %v406 = vld [vmem:[%s341 + $0x8] sm:$0xf]
        %v407 = vld [vmem:[%s341 + $0xc] sm:$0xf]
        %v408 = vld [vmem:[%s341 + $0x10] sm:$0xf]
        %v409 = vld [vmem:[%s341 + $0x14] sm:$0xf]
        %v410 = vld [vmem:[%s341 + $0x18] sm:$0xf]
        %v411 = vld [vmem:[%s341 + $0x1c] sm:$0xf]
        %v412 = vld [vmem:[%s341 + $0x20] sm:$0xf]
        %v413 = vld [vmem:[%s341 + $0x24] sm:$0xf]
        %v414 = vld [vmem:[%s341 + $0x28] sm:$0xf]
        %v415 = vld [vmem:[%s341 + $0x2c] sm:$0xf]
        %v416 = vld [vmem:[%s341 + $0x30] sm:$0xf]
        %v417 = vld [vmem:[%s341 + $0x34] sm:$0xf]
        %v418 = vld [vmem:[%s341 + $0x38] sm:$0xf]
        %v419 = vld [vmem:[%s341 + $0x3c] sm:$0xf]
        %v420 = vld [vmem:[%s1] sm:$0x3]
        %v421 = vld [vmem:[%s2] sm:$0x1]
        %v423 = vlaneseq
        %v424 = vshrl.u32 %v423, 7
        %v425 = vsub.s32 0, %v424
        %v426 = vrot.slane %v421, %v425
        %v444 = vunpack.c.l.b16 %v404
        %v445 = vunpack.c.l.b16 %v405
        %v446 = vunpack.c.l.b16 %v406
        %v447 = vunpack.c.l.b16 %v407
        %v448 = vunpack.c.l.b16 %v408
        %v449 = vunpack.c.l.b16 %v409
        %v450 = vunpack.c.l.b16 %v410
        %v451 = vunpack.c.l.b16 %v411
        %v452 = vunpack.c.l.b16 %v412
        %v453 = vunpack.c.l.b16 %v413
        %v454 = vunpack.c.l.b16 %v414
        %v455 = vunpack.c.l.b16 %v415
        %v456 = vunpack.c.l.b16 %v416
        %v457 = vunpack.c.l.b16 %v417
        %v458 = vunpack.c.l.b16 %v418
        %v459 = vunpack.c.l.b16 %v419
        %v460 = vpack.c.b16 %v445, %v444
        %v461 = vpack.c.b16 %v447, %v446
        %v462 = vpack.c.b16 %v449, %v448
        %v463 = vpack.c.b16 %v451, %v450
        %v464 = vpack.c.b16 %v453, %v452
        %v465 = vpack.c.b16 %v455, %v454
        %v466 = vpack.c.b16 %v457, %v456
        %v467 = vpack.c.b16 %v459, %v458
        %vm468 = vcmask 31744
        %v470 = vsel %vm468, %v460, 0
        %v473 = vsel %vm468, %v461, 0
        %v476 = vsel %vm468, %v462, 0
        %v479 = vsel %vm468, %v463, 0
        %v482 = vsel %vm468, %v464, 0
        %v485 = vsel %vm468, %v465, 0
        %v488 = vsel %vm468, %v466, 0
        %v491 = vsel %vm468, %v467, 0
        %vm493 = vcmask 1041408
        %v495 = vsel %vm493, %v420, 0
        %497 = vmatprep.subr.bf16.mxu0 0
        %498 = vmatpush1.bf16.msra.mxu0 %v495
        %499 = vmatprep.subr.bf16.mxu0 0
        %500 = vmatpush1.bf16.msra.mxu0 0
        %501 = vmatprep.subr.bf16.mxu0 0
        %502 = vmatpush1.bf16.msra.mxu0 0
        %503 = vmatprep.subr.bf16.mxu0 0
        %504 = vmatpush1.bf16.msra.mxu0 0
        %505 = vmatprep.subr.bf16.mxu0 0
        %506 = vmatpush1.bf16.msra.mxu0 0
        %507 = vmatprep.subr.bf16.mxu0 0
        %508 = vmatpush1.bf16.msra.mxu0 0
        %509 = vmatprep.subr.bf16.mxu0 0
        %510 = vmatpush1.bf16.msra.mxu0 0
        %511 = vmatprep.subr.bf16.mxu0 0
        %512 = vmatpush1.bf16.msra.mxu0 0
        %513 = vmatprep.subr.bf16.mxu0 0
        %514 = vmatpush1.bf16.msra.mxu0 0
        %515 = vmatprep.subr.bf16.mxu0 0
        %516 = vmatpush1.bf16.msra.mxu0 0
        %517 = vmatprep.subr.bf16.mxu0 0
        %518 = vmatpush1.bf16.msra.mxu0 0
        %519 = vmatprep.subr.bf16.mxu0 0
        %520 = vmatpush1.bf16.msra.mxu0 0
        %521 = vmatprep.subr.bf16.mxu0 0
        %522 = vmatpush1.bf16.msra.mxu0 0
        %523 = vmatprep.subr.bf16.mxu0 0
        %524 = vmatpush1.bf16.msra.mxu0 0
        %525 = vmatprep.subr.bf16.mxu0 0
        %526 = vmatpush1.bf16.msra.mxu0 0
        %527 = vmatprep.subr.bf16.mxu0 0
        %528 = vmatpush1.bf16.msra.mxu0 0
        %529 = vmatprep.mubr.bf16.mxu0 0
        %530 = vmatmul.mubr.bf16.gmra.mrb[0].mxu0 %v470
        %v531 = vpop.f32.mrb[0].mxu0
        %v532 = vadd.f32 %v426, %v531
        %v533 = vpop.f32.mrb[0].mxu0
        %v534 = vpop.f32.mrb[0].mxu0
        %v535 = vadd.f32 %v426, %v534
        %v536 = vpop.f32.mrb[0].mxu0
        %537 = vmatprep.mubr.bf16.mxu0 0
        %538 = vmatmul.mubr.bf16.gmra.mrb[0].mxu0 %v473
        %v539 = vpop.f32.mrb[0].mxu0
        %v540 = vadd.f32 %v426, %v539
        %v541 = vpop.f32.mrb[0].mxu0
        %v542 = vpop.f32.mrb[0].mxu0
        %v543 = vadd.f32 %v426, %v542
        %v544 = vpop.f32.mrb[0].mxu0
        %545 = vmatprep.mubr.bf16.mxu0 0
        %546 = vmatmul.mubr.bf16.gmra.mrb[0].mxu0 %v476
        %v547 = vpop.f32.mrb[0].mxu0
        %v548 = vadd.f32 %v426, %v547
        %v549 = vpop.f32.mrb[0].mxu0
        %v550 = vpop.f32.mrb[0].mxu0
        %v551 = vadd.f32 %v426, %v550
        %v552 = vpop.f32.mrb[0].mxu0
        %553 = vmatprep.mubr.bf16.mxu0 0
        %554 = vmatmul.mubr.bf16.gmra.mrb[0].mxu0 %v479
        %v555 = vpop.f32.mrb[0].mxu0
        %v556 = vadd.f32 %v426, %v555
        %v557 = vpop.f32.mrb[0].mxu0
        %v558 = vpop.f32.mrb[0].mxu0
        %v559 = vadd.f32 %v426, %v558
        %v560 = vpop.f32.mrb[0].mxu0
        %561 = vmatprep.mubr.bf16.mxu0 0
        %562 = vmatmul.mubr.bf16.gmra.mrb[0].mxu0 %v482
        %v563 = vpop.f32.mrb[0].mxu0
        %v564 = vadd.f32 %v426, %v563
        %v565 = vpop.f32.mrb[0].mxu0
        %v566 = vpop.f32.mrb[0].mxu0
        %v567 = vadd.f32 %v426, %v566
        %v568 = vpop.f32.mrb[0].mxu0
        %569 = vmatprep.mubr.bf16.mxu0 0
        %570 = vmatmul.mubr.bf16.gmra.mrb[0].mxu0 %v485
        %v571 = vpop.f32.mrb[0].mxu0
        %v572 = vadd.f32 %v426, %v571
        %v573 = vpop.f32.mrb[0].mxu0
        %v574 = vpop.f32.mrb[0].mxu0
        %v575 = vadd.f32 %v426, %v574
        %v576 = vpop.f32.mrb[0].mxu0
        %577 = vmatprep.mubr.bf16.mxu0 0
        %578 = vmatmul.mubr.bf16.gmra.mrb[0].mxu0 %v488
        %v579 = vpop.f32.mrb[0].mxu0
        %v580 = vadd.f32 %v426, %v579
        %v581 = vpop.f32.mrb[0].mxu0
        %v582 = vpop.f32.mrb[0].mxu0
        %v583 = vadd.f32 %v426, %v582
        %v584 = vpop.f32.mrb[0].mxu0
        %585 = vmatprep.mubr.bf16.mxu0 0
        %586 = vmatmul.mubr.bf16.gmra.mrb[0].mxu0 %v491
        %v587 = vpop.f32.mrb[0].mxu0
        %v588 = vadd.f32 %v426, %v587
        %v589 = vpop.f32.mrb[0].mxu0
        %v590 = vpop.f32.mrb[0].mxu0
        %v591 = vadd.f32 %v426, %v590
        %v592 = vpop.f32.mrb[0].mxu0
        %593 = vdwg.mxu0
        %v594 = vpack.c.bf16 %v535, %v532
        %v595 = vpack.c.bf16 %v543, %v540
        %v596 = vpack.c.bf16 %v551, %v548
        %v597 = vpack.c.bf16 %v559, %v556
        %v598 = vpack.c.bf16 %v567, %v564
        %v599 = vpack.c.bf16 %v575, %v572
        %v600 = vpack.c.bf16 %v583, %v580
        %v601 = vpack.c.bf16 %v591, %v588
        %v602 = vld [vmem:[%s3] sm:$0xf]
        %v603 = vld [vmem:[%s3 + $0x4] sm:$0xf]
        %v604 = vld [vmem:[%s3 + $0x8] sm:$0xf]
        %v605 = vld [vmem:[%s3 + $0xc] sm:$0xf]
        %v606 = vld [vmem:[%s3 + $0x10] sm:$0xf]
        %v607 = vld [vmem:[%s3 + $0x14] sm:$0xf]
        %v608 = vld [vmem:[%s3 + $0x18] sm:$0xf]
        %v609 = vld [vmem:[%s3 + $0x1c] sm:$0xf]
        %v610 = vld [vmem:[%s3 + $0x20] sm:$0xf]
        %v611 = vld [vmem:[%s3 + $0x24] sm:$0xf]
        %v612 = vld [vmem:[%s3 + $0x28] sm:$0xf]
        %v613 = vld [vmem:[%s3 + $0x2c] sm:$0xf]
        %v614 = vld [vmem:[%s3 + $0x30] sm:$0xf]
        %v615 = vld [vmem:[%s3 + $0x34] sm:$0xf]
        %v616 = vld [vmem:[%s3 + $0x38] sm:$0xf]
        %v617 = vld [vmem:[%s3 + $0x3c] sm:$0xf]
        %v618 = vld [vmem:[%s4] sm:$0x1]
        %v620 = vlaneseq
        %v621 = vshrl.u32 %v620, 7
        %v622 = vsub.s32 0, %v621
        %v623 = vrot.slane %v618, %v622
        %v641 = vunpack.c.l.b16 %v602
        %v642 = vunpack.c.l.b16 %v603
        %v643 = vunpack.c.l.b16 %v604
        %v644 = vunpack.c.l.b16 %v605
        %v645 = vunpack.c.l.b16 %v606
        %v646 = vunpack.c.l.b16 %v607
        %v647 = vunpack.c.l.b16 %v608
        %v648 = vunpack.c.l.b16 %v609
        %v649 = vunpack.c.l.b16 %v610
        %v650 = vunpack.c.l.b16 %v611
        %v651 = vunpack.c.l.b16 %v612
        %v652 = vunpack.c.l.b16 %v613
        %v653 = vunpack.c.l.b16 %v614
        %v654 = vunpack.c.l.b16 %v615
        %v655 = vunpack.c.l.b16 %v616
        %v656 = vunpack.c.l.b16 %v617
        %v657 = vpack.c.b16 %v642, %v641
        %v658 = vpack.c.b16 %v644, %v643
        %v659 = vpack.c.b16 %v646, %v645
        %v660 = vpack.c.b16 %v648, %v647
        %v661 = vpack.c.b16 %v650, %v649
        %v662 = vpack.c.b16 %v652, %v651
        %v663 = vpack.c.b16 %v654, %v653
        %v664 = vpack.c.b16 %v656, %v655
        %673 = vmatprep.subr.bf16.mxu0 0
        %674 = vmatpush1.bf16.msra.mxu0 %v657
        %675 = vmatprep.subr.bf16.mxu0 0
        %676 = vmatpush1.bf16.msra.mxu0 %v658
        %677 = vmatprep.subr.bf16.mxu0 0
        %678 = vmatpush1.bf16.msra.mxu0 %v659
        %679 = vmatprep.subr.bf16.mxu0 0
        %680 = vmatpush1.bf16.msra.mxu0 %v660
        %681 = vmatprep.subr.bf16.mxu0 0
        %682 = vmatpush1.bf16.msra.mxu0 %v661
        %683 = vmatprep.subr.bf16.mxu0 0
        %684 = vmatpush1.bf16.msra.mxu0 %v662
        %685 = vmatprep.subr.bf16.mxu0 0
        %686 = vmatpush1.bf16.msra.mxu0 %v663
        %687 = vmatprep.subr.bf16.mxu0 0
        %688 = vmatpush1.bf16.msra.mxu0 %v664
        %689 = vmatprep.subr.bf16.mxu0 0
        %690 = vmatpush1.bf16.msra.mxu0 0
        %691 = vmatprep.subr.bf16.mxu0 0
        %692 = vmatpush1.bf16.msra.mxu0 0
        %693 = vmatprep.subr.bf16.mxu0 0
        %694 = vmatpush1.bf16.msra.mxu0 0
        %695 = vmatprep.subr.bf16.mxu0 0
        %696 = vmatpush1.bf16.msra.mxu0 0
        %697 = vmatprep.subr.bf16.mxu0 0
        %698 = vmatpush1.bf16.msra.mxu0 0
        %699 = vmatprep.subr.bf16.mxu0 0
        %700 = vmatpush1.bf16.msra.mxu0 0
        %701 = vmatprep.subr.bf16.mxu0 0
        %702 = vmatpush1.bf16.msra.mxu0 0
        %703 = vmatprep.subr.bf16.mxu0 0
        %704 = vmatpush1.bf16.msra.mxu0 0
        %705 = vmatprep.mubr.bf16.mxu0 0
        %706 = vmatmul.mubr.bf16.gmra.mrb[0].mxu0 %v594
        %v707 = vpop.f32.mrb[0].mxu0
        %v708 = vadd.f32 %v623, %v707
        %v709 = vpop.f32.mrb[0].mxu0
        %v710 = vpop.f32.mrb[0].mxu0
        %v711 = vadd.f32 %v623, %v710
        %v712 = vpop.f32.mrb[0].mxu0
        %713 = vmatprep.mubr.bf16.mxu0 0
        %714 = vmatmul.mubr.bf16.gmra.mrb[0].mxu0 %v595
        %v715 = vpop.f32.mrb[0].mxu0
        %v716 = vadd.f32 %v623, %v715
        %v717 = vpop.f32.mrb[0].mxu0
        %v718 = vpop.f32.mrb[0].mxu0
        %v719 = vadd.f32 %v623, %v718
        %v720 = vpop.f32.mrb[0].mxu0
        %721 = vmatprep.mubr.bf16.mxu0 0
        %722 = vmatmul.mubr.bf16.gmra.mrb[0].mxu0 %v596
        %v723 = vpop.f32.mrb[0].mxu0
        %v724 = vadd.f32 %v623, %v723
        %v725 = vpop.f32.mrb[0].mxu0
        %v726 = vpop.f32.mrb[0].mxu0
        %v727 = vadd.f32 %v623, %v726
        %v728 = vpop.f32.mrb[0].mxu0
        %729 = vmatprep.mubr.bf16.mxu0 0
        %730 = vmatmul.mubr.bf16.gmra.mrb[0].mxu0 %v597
        %v731 = vpop.f32.mrb[0].mxu0
        %v732 = vadd.f32 %v623, %v731
        %v733 = vpop.f32.mrb[0].mxu0
        %v734 = vpop.f32.mrb[0].mxu0
        %v735 = vadd.f32 %v623, %v734
        %v736 = vpop.f32.mrb[0].mxu0
        %737 = vmatprep.mubr.bf16.mxu0 0
        %738 = vmatmul.mubr.bf16.gmra.mrb[0].mxu0 %v598
        %v739 = vpop.f32.mrb[0].mxu0
        %v740 = vadd.f32 %v623, %v739
        %v741 = vpop.f32.mrb[0].mxu0
        %v742 = vpop.f32.mrb[0].mxu0
        %v743 = vadd.f32 %v623, %v742
        %v744 = vpop.f32.mrb[0].mxu0
        %745 = vmatprep.mubr.bf16.mxu0 0
        %746 = vmatmul.mubr.bf16.gmra.mrb[0].mxu0 %v599
        %v747 = vpop.f32.mrb[0].mxu0
        %v748 = vadd.f32 %v623, %v747
        %v749 = vpop.f32.mrb[0].mxu0
        %v750 = vpop.f32.mrb[0].mxu0
        %v751 = vadd.f32 %v623, %v750
        %v752 = vpop.f32.mrb[0].mxu0
        %753 = vmatprep.mubr.bf16.mxu0 0
        %754 = vmatmul.mubr.bf16.gmra.mrb[0].mxu0 %v600
        %v755 = vpop.f32.mrb[0].mxu0
        %v756 = vadd.f32 %v623, %v755
        %v757 = vpop.f32.mrb[0].mxu0
        %v758 = vpop.f32.mrb[0].mxu0
        %v759 = vadd.f32 %v623, %v758
        %v760 = vpop.f32.mrb[0].mxu0
        %761 = vmatprep.mubr.bf16.mxu0 0
        %762 = vmatmul.mubr.bf16.gmra.mrb[0].mxu0 %v601
        %v763 = vpop.f32.mrb[0].mxu0
        %v764 = vadd.f32 %v623, %v763
        %v765 = vpop.f32.mrb[0].mxu0
        %v766 = vpop.f32.mrb[0].mxu0
        %v767 = vadd.f32 %v623, %v766
        %v768 = vpop.f32.mrb[0].mxu0
        %769 = vdwg.mxu0
        %v770 = vmax.f32 %v708, %v724
        %v771 = vmax.f32 %v711, %v727
        %v772 = vmax.f32 %v716, %v732
        %v773 = vmax.f32 %v719, %v735
        %v774 = vmax.f32 %v740, %v756
        %v775 = vmax.f32 %v743, %v759
        %v776 = vmax.f32 %v748, %v764
        %v777 = vmax.f32 %v751, %v767
        %v778 = vmax.f32 %v770, %v774
        %v779 = vmax.f32 %v771, %v775
        %v780 = vmax.f32 %v772, %v776
        %v781 = vmax.f32 %v773, %v777
        %v782 = vmax.f32 %v778, 0.0
        %v783 = vmax.f32 %v779, 0.0
        %v784 = vmax.f32 %v780, 0.0
        %v785 = vmax.f32 %v781, 0.0
        %s786 = smul.u32 %s25, 4
        %s787 = sadd.s32 %s786, 3
        %s788 = smul.u32 %s787, 16
        %s789 = scalar_lea.vmem [#allocation2], %s788
        %790 = vst [vmem:[%s789 + $0x3] sm:$0xff] %v782
        %791 = vst [vmem:[%s789 + $0x13] sm:$0xff] %v783
        %792 = vst [vmem:[%s789 + $0x23] sm:$0xff] %v784
        %793 = vst [vmem:[%s789 + $0x33] sm:$0xff] %v785
        %p794 = scmp.eq.s32.totalorder %s25, 1
        // Predicated region
        $region90: #{tpu_custom_call.1} parent=80 // pred_check
          %p795 = pneg %p794
        $region91: #{tpu_custom_call.1} parent=80 // pred_check_branch
          %797 = sbr.rel (%p795) target = $region93
        $region92: #{tpu_custom_call.1} parent=80 // pred_region
          %v798 = vld [vmem:[%s5] sm:$0xff]
          %v799 = vld [vmem:[%s5 + $0x8] sm:$0xff]
          %v800 = vld [vmem:[%s5 + $0x10] sm:$0xff]
          %v801 = vld [vmem:[%s5 + $0x18] sm:$0xff]
          %v802 = vld [vmem:[%s5 + $0x20] sm:$0xff]
          %v803 = vld [vmem:[%s5 + $0x28] sm:$0xff]
          %v804 = vld [vmem:[%s5 + $0x30] sm:$0x1]
          %v805 = vld [vmem:[#allocation2] sm:$0xff]
          %v806 = vld [vmem:[#allocation2 + $0x8] sm:$0xff]
          %v807 = vld [vmem:[#allocation2 + $0x10] sm:$0xff]
          %v808 = vld [vmem:[#allocation2 + $0x18] sm:$0xff]
          %v809 = vld [vmem:[#allocation2 + $0x20] sm:$0xff]
          %v810 = vld [vmem:[#allocation2 + $0x28] sm:$0xff]
          %v811 = vld [vmem:[#allocation2 + $0x30] sm:$0xff]
          %v812 = vld [vmem:[#allocation2 + $0x38] sm:$0xff]
          %v813 = vld [vmem:[#allocation2 + $0x40] sm:$0xff]
          %v814 = vld [vmem:[#allocation2 + $0x48] sm:$0xff]
          %v815 = vld [vmem:[#allocation2 + $0x50] sm:$0xff]
          %v816 = vld [vmem:[#allocation2 + $0x58] sm:$0xff]
          %v817 = vld [vmem:[#allocation2 + $0x60] sm:$0xff]
          %v818 = vld [vmem:[#allocation2 + $0x68] sm:$0xff]
          %v819 = vld [vmem:[#allocation2 + $0x70] sm:$0xff]
          %v820 = vld [vmem:[#allocation2 + $0x78] sm:$0xff]
          %v821 = vlaneseq
          %v822 = vshrl.u32 %v821, 7
          %v823 = vsub.s32 0, %v822
          %v824 = vrot.slane %v798, %v823
          %v825 = vmul.f32 %v805, %v824
          %v826 = vmul.f32 %v807, %v824
          %v827 = vmul.f32 %v809, %v824
          %v828 = vmul.f32 %v811, %v824
          %v829 = vmul.f32 %v813, %v824
          %v830 = vmul.f32 %v815, %v824
          %v831 = vmul.f32 %v817, %v824
          %v832 = vmul.f32 %v819, %v824
          %v833 = vrot.slane %v805, 1
          %v834 = vrot.slane %v807, 1
          %v835 = vrot.slane %v809, 1
          %v836 = vrot.slane %v811, 1
          %v837 = vrot.slane %v813, 1
          %v838 = vrot.slane %v815, 1
          %v839 = vrot.slane %v817, 1
          %v840 = vrot.slane %v819, 1
          %v841 = vrot.slane %v806, 1
          %v842 = vrot.slane %v808, 1
          %v843 = vrot.slane %v810, 1
          %v844 = vrot.slane %v812, 1
          %v845 = vrot.slane %v814, 1
          %v846 = vrot.slane %v816, 1
          %v847 = vrot.slane %v818, 1
          %v848 = vrot.slane %v820, 1
          %v849 = vlaneseq
          %v850 = vshrl.u32 %v849, 7
          %vm851 = vcmp.lt.s32.totalorder %v850, 7
          %v852 = vsel %vm851, %v833, %v841
          %v853 = vsel %vm851, %v834, %v842
          %v854 = vsel %vm851, %v835, %v843
          %v855 = vsel %vm851, %v836, %v844
          %v856 = vsel %vm851, %v837, %v845
          %v857 = vsel %vm851, %v838, %v846
          %v858 = vsel %vm851, %v839, %v847
          %v859 = vsel %vm851, %v840, %v848
          %v860 = vsel %vm851, %v841, %v833
          %v861 = vsel %vm851, %v842, %v834
          %v862 = vsel %vm851, %v843, %v835
          %v863 = vsel %vm851, %v844, %v836
          %v864 = vsel %vm851, %v845, %v837
          %v865 = vsel %vm851, %v846, %v838
          %v866 = vsel %vm851, %v847, %v839
          %v867 = vsel %vm851, %v848, %v840
          %v868 = vlaneseq
          %v869 = vshrl.u32 %v868, 7
          %v870 = vsub.s32 1, %v869
          %v871 = vrot.slane %v798, %v870
          %v872 = vmul.f32 %v852, %v871
          %v873 = vmul.f32 %v853, %v871
          %v874 = vmul.f32 %v854, %v871
          %v875 = vmul.f32 %v855, %v871
          %v876 = vmul.f32 %v856, %v871
          %v877 = vmul.f32 %v857, %v871
          %v878 = vmul.f32 %v858, %v871
          %v879 = vmul.f32 %v859, %v871
          %v880 = vadd.f32 %v825, %v872
          %v881 = vadd.f32 %v826, %v873
          %v882 = vadd.f32 %v827, %v874
          %v883 = vadd.f32 %v828, %v875
          %v884 = vadd.f32 %v829, %v876
          %v885 = vadd.f32 %v830, %v877
          %v886 = vadd.f32 %v831, %v878
          %v887 = vadd.f32 %v832, %v879
          %v888 = vrot.slane %v852, 1
          %v889 = vrot.slane %v853, 1
          %v890 = vrot.slane %v854, 1
          %v891 = vrot.slane %v855, 1
          %v892 = vrot.slane %v856, 1
          %v893 = vrot.slane %v857, 1
          %v894 = vrot.slane %v858, 1
          %v895 = vrot.slane %v859, 1
          %v896 = vrot.slane %v860, 1
          %v897 = vrot.slane %v861, 1
          %v898 = vrot.slane %v862, 1
          %v899 = vrot.slane %v863, 1
          %v900 = vrot.slane %v864, 1
          %v901 = vrot.slane %v865, 1
          %v902 = vrot.slane %v866, 1
          %v903 = vrot.slane %v867, 1
          %v904 = vsel %vm851, %v888, %v896
          %v905 = vsel %vm851, %v889, %v897
          %v906 = vsel %vm851, %v890, %v898
          %v907 = vsel %vm851, %v891, %v899
          %v908 = vsel %vm851, %v892, %v900
          %v909 = vsel %vm851, %v893, %v901
          %v910 = vsel %vm851, %v894, %v902
          %v911 = vsel %vm851, %v895, %v903
          %v912 = vsel %vm851, %v896, %v888
          %v913 = vsel %vm851, %v897, %v889
          %v914 = vsel %vm851, %v898, %v890
          %v915 = vsel %vm851, %v899, %v891
          %v916 = vsel %vm851, %v900, %v892
          %v917 = vsel %vm851, %v901, %v893
          %v918 = vsel %vm851, %v902, %v894
          %v919 = vsel %vm851, %v903, %v895
          %v920 = vlaneseq
          %v921 = vshrl.u32 %v920, 7
          %v922 = vsub.s32 2, %v921
          %v923 = vrot.slane %v798, %v922
          %v924 = vmul.f32 %v904, %v923
          %v925 = vmul.f32 %v905, %v923
          %v926 = vmul.f32 %v906, %v923
          %v927 = vmul.f32 %v907, %v923
          %v928 = vmul.f32 %v908, %v923
          %v929 = vmul.f32 %v909, %v923
          %v930 = vmul.f32 %v910, %v923
          %v931 = vmul.f32 %v911, %v923
          %v932 = vadd.f32 %v880, %v924
          %v933 = vadd.f32 %v881, %v925
          %v934 = vadd.f32 %v882, %v926
          %v935 = vadd.f32 %v883, %v927
          %v936 = vadd.f32 %v884, %v928
          %v937 = vadd.f32 %v885, %v929
          %v938 = vadd.f32 %v886, %v930
          %v939 = vadd.f32 %v887, %v931
          %v940 = vrot.slane %v904, 1
          %v941 = vrot.slane %v905, 1
          %v942 = vrot.slane %v906, 1
          %v943 = vrot.slane %v907, 1
          %v944 = vrot.slane %v908, 1
          %v945 = vrot.slane %v909, 1
          %v946 = vrot.slane %v910, 1
          %v947 = vrot.slane %v911, 1
          %v948 = vrot.slane %v912, 1
          %v949 = vrot.slane %v913, 1
          %v950 = vrot.slane %v914, 1
          %v951 = vrot.slane %v915, 1
          %v952 = vrot.slane %v916, 1
          %v953 = vrot.slane %v917, 1
          %v954 = vrot.slane %v918, 1
          %v955 = vrot.slane %v919, 1
          %v956 = vsel %vm851, %v940, %v948
          %v957 = vsel %vm851, %v941, %v949
          %v958 = vsel %vm851, %v942, %v950
          %v959 = vsel %vm851, %v943, %v951
          %v960 = vsel %vm851, %v944, %v952
          %v961 = vsel %vm851, %v945, %v953
          %v962 = vsel %vm851, %v946, %v954
          %v963 = vsel %vm851, %v947, %v955
          %v964 = vsel %vm851, %v948, %v940
          %v965 = vsel %vm851, %v949, %v941
          %v966 = vsel %vm851, %v950, %v942
          %v967 = vsel %vm851, %v951, %v943
          %v968 = vsel %vm851, %v952, %v944
          %v969 = vsel %vm851, %v953, %v945
          %v970 = vsel %vm851, %v954, %v946
          %v971 = vsel %vm851, %v955, %v947
          %v972 = vlaneseq
          %v973 = vshrl.u32 %v972, 7
          %v974 = vsub.s32 3, %v973
          %v975 = vrot.slane %v798, %v974
          %v976 = vmul.f32 %v956, %v975
          %v977 = vmul.f32 %v957, %v975
          %v978 = vmul.f32 %v958, %v975
          %v979 = vmul.f32 %v959, %v975
          %v980 = vmul.f32 %v960, %v975
          %v981 = vmul.f32 %v961, %v975
          %v982 = vmul.f32 %v962, %v975
          %v983 = vmul.f32 %v963, %v975
          %v984 = vadd.f32 %v932, %v976
          %v985 = vadd.f32 %v933, %v977
          %v986 = vadd.f32 %v934, %v978
          %v987 = vadd.f32 %v935, %v979
          %v988 = vadd.f32 %v936, %v980
          %v989 = vadd.f32 %v937, %v981
          %v990 = vadd.f32 %v938, %v982
          %v991 = vadd.f32 %v939, %v983
          %v992 = vrot.slane %v956, 1
          %v993 = vrot.slane %v957, 1
          %v994 = vrot.slane %v958, 1
          %v995 = vrot.slane %v959, 1
          %v996 = vrot.slane %v960, 1
          %v997 = vrot.slane %v961, 1
          %v998 = vrot.slane %v962, 1
          %v999 = vrot.slane %v963, 1
          %v1000 = vrot.slane %v964, 1
          %v1001 = vrot.slane %v965, 1
          %v1002 = vrot.slane %v966, 1
          %v1003 = vrot.slane %v967, 1
          %v1004 = vrot.slane %v968, 1
          %v1005 = vrot.slane %v969, 1
          %v1006 = vrot.slane %v970, 1
          %v1007 = vrot.slane %v971, 1
          %v1008 = vsel %vm851, %v992, %v1000
          %v1009 = vsel %vm851, %v993, %v1001
          %v1010 = vsel %vm851, %v994, %v1002
          %v1011 = vsel %vm851, %v995, %v1003
          %v1012 = vsel %vm851, %v996, %v1004
          %v1013 = vsel %vm851, %v997, %v1005
          %v1014 = vsel %vm851, %v998, %v1006
          %v1015 = vsel %vm851, %v999, %v1007
          %v1016 = vsel %vm851, %v1000, %v992
          %v1017 = vsel %vm851, %v1001, %v993
          %v1018 = vsel %vm851, %v1002, %v994
          %v1019 = vsel %vm851, %v1003, %v995
          %v1020 = vsel %vm851, %v1004, %v996
          %v1021 = vsel %vm851, %v1005, %v997
          %v1022 = vsel %vm851, %v1006, %v998
          %v1023 = vsel %vm851, %v1007, %v999
          %v1024 = vlaneseq
          %v1025 = vshrl.u32 %v1024, 7
          %v1026 = vsub.s32 4, %v1025
          %v1027 = vrot.slane %v798, %v1026
          %v1028 = vmul.f32 %v1008, %v1027
          %v1029 = vmul.f32 %v1009, %v1027
          %v1030 = vmul.f32 %v1010, %v1027
          %v1031 = vmul.f32 %v1011, %v1027
          %v1032 = vmul.f32 %v1012, %v1027
          %v1033 = vmul.f32 %v1013, %v1027
          %v1034 = vmul.f32 %v1014, %v1027
          %v1035 = vmul.f32 %v1015, %v1027
          %v1036 = vadd.f32 %v984, %v1028
          %v1037 = vadd.f32 %v985, %v1029
          %v1038 = vadd.f32 %v986, %v1030
          %v1039 = vadd.f32 %v987, %v1031
          %v1040 = vadd.f32 %v988, %v1032
          %v1041 = vadd.f32 %v989, %v1033
          %v1042 = vadd.f32 %v990, %v1034
          %v1043 = vadd.f32 %v991, %v1035
          %v1044 = vrot.slane %v1008, 1
          %v1045 = vrot.slane %v1009, 1
          %v1046 = vrot.slane %v1010, 1
          %v1047 = vrot.slane %v1011, 1
          %v1048 = vrot.slane %v1012, 1
          %v1049 = vrot.slane %v1013, 1
          %v1050 = vrot.slane %v1014, 1
          %v1051 = vrot.slane %v1015, 1
          %v1052 = vrot.slane %v1016, 1
          %v1053 = vrot.slane %v1017, 1
          %v1054 = vrot.slane %v1018, 1
          %v1055 = vrot.slane %v1019, 1
          %v1056 = vrot.slane %v1020, 1
          %v1057 = vrot.slane %v1021, 1
          %v1058 = vrot.slane %v1022, 1
          %v1059 = vrot.slane %v1023, 1
          %v1060 = vsel %vm851, %v1044, %v1052
          %v1061 = vsel %vm851, %v1045, %v1053
          %v1062 = vsel %vm851, %v1046, %v1054
          %v1063 = vsel %vm851, %v1047, %v1055
          %v1064 = vsel %vm851, %v1048, %v1056
          %v1065 = vsel %vm851, %v1049, %v1057
          %v1066 = vsel %vm851, %v1050, %v1058
          %v1067 = vsel %vm851, %v1051, %v1059
          %v1068 = vsel %vm851, %v1052, %v1044
          %v1069 = vsel %vm851, %v1053, %v1045
          %v1070 = vsel %vm851, %v1054, %v1046
          %v1071 = vsel %vm851, %v1055, %v1047
          %v1072 = vsel %vm851, %v1056, %v1048
          %v1073 = vsel %vm851, %v1057, %v1049
          %v1074 = vsel %vm851, %v1058, %v1050
          %v1075 = vsel %vm851, %v1059, %v1051
          %v1076 = vlaneseq
          %v1077 = vshrl.u32 %v1076, 7
          %v1078 = vsub.s32 5, %v1077
          %v1079 = vrot.slane %v798, %v1078
          %v1080 = vmul.f32 %v1060, %v1079
          %v1081 = vmul.f32 %v1061, %v1079
          %v1082 = vmul.f32 %v1062, %v1079
          %v1083 = vmul.f32 %v1063, %v1079
          %v1084 = vmul.f32 %v1064, %v1079
          %v1085 = vmul.f32 %v1065, %v1079
          %v1086 = vmul.f32 %v1066, %v1079
          %v1087 = vmul.f32 %v1067, %v1079
          %v1088 = vadd.f32 %v1036, %v1080
          %v1089 = vadd.f32 %v1037, %v1081
          %v1090 = vadd.f32 %v1038, %v1082
          %v1091 = vadd.f32 %v1039, %v1083
          %v1092 = vadd.f32 %v1040, %v1084
          %v1093 = vadd.f32 %v1041, %v1085
          %v1094 = vadd.f32 %v1042, %v1086
          %v1095 = vadd.f32 %v1043, %v1087
          %v1096 = vrot.slane %v1060, 1
          %v1097 = vrot.slane %v1061, 1
          %v1098 = vrot.slane %v1062, 1
          %v1099 = vrot.slane %v1063, 1
          %v1100 = vrot.slane %v1064, 1
          %v1101 = vrot.slane %v1065, 1
          %v1102 = vrot.slane %v1066, 1
          %v1103 = vrot.slane %v1067, 1
          %v1104 = vrot.slane %v1068, 1
          %v1105 = vrot.slane %v1069, 1
          %v1106 = vrot.slane %v1070, 1
          %v1107 = vrot.slane %v1071, 1
          %v1108 = vrot.slane %v1072, 1
          %v1109 = vrot.slane %v1073, 1
          %v1110 = vrot.slane %v1074, 1
          %v1111 = vrot.slane %v1075, 1
          %v1112 = vsel %vm851, %v1096, %v1104
          %v1113 = vsel %vm851, %v1097, %v1105
          %v1114 = vsel %vm851, %v1098, %v1106
          %v1115 = vsel %vm851, %v1099, %v1107
          %v1116 = vsel %vm851, %v1100, %v1108
          %v1117 = vsel %vm851, %v1101, %v1109
          %v1118 = vsel %vm851, %v1102, %v1110
          %v1119 = vsel %vm851, %v1103, %v1111
          %v1120 = vlaneseq
          %v1121 = vshrl.u32 %v1120, 7
          %v1122 = vsub.s32 6, %v1121
          %v1123 = vrot.slane %v798, %v1122
          %v1124 = vmul.f32 %v1112, %v1123
          %v1125 = vmul.f32 %v1113, %v1123
          %v1126 = vmul.f32 %v1114, %v1123
          %v1127 = vmul.f32 %v1115, %v1123
          %v1128 = vmul.f32 %v1116, %v1123
          %v1129 = vmul.f32 %v1117, %v1123
          %v1130 = vmul.f32 %v1118, %v1123
          %v1131 = vmul.f32 %v1119, %v1123
          %v1132 = vadd.f32 %v1088, %v1124
          %v1133 = vadd.f32 %v1089, %v1125
          %v1134 = vadd.f32 %v1090, %v1126
          %v1135 = vadd.f32 %v1091, %v1127
          %v1136 = vadd.f32 %v1092, %v1128
          %v1137 = vadd.f32 %v1093, %v1129
          %v1138 = vadd.f32 %v1094, %v1130
          %v1139 = vadd.f32 %v1095, %v1131
          %1140 = vst [vmem:[%s367] sm:$0xff] %v1132
          %1141 = vst [vmem:[%s367 + $0x8] sm:$0xff] %v1133
          %1142 = vst [vmem:[%s367 + $0x10] sm:$0xff] %v1134
          %1143 = vst [vmem:[%s367 + $0x18] sm:$0xff] %v1135
          %1144 = vst [vmem:[%s367 + $0x20] sm:$0xff] %v1136
          %1145 = vst [vmem:[%s367 + $0x28] sm:$0xff] %v1137
          %1146 = vst [vmem:[%s367 + $0x30] sm:$0xff] %v1138
          %1147 = vst [vmem:[%s367 + $0x38] sm:$0xff] %v1139
          %s1148 = scalar_lea.vmem [#allocation2], 16
          %v1149 = vld [vmem:[%s1148] sm:$0xff]
          %v1150 = vld [vmem:[%s1148 + $0x8] sm:$0xff]
          %v1151 = vld [vmem:[%s1148 + $0x10] sm:$0xff]
          %v1152 = vld [vmem:[%s1148 + $0x18] sm:$0xff]
          %v1153 = vld [vmem:[%s1148 + $0x20] sm:$0xff]
          %v1154 = vld [vmem:[%s1148 + $0x28] sm:$0xff]
          %v1155 = vld [vmem:[%s1148 + $0x30] sm:$0xff]
          %v1156 = vld [vmem:[%s1148 + $0x38] sm:$0xff]
          %v1157 = vld [vmem:[%s1148 + $0x40] sm:$0xff]
          %v1158 = vld [vmem:[%s1148 + $0x48] sm:$0xff]
          %v1159 = vld [vmem:[%s1148 + $0x50] sm:$0xff]
          %v1160 = vld [vmem:[%s1148 + $0x58] sm:$0xff]
          %v1161 = vld [vmem:[%s1148 + $0x60] sm:$0xff]
          %v1162 = vld [vmem:[%s1148 + $0x68] sm:$0xff]
          %v1163 = vld [vmem:[%s1148 + $0x70] sm:$0xff]
          %v1164 = vld [vmem:[%s1148 + $0x78] sm:$0xff]
          %v1165 = vlaneseq
          %v1166 = vshrl.u32 %v1165, 7
          %v1167 = vsub.s32 7, %v1166
          %v1168 = vrot.slane %v798, %v1167
          %v1169 = vmul.f32 %v1149, %v1168
          %v1170 = vmul.f32 %v1151, %v1168
          %v1171 = vmul.f32 %v1153, %v1168
          %v1172 = vmul.f32 %v1155, %v1168
          %v1173 = vmul.f32 %v1157, %v1168
          %v1174 = vmul.f32 %v1159, %v1168
          %v1175 = vmul.f32 %v1161, %v1168
          %v1176 = vmul.f32 %v1163, %v1168
          %v1177 = vrot.slane %v1149, 1
          %v1178 = vrot.slane %v1151, 1
          %v1179 = vrot.slane %v1153, 1
          %v1180 = vrot.slane %v1155, 1
          %v1181 = vrot.slane %v1157, 1
          %v1182 = vrot.slane %v1159, 1
          %v1183 = vrot.slane %v1161, 1
          %v1184 = vrot.slane %v1163, 1
          %v1185 = vrot.slane %v1150, 1
          %v1186 = vrot.slane %v1152, 1
          %v1187 = vrot.slane %v1154, 1
          %v1188 = vrot.slane %v1156, 1
          %v1189 = vrot.slane %v1158, 1
          %v1190 = vrot.slane %v1160, 1
          %v1191 = vrot.slane %v1162, 1
          %v1192 = vrot.slane %v1164, 1
          %v1193 = vsel %vm851, %v1177, %v1185
          %v1194 = vsel %vm851, %v1178, %v1186
          %v1195 = vsel %vm851, %v1179, %v1187
          %v1196 = vsel %vm851, %v1180, %v1188
          %v1197 = vsel %vm851, %v1181, %v1189
          %v1198 = vsel %vm851, %v1182, %v1190
          %v1199 = vsel %vm851, %v1183, %v1191
          %v1200 = vsel %vm851, %v1184, %v1192
          %v1201 = vsel %vm851, %v1185, %v1177
          %v1202 = vsel %vm851, %v1186, %v1178
          %v1203 = vsel %vm851, %v1187, %v1179
          %v1204 = vsel %vm851, %v1188, %v1180
          %v1205 = vsel %vm851, %v1189, %v1181
          %v1206 = vsel %vm851, %v1190, %v1182
          %v1207 = vsel %vm851, %v1191, %v1183
          %v1208 = vsel %vm851, %v1192, %v1184
          %v1209 = vlaneseq
          %v1210 = vshrl.u32 %v1209, 7
          %v1211 = vsub.s32 0, %v1210
          %v1212 = vrot.slane %v799, %v1211
          %v1213 = vmul.f32 %v1193, %v1212
          %v1214 = vmul.f32 %v1194, %v1212
          %v1215 = vmul.f32 %v1195, %v1212
          %v1216 = vmul.f32 %v1196, %v1212
          %v1217 = vmul.f32 %v1197, %v1212
          %v1218 = vmul.f32 %v1198, %v1212
          %v1219 = vmul.f32 %v1199, %v1212
          %v1220 = vmul.f32 %v1200, %v1212
          %v1221 = vadd.f32 %v1169, %v1213
          %v1222 = vadd.f32 %v1170, %v1214
          %v1223 = vadd.f32 %v1171, %v1215
          %v1224 = vadd.f32 %v1172, %v1216
          %v1225 = vadd.f32 %v1173, %v1217
          %v1226 = vadd.f32 %v1174, %v1218
          %v1227 = vadd.f32 %v1175, %v1219
          %v1228 = vadd.f32 %v1176, %v1220
          %v1229 = vrot.slane %v1193, 1
          %v1230 = vrot.slane %v1194, 1
          %v1231 = vrot.slane %v1195, 1
          %v1232 = vrot.slane %v1196, 1
          %v1233 = vrot.slane %v1197, 1
          %v1234 = vrot.slane %v1198, 1
          %v1235 = vrot.slane %v1199, 1
          %v1236 = vrot.slane %v1200, 1
          %v1237 = vrot.slane %v1201, 1
          %v1238 = vrot.slane %v1202, 1
          %v1239 = vrot.slane %v1203, 1
          %v1240 = vrot.slane %v1204, 1
          %v1241 = vrot.slane %v1205, 1
          %v1242 = vrot.slane %v1206, 1
          %v1243 = vrot.slane %v1207, 1
          %v1244 = vrot.slane %v1208, 1
          %v1245 = vsel %vm851, %v1229, %v1237
          %v1246 = vsel %vm851, %v1230, %v1238
          %v1247 = vsel %vm851, %v1231, %v1239
          %v1248 = vsel %vm851, %v1232, %v1240
          %v1249 = vsel %vm851, %v1233, %v1241
          %v1250 = vsel %vm851, %v1234, %v1242
          %v1251 = vsel %vm851, %v1235, %v1243
          %v1252 = vsel %vm851, %v1236, %v1244
          %v1253 = vsel %vm851, %v1237, %v1229
          %v1254 = vsel %vm851, %v1238, %v1230
          %v1255 = vsel %vm851, %v1239, %v1231
          %v1256 = vsel %vm851, %v1240, %v1232
          %v1257 = vsel %vm851, %v1241, %v1233
          %v1258 = vsel %vm851, %v1242, %v1234
          %v1259 = vsel %vm851, %v1243, %v1235
          %v1260 = vsel %vm851, %v1244, %v1236
          %v1261 = vlaneseq
          %v1262 = vshrl.u32 %v1261, 7
          %v1263 = vsub.s32 1, %v1262
          %v1264 = vrot.slane %v799, %v1263
          %v1265 = vmul.f32 %v1245, %v1264
          %v1266 = vmul.f32 %v1246, %v1264
          %v1267 = vmul.f32 %v1247, %v1264
          %v1268 = vmul.f32 %v1248, %v1264
          %v1269 = vmul.f32 %v1249, %v1264
          %v1270 = vmul.f32 %v1250, %v1264
          %v1271 = vmul.f32 %v1251, %v1264
          %v1272 = vmul.f32 %v1252, %v1264
          %v1273 = vadd.f32 %v1221, %v1265
          %v1274 = vadd.f32 %v1222, %v1266
          %v1275 = vadd.f32 %v1223, %v1267
          %v1276 = vadd.f32 %v1224, %v1268
          %v1277 = vadd.f32 %v1225, %v1269
          %v1278 = vadd.f32 %v1226, %v1270
          %v1279 = vadd.f32 %v1227, %v1271
          %v1280 = vadd.f32 %v1228, %v1272
          %v1281 = vrot.slane %v1245, 1
          %v1282 = vrot.slane %v1246, 1
          %v1283 = vrot.slane %v1247, 1
          %v1284 = vrot.slane %v1248, 1
          %v1285 = vrot.slane %v1249, 1
          %v1286 = vrot.slane %v1250, 1
          %v1287 = vrot.slane %v1251, 1
          %v1288 = vrot.slane %v1252, 1
          %v1289 = vrot.slane %v1253, 1
          %v1290 = vrot.slane %v1254, 1
          %v1291 = vrot.slane %v1255, 1
          %v1292 = vrot.slane %v1256, 1
          %v1293 = vrot.slane %v1257, 1
          %v1294 = vrot.slane %v1258, 1
          %v1295 = vrot.slane %v1259, 1
          %v1296 = vrot.slane %v1260, 1
          %v1297 = vsel %vm851, %v1281, %v1289
          %v1298 = vsel %vm851, %v1282, %v1290
          %v1299 = vsel %vm851, %v1283, %v1291
          %v1300 = vsel %vm851, %v1284, %v1292
          %v1301 = vsel %vm851, %v1285, %v1293
          %v1302 = vsel %vm851, %v1286, %v1294
          %v1303 = vsel %vm851, %v1287, %v1295
          %v1304 = vsel %vm851, %v1288, %v1296
          %v1305 = vsel %vm851, %v1289, %v1281
          %v1306 = vsel %vm851, %v1290, %v1282
          %v1307 = vsel %vm851, %v1291, %v1283
          %v1308 = vsel %vm851, %v1292, %v1284
          %v1309 = vsel %vm851, %v1293, %v1285
          %v1310 = vsel %vm851, %v1294, %v1286
          %v1311 = vsel %vm851, %v1295, %v1287
          %v1312 = vsel %vm851, %v1296, %v1288
          %v1313 = vlaneseq
          %v1314 = vshrl.u32 %v1313, 7
          %v1315 = vsub.s32 2, %v1314
          %v1316 = vrot.slane %v799, %v1315
          %v1317 = vmul.f32 %v1297, %v1316
          %v1318 = vmul.f32 %v1298, %v1316
          %v1319 = vmul.f32 %v1299, %v1316
          %v1320 = vmul.f32 %v1300, %v1316
          %v1321 = vmul.f32 %v1301, %v1316
          %v1322 = vmul.f32 %v1302, %v1316
          %v1323 = vmul.f32 %v1303, %v1316
          %v1324 = vmul.f32 %v1304, %v1316
          %v1325 = vadd.f32 %v1273, %v1317
          %v1326 = vadd.f32 %v1274, %v1318
          %v1327 = vadd.f32 %v1275, %v1319
          %v1328 = vadd.f32 %v1276, %v1320
          %v1329 = vadd.f32 %v1277, %v1321
          %v1330 = vadd.f32 %v1278, %v1322
          %v1331 = vadd.f32 %v1279, %v1323
          %v1332 = vadd.f32 %v1280, %v1324
          %v1333 = vrot.slane %v1297, 1
          %v1334 = vrot.slane %v1298, 1
          %v1335 = vrot.slane %v1299, 1
          %v1336 = vrot.slane %v1300, 1
          %v1337 = vrot.slane %v1301, 1
          %v1338 = vrot.slane %v1302, 1
          %v1339 = vrot.slane %v1303, 1
          %v1340 = vrot.slane %v1304, 1
          %v1341 = vrot.slane %v1305, 1
          %v1342 = vrot.slane %v1306, 1
          %v1343 = vrot.slane %v1307, 1
          %v1344 = vrot.slane %v1308, 1
          %v1345 = vrot.slane %v1309, 1
          %v1346 = vrot.slane %v1310, 1
          %v1347 = vrot.slane %v1311, 1
          %v1348 = vrot.slane %v1312, 1
          %v1349 = vsel %vm851, %v1333, %v1341
          %v1350 = vsel %vm851, %v1334, %v1342
          %v1351 = vsel %vm851, %v1335, %v1343
          %v1352 = vsel %vm851, %v1336, %v1344
          %v1353 = vsel %vm851, %v1337, %v1345
          %v1354 = vsel %vm851, %v1338, %v1346
          %v1355 = vsel %vm851, %v1339, %v1347
          %v1356 = vsel %vm851, %v1340, %v1348
          %v1357 = vsel %vm851, %v1341, %v1333
          %v1358 = vsel %vm851, %v1342, %v1334
          %v1359 = vsel %vm851, %v1343, %v1335
          %v1360 = vsel %vm851, %v1344, %v1336
          %v1361 = vsel %vm851, %v1345, %v1337
          %v1362 = vsel %vm851, %v1346, %v1338
          %v1363 = vsel %vm851, %v1347, %v1339
          %v1364 = vsel %vm851, %v1348, %v1340
          %v1365 = vlaneseq
          %v1366 = vshrl.u32 %v1365, 7
          %v1367 = vsub.s32 3, %v1366
          %v1368 = vrot.slane %v799, %v1367
          %v1369 = vmul.f32 %v1349, %v1368
          %v1370 = vmul.f32 %v1350, %v1368
          %v1371 = vmul.f32 %v1351, %v1368
          %v1372 = vmul.f32 %v1352, %v1368
          %v1373 = vmul.f32 %v1353, %v1368
          %v1374 = vmul.f32 %v1354, %v1368
          %v1375 = vmul.f32 %v1355, %v1368
          %v1376 = vmul.f32 %v1356, %v1368
          %v1377 = vadd.f32 %v1325, %v1369
          %v1378 = vadd.f32 %v1326, %v1370
          %v1379 = vadd.f32 %v1327, %v1371
          %v1380 = vadd.f32 %v1328, %v1372
          %v1381 = vadd.f32 %v1329, %v1373
          %v1382 = vadd.f32 %v1330, %v1374
          %v1383 = vadd.f32 %v1331, %v1375
          %v1384 = vadd.f32 %v1332, %v1376
          %v1385 = vrot.slane %v1349, 1
          %v1386 = vrot.slane %v1350, 1
          %v1387 = vrot.slane %v1351, 1
          %v1388 = vrot.slane %v1352, 1
          %v1389 = vrot.slane %v1353, 1
          %v1390 = vrot.slane %v1354, 1
          %v1391 = vrot.slane %v1355, 1
          %v1392 = vrot.slane %v1356, 1
          %v1393 = vrot.slane %v1357, 1
          %v1394 = vrot.slane %v1358, 1
          %v1395 = vrot.slane %v1359, 1
          %v1396 = vrot.slane %v1360, 1
          %v1397 = vrot.slane %v1361, 1
          %v1398 = vrot.slane %v1362, 1
          %v1399 = vrot.slane %v1363, 1
          %v1400 = vrot.slane %v1364, 1
          %v1401 = vsel %vm851, %v1385, %v1393
          %v1402 = vsel %vm851, %v1386, %v1394
          %v1403 = vsel %vm851, %v1387, %v1395
          %v1404 = vsel %vm851, %v1388, %v1396
          %v1405 = vsel %vm851, %v1389, %v1397
          %v1406 = vsel %vm851, %v1390, %v1398
          %v1407 = vsel %vm851, %v1391, %v1399
          %v1408 = vsel %vm851, %v1392, %v1400
          %v1409 = vsel %vm851, %v1393, %v1385
          %v1410 = vsel %vm851, %v1394, %v1386
          %v1411 = vsel %vm851, %v1395, %v1387
          %v1412 = vsel %vm851, %v1396, %v1388
          %v1413 = vsel %vm851, %v1397, %v1389
          %v1414 = vsel %vm851, %v1398, %v1390
          %v1415 = vsel %vm851, %v1399, %v1391
          %v1416 = vsel %vm851, %v1400, %v1392
          %v1417 = vlaneseq
          %v1418 = vshrl.u32 %v1417, 7
          %v1419 = vsub.s32 4, %v1418
          %v1420 = vrot.slane %v799, %v1419
          %v1421 = vmul.f32 %v1401, %v1420
          %v1422 = vmul.f32 %v1402, %v1420
          %v1423 = vmul.f32 %v1403, %v1420
          %v1424 = vmul.f32 %v1404, %v1420
          %v1425 = vmul.f32 %v1405, %v1420
          %v1426 = vmul.f32 %v1406, %v1420
          %v1427 = vmul.f32 %v1407, %v1420
          %v1428 = vmul.f32 %v1408, %v1420
          %v1429 = vadd.f32 %v1377, %v1421
          %v1430 = vadd.f32 %v1378, %v1422
          %v1431 = vadd.f32 %v1379, %v1423
          %v1432 = vadd.f32 %v1380, %v1424
          %v1433 = vadd.f32 %v1381, %v1425
          %v1434 = vadd.f32 %v1382, %v1426
          %v1435 = vadd.f32 %v1383, %v1427
          %v1436 = vadd.f32 %v1384, %v1428
          %v1437 = vrot.slane %v1401, 1
          %v1438 = vrot.slane %v1402, 1
          %v1439 = vrot.slane %v1403, 1
          %v1440 = vrot.slane %v1404, 1
          %v1441 = vrot.slane %v1405, 1
          %v1442 = vrot.slane %v1406, 1
          %v1443 = vrot.slane %v1407, 1
          %v1444 = vrot.slane %v1408, 1
          %v1445 = vrot.slane %v1409, 1
          %v1446 = vrot.slane %v1410, 1
          %v1447 = vrot.slane %v1411, 1
          %v1448 = vrot.slane %v1412, 1
          %v1449 = vrot.slane %v1413, 1
          %v1450 = vrot.slane %v1414, 1
          %v1451 = vrot.slane %v1415, 1
          %v1452 = vrot.slane %v1416, 1
          %v1453 = vsel %vm851, %v1437, %v1445
          %v1454 = vsel %vm851, %v1438, %v1446
          %v1455 = vsel %vm851, %v1439, %v1447
          %v1456 = vsel %vm851, %v1440, %v1448
          %v1457 = vsel %vm851, %v1441, %v1449
          %v1458 = vsel %vm851, %v1442, %v1450
          %v1459 = vsel %vm851, %v1443, %v1451
          %v1460 = vsel %vm851, %v1444, %v1452
          %v1461 = vlaneseq
          %v1462 = vshrl.u32 %v1461, 7
          %v1463 = vsub.s32 5, %v1462
          %v1464 = vrot.slane %v799, %v1463
          %v1465 = vmul.f32 %v1453, %v1464
          %v1466 = vmul.f32 %v1454, %v1464
          %v1467 = vmul.f32 %v1455, %v1464
          %v1468 = vmul.f32 %v1456, %v1464
          %v1469 = vmul.f32 %v1457, %v1464
          %v1470 = vmul.f32 %v1458, %v1464
          %v1471 = vmul.f32 %v1459, %v1464
          %v1472 = vmul.f32 %v1460, %v1464
          %v1473 = vadd.f32 %v1429, %v1465
          %v1474 = vadd.f32 %v1430, %v1466
          %v1475 = vadd.f32 %v1431, %v1467
          %v1476 = vadd.f32 %v1432, %v1468
          %v1477 = vadd.f32 %v1433, %v1469
          %v1478 = vadd.f32 %v1434, %v1470
          %v1479 = vadd.f32 %v1435, %v1471
          %v1480 = vadd.f32 %v1436, %v1472
          %v1481 = vld [vmem:[%s367] sm:$0xff]
          %v1482 = vld [vmem:[%s367 + $0x8] sm:$0xff]
          %v1483 = vld [vmem:[%s367 + $0x10] sm:$0xff]
          %v1484 = vld [vmem:[%s367 + $0x18] sm:$0xff]
          %v1485 = vld [vmem:[%s367 + $0x20] sm:$0xff]
          %v1486 = vld [vmem:[%s367 + $0x28] sm:$0xff]
          %v1487 = vld [vmem:[%s367 + $0x30] sm:$0xff]
          %v1488 = vld [vmem:[%s367 + $0x38] sm:$0xff]
          %v1489 = vadd.f32 %v1481, %v1473
          %v1490 = vadd.f32 %v1482, %v1474
          %v1491 = vadd.f32 %v1483, %v1475
          %v1492 = vadd.f32 %v1484, %v1476
          %v1493 = vadd.f32 %v1485, %v1477
          %v1494 = vadd.f32 %v1486, %v1478
          %v1495 = vadd.f32 %v1487, %v1479
          %v1496 = vadd.f32 %v1488, %v1480
          %1497 = vst [vmem:[%s367] sm:$0xff] %v1489
          %1498 = vst [vmem:[%s367 + $0x8] sm:$0xff] %v1490
          %1499 = vst [vmem:[%s367 + $0x10] sm:$0xff] %v1491
          %1500 = vst [vmem:[%s367 + $0x18] sm:$0xff] %v1492
          %1501 = vst [vmem:[%s367 + $0x20] sm:$0xff] %v1493
          %1502 = vst [vmem:[%s367 + $0x28] sm:$0xff] %v1494
          %1503 = vst [vmem:[%s367 + $0x30] sm:$0xff] %v1495
          %1504 = vst [vmem:[%s367 + $0x38] sm:$0xff] %v1496
          %s1505 = scalar_lea.vmem [#allocation2], 32
          %v1506 = vld [vmem:[%s1505] sm:$0xff]
          %v1507 = vld [vmem:[%s1505 + $0x8] sm:$0xff]
          %v1508 = vld [vmem:[%s1505 + $0x10] sm:$0xff]
          %v1509 = vld [vmem:[%s1505 + $0x18] sm:$0xff]
          %v1510 = vld [vmem:[%s1505 + $0x20] sm:$0xff]
          %v1511 = vld [vmem:[%s1505 + $0x28] sm:$0xff]
          %v1512 = vld [vmem:[%s1505 + $0x30] sm:$0xff]
          %v1513 = vld [vmem:[%s1505 + $0x38] sm:$0xff]
          %v1514 = vld [vmem:[%s1505 + $0x40] sm:$0xff]
          %v1515 = vld [vmem:[%s1505 + $0x48] sm:$0xff]
          %v1516 = vld [vmem:[%s1505 + $0x50] sm:$0xff]
          %v1517 = vld [vmem:[%s1505 + $0x58] sm:$0xff]
          %v1518 = vld [vmem:[%s1505 + $0x60] sm:$0xff]
          %v1519 = vld [vmem:[%s1505 + $0x68] sm:$0xff]
          %v1520 = vld [vmem:[%s1505 + $0x70] sm:$0xff]
          %v1521 = vld [vmem:[%s1505 + $0x78] sm:$0xff]
          %v1522 = vlaneseq
          %v1523 = vshrl.u32 %v1522, 7
          %v1524 = vsub.s32 6, %v1523
          %v1525 = vrot.slane %v799, %v1524
          %v1526 = vmul.f32 %v1506, %v1525
          %v1527 = vmul.f32 %v1508, %v1525
          %v1528 = vmul.f32 %v1510, %v1525
          %v1529 = vmul.f32 %v1512, %v1525
          %v1530 = vmul.f32 %v1514, %v1525
          %v1531 = vmul.f32 %v1516, %v1525
          %v1532 = vmul.f32 %v1518, %v1525
          %v1533 = vmul.f32 %v1520, %v1525
          %v1534 = vrot.slane %v1506, 1
          %v1535 = vrot.slane %v1508, 1
          %v1536 = vrot.slane %v1510, 1
          %v1537 = vrot.slane %v1512, 1
          %v1538 = vrot.slane %v1514, 1
          %v1539 = vrot.slane %v1516, 1
          %v1540 = vrot.slane %v1518, 1
          %v1541 = vrot.slane %v1520, 1
          %v1542 = vrot.slane %v1507, 1
          %v1543 = vrot.slane %v1509, 1
          %v1544 = vrot.slane %v1511, 1
          %v1545 = vrot.slane %v1513, 1
          %v1546 = vrot.slane %v1515, 1
          %v1547 = vrot.slane %v1517, 1
          %v1548 = vrot.slane %v1519, 1
          %v1549 = vrot.slane %v1521, 1
          %v1550 = vsel %vm851, %v1534, %v1542
          %v1551 = vsel %vm851, %v1535, %v1543
          %v1552 = vsel %vm851, %v1536, %v1544
          %v1553 = vsel %vm851, %v1537, %v1545
          %v1554 = vsel %vm851, %v1538, %v1546
          %v1555 = vsel %vm851, %v1539, %v1547
          %v1556 = vsel %vm851, %v1540, %v1548
          %v1557 = vsel %vm851, %v1541, %v1549
          %v1558 = vsel %vm851, %v1542, %v1534
          %v1559 = vsel %vm851, %v1543, %v1535
          %v1560 = vsel %vm851, %v1544, %v1536
          %v1561 = vsel %vm851, %v1545, %v1537
          %v1562 = vsel %vm851, %v1546, %v1538
          %v1563 = vsel %vm851, %v1547, %v1539
          %v1564 = vsel %vm851, %v1548, %v1540
          %v1565 = vsel %vm851, %v1549, %v1541
          %v1566 = vlaneseq
          %v1567 = vshrl.u32 %v1566, 7
          %v1568 = vsub.s32 7, %v1567
          %v1569 = vrot.slane %v799, %v1568
          %v1570 = vmul.f32 %v1550, %v1569
          %v1571 = vmul.f32 %v1551, %v1569
          %v1572 = vmul.f32 %v1552, %v1569
          %v1573 = vmul.f32 %v1553, %v1569
          %v1574 = vmul.f32 %v1554, %v1569
          %v1575 = vmul.f32 %v1555, %v1569
          %v1576 = vmul.f32 %v1556, %v1569
          %v1577 = vmul.f32 %v1557, %v1569
          %v1578 = vadd.f32 %v1526, %v1570
          %v1579 = vadd.f32 %v1527, %v1571
          %v1580 = vadd.f32 %v1528, %v1572
          %v1581 = vadd.f32 %v1529, %v1573
          %v1582 = vadd.f32 %v1530, %v1574
          %v1583 = vadd.f32 %v1531, %v1575
          %v1584 = vadd.f32 %v1532, %v1576
          %v1585 = vadd.f32 %v1533, %v1577
          %v1586 = vrot.slane %v1550, 1
          %v1587 = vrot.slane %v1551, 1
          %v1588 = vrot.slane %v1552, 1
          %v1589 = vrot.slane %v1553, 1
          %v1590 = vrot.slane %v1554, 1
          %v1591 = vrot.slane %v1555, 1
          %v1592 = vrot.slane %v1556, 1
          %v1593 = vrot.slane %v1557, 1
          %v1594 = vrot.slane %v1558, 1
          %v1595 = vrot.slane %v1559, 1
          %v1596 = vrot.slane %v1560, 1
          %v1597 = vrot.slane %v1561, 1
          %v1598 = vrot.slane %v1562, 1
          %v1599 = vrot.slane %v1563, 1
          %v1600 = vrot.slane %v1564, 1
          %v1601 = vrot.slane %v1565, 1
          %v1602 = vsel %vm851, %v1586, %v1594
          %v1603 = vsel %vm851, %v1587, %v1595
          %v1604 = vsel %vm851, %v1588, %v1596
          %v1605 = vsel %vm851, %v1589, %v1597
          %v1606 = vsel %vm851, %v1590, %v1598
          %v1607 = vsel %vm851, %v1591, %v1599
          %v1608 = vsel %vm851, %v1592, %v1600
          %v1609 = vsel %vm851, %v1593, %v1601
          %v1610 = vsel %vm851, %v1594, %v1586
          %v1611 = vsel %vm851, %v1595, %v1587
          %v1612 = vsel %vm851, %v1596, %v1588
          %v1613 = vsel %vm851, %v1597, %v1589
          %v1614 = vsel %vm851, %v1598, %v1590
          %v1615 = vsel %vm851, %v1599, %v1591
          %v1616 = vsel %vm851, %v1600, %v1592
          %v1617 = vsel %vm851, %v1601, %v1593
          %v1618 = vlaneseq
          %v1619 = vshrl.u32 %v1618, 7
          %v1620 = vsub.s32 0, %v1619
          %v1621 = vrot.slane %v800, %v1620
          %v1622 = vmul.f32 %v1602, %v1621
          %v1623 = vmul.f32 %v1603, %v1621
          %v1624 = vmul.f32 %v1604, %v1621
          %v1625 = vmul.f32 %v1605, %v1621
          %v1626 = vmul.f32 %v1606, %v1621
          %v1627 = vmul.f32 %v1607, %v1621
          %v1628 = vmul.f32 %v1608, %v1621
          %v1629 = vmul.f32 %v1609, %v1621
          %v1630 = vadd.f32 %v1578, %v1622
          %v1631 = vadd.f32 %v1579, %v1623
          %v1632 = vadd.f32 %v1580, %v1624
          %v1633 = vadd.f32 %v1581, %v1625
          %v1634 = vadd.f32 %v1582, %v1626
          %v1635 = vadd.f32 %v1583, %v1627
          %v1636 = vadd.f32 %v1584, %v1628
          %v1637 = vadd.f32 %v1585, %v1629
          %v1638 = vrot.slane %v1602, 1
          %v1639 = vrot.slane %v1603, 1
          %v1640 = vrot.slane %v1604, 1
          %v1641 = vrot.slane %v1605, 1
          %v1642 = vrot.slane %v1606, 1
          %v1643 = vrot.slane %v1607, 1
          %v1644 = vrot.slane %v1608, 1
          %v1645 = vrot.slane %v1609, 1
          %v1646 = vrot.slane %v1610, 1
          %v1647 = vrot.slane %v1611, 1
          %v1648 = vrot.slane %v1612, 1
          %v1649 = vrot.slane %v1613, 1
          %v1650 = vrot.slane %v1614, 1
          %v1651 = vrot.slane %v1615, 1
          %v1652 = vrot.slane %v1616, 1
          %v1653 = vrot.slane %v1617, 1
          %v1654 = vsel %vm851, %v1638, %v1646
          %v1655 = vsel %vm851, %v1639, %v1647
          %v1656 = vsel %vm851, %v1640, %v1648
          %v1657 = vsel %vm851, %v1641, %v1649
          %v1658 = vsel %vm851, %v1642, %v1650
          %v1659 = vsel %vm851, %v1643, %v1651
          %v1660 = vsel %vm851, %v1644, %v1652
          %v1661 = vsel %vm851, %v1645, %v1653
          %v1662 = vsel %vm851, %v1646, %v1638
          %v1663 = vsel %vm851, %v1647, %v1639
          %v1664 = vsel %vm851, %v1648, %v1640
          %v1665 = vsel %vm851, %v1649, %v1641
          %v1666 = vsel %vm851, %v1650, %v1642
          %v1667 = vsel %vm851, %v1651, %v1643
          %v1668 = vsel %vm851, %v1652, %v1644
          %v1669 = vsel %vm851, %v1653, %v1645
          %v1670 = vlaneseq
          %v1671 = vshrl.u32 %v1670, 7
          %v1672 = vsub.s32 1, %v1671
          %v1673 = vrot.slane %v800, %v1672
          %v1674 = vmul.f32 %v1654, %v1673
          %v1675 = vmul.f32 %v1655, %v1673
          %v1676 = vmul.f32 %v1656, %v1673
          %v1677 = vmul.f32 %v1657, %v1673
          %v1678 = vmul.f32 %v1658, %v1673
          %v1679 = vmul.f32 %v1659, %v1673
          %v1680 = vmul.f32 %v1660, %v1673
          %v1681 = vmul.f32 %v1661, %v1673
          %v1682 = vadd.f32 %v1630, %v1674
          %v1683 = vadd.f32 %v1631, %v1675
          %v1684 = vadd.f32 %v1632, %v1676
          %v1685 = vadd.f32 %v1633, %v1677
          %v1686 = vadd.f32 %v1634, %v1678
          %v1687 = vadd.f32 %v1635, %v1679
          %v1688 = vadd.f32 %v1636, %v1680
          %v1689 = vadd.f32 %v1637, %v1681
          %v1690 = vrot.slane %v1654, 1
          %v1691 = vrot.slane %v1655, 1
          %v1692 = vrot.slane %v1656, 1
          %v1693 = vrot.slane %v1657, 1
          %v1694 = vrot.slane %v1658, 1
          %v1695 = vrot.slane %v1659, 1
          %v1696 = vrot.slane %v1660, 1
          %v1697 = vrot.slane %v1661, 1
          %v1698 = vrot.slane %v1662, 1
          %v1699 = vrot.slane %v1663, 1
          %v1700 = vrot.slane %v1664, 1
          %v1701 = vrot.slane %v1665, 1
          %v1702 = vrot.slane %v1666, 1
          %v1703 = vrot.slane %v1667, 1
          %v1704 = vrot.slane %v1668, 1
          %v1705 = vrot.slane %v1669, 1
          %v1706 = vsel %vm851, %v1690, %v1698
          %v1707 = vsel %vm851, %v1691, %v1699
          %v1708 = vsel %vm851, %v1692, %v1700
          %v1709 = vsel %vm851, %v1693, %v1701
          %v1710 = vsel %vm851, %v1694, %v1702
          %v1711 = vsel %vm851, %v1695, %v1703
          %v1712 = vsel %vm851, %v1696, %v1704
          %v1713 = vsel %vm851, %v1697, %v1705
          %v1714 = vsel %vm851, %v1698, %v1690
          %v1715 = vsel %vm851, %v1699, %v1691
          %v1716 = vsel %vm851, %v1700, %v1692
          %v1717 = vsel %vm851, %v1701, %v1693
          %v1718 = vsel %vm851, %v1702, %v1694
          %v1719 = vsel %vm851, %v1703, %v1695
          %v1720 = vsel %vm851, %v1704, %v1696
          %v1721 = vsel %vm851, %v1705, %v1697
          %v1722 = vlaneseq
          %v1723 = vshrl.u32 %v1722, 7
          %v1724 = vsub.s32 2, %v1723
          %v1725 = vrot.slane %v800, %v1724
          %v1726 = vmul.f32 %v1706, %v1725
          %v1727 = vmul.f32 %v1707, %v1725
          %v1728 = vmul.f32 %v1708, %v1725
          %v1729 = vmul.f32 %v1709, %v1725
          %v1730 = vmul.f32 %v1710, %v1725
          %v1731 = vmul.f32 %v1711, %v1725
          %v1732 = vmul.f32 %v1712, %v1725
          %v1733 = vmul.f32 %v1713, %v1725
          %v1734 = vadd.f32 %v1682, %v1726
          %v1735 = vadd.f32 %v1683, %v1727
          %v1736 = vadd.f32 %v1684, %v1728
          %v1737 = vadd.f32 %v1685, %v1729
          %v1738 = vadd.f32 %v1686, %v1730
          %v1739 = vadd.f32 %v1687, %v1731
          %v1740 = vadd.f32 %v1688, %v1732
          %v1741 = vadd.f32 %v1689, %v1733
          %v1742 = vrot.slane %v1706, 1
          %v1743 = vrot.slane %v1707, 1
          %v1744 = vrot.slane %v1708, 1
          %v1745 = vrot.slane %v1709, 1
          %v1746 = vrot.slane %v1710, 1
          %v1747 = vrot.slane %v1711, 1
          %v1748 = vrot.slane %v1712, 1
          %v1749 = vrot.slane %v1713, 1
          %v1750 = vrot.slane %v1714, 1
          %v1751 = vrot.slane %v1715, 1
          %v1752 = vrot.slane %v1716, 1
          %v1753 = vrot.slane %v1717, 1
          %v1754 = vrot.slane %v1718, 1
          %v1755 = vrot.slane %v1719, 1
          %v1756 = vrot.slane %v1720, 1
          %v1757 = vrot.slane %v1721, 1
          %v1758 = vsel %vm851, %v1742, %v1750
          %v1759 = vsel %vm851, %v1743, %v1751
          %v1760 = vsel %vm851, %v1744, %v1752
          %v1761 = vsel %vm851, %v1745, %v1753
          %v1762 = vsel %vm851, %v1746, %v1754
          %v1763 = vsel %vm851, %v1747, %v1755
          %v1764 = vsel %vm851, %v1748, %v1756
          %v1765 = vsel %vm851, %v1749, %v1757
          %v1766 = vsel %vm851, %v1750, %v1742
          %v1767 = vsel %vm851, %v1751, %v1743
          %v1768 = vsel %vm851, %v1752, %v1744
          %v1769 = vsel %vm851, %v1753, %v1745
          %v1770 = vsel %vm851, %v1754, %v1746
          %v1771 = vsel %vm851, %v1755, %v1747
          %v1772 = vsel %vm851, %v1756, %v1748
          %v1773 = vsel %vm851, %v1757, %v1749
          %v1774 = vlaneseq
          %v1775 = vshrl.u32 %v1774, 7
          %v1776 = vsub.s32 3, %v1775
          %v1777 = vrot.slane %v800, %v1776
          %v1778 = vmul.f32 %v1758, %v1777
          %v1779 = vmul.f32 %v1759, %v1777
          %v1780 = vmul.f32 %v1760, %v1777
          %v1781 = vmul.f32 %v1761, %v1777
          %v1782 = vmul.f32 %v1762, %v1777
          %v1783 = vmul.f32 %v1763, %v1777
          %v1784 = vmul.f32 %v1764, %v1777
          %v1785 = vmul.f32 %v1765, %v1777
          %v1786 = vadd.f32 %v1734, %v1778
          %v1787 = vadd.f32 %v1735, %v1779
          %v1788 = vadd.f32 %v1736, %v1780
          %v1789 = vadd.f32 %v1737, %v1781
          %v1790 = vadd.f32 %v1738, %v1782
          %v1791 = vadd.f32 %v1739, %v1783
          %v1792 = vadd.f32 %v1740, %v1784
          %v1793 = vadd.f32 %v1741, %v1785
          %v1794 = vrot.slane %v1758, 1
          %v1795 = vrot.slane %v1759, 1
          %v1796 = vrot.slane %v1760, 1
          %v1797 = vrot.slane %v1761, 1
          %v1798 = vrot.slane %v1762, 1
          %v1799 = vrot.slane %v1763, 1
          %v1800 = vrot.slane %v1764, 1
          %v1801 = vrot.slane %v1765, 1
          %v1802 = vrot.slane %v1766, 1
          %v1803 = vrot.slane %v1767, 1
          %v1804 = vrot.slane %v1768, 1
          %v1805 = vrot.slane %v1769, 1
          %v1806 = vrot.slane %v1770, 1
          %v1807 = vrot.slane %v1771, 1
          %v1808 = vrot.slane %v1772, 1
          %v1809 = vrot.slane %v1773, 1
          %v1810 = vsel %vm851, %v1794, %v1802
          %v1811 = vsel %vm851, %v1795, %v1803
          %v1812 = vsel %vm851, %v1796, %v1804
          %v1813 = vsel %vm851, %v1797, %v1805
          %v1814 = vsel %vm851, %v1798, %v1806
          %v1815 = vsel %vm851, %v1799, %v1807
          %v1816 = vsel %vm851, %v1800, %v1808
          %v1817 = vsel %vm851, %v1801, %v1809
          %v1818 = vlaneseq
          %v1819 = vshrl.u32 %v1818, 7
          %v1820 = vsub.s32 4, %v1819
          %v1821 = vrot.slane %v800, %v1820
          %v1822 = vmul.f32 %v1810, %v1821
          %v1823 = vmul.f32 %v1811, %v1821
          %v1824 = vmul.f32 %v1812, %v1821
          %v1825 = vmul.f32 %v1813, %v1821
          %v1826 = vmul.f32 %v1814, %v1821
          %v1827 = vmul.f32 %v1815, %v1821
          %v1828 = vmul.f32 %v1816, %v1821
          %v1829 = vmul.f32 %v1817, %v1821
          %v1830 = vadd.f32 %v1786, %v1822
          %v1831 = vadd.f32 %v1787, %v1823
          %v1832 = vadd.f32 %v1788, %v1824
          %v1833 = vadd.f32 %v1789, %v1825
          %v1834 = vadd.f32 %v1790, %v1826
          %v1835 = vadd.f32 %v1791, %v1827
          %v1836 = vadd.f32 %v1792, %v1828
          %v1837 = vadd.f32 %v1793, %v1829
          %v1838 = vld [vmem:[%s367] sm:$0xff]
          %v1839 = vld [vmem:[%s367 + $0x8] sm:$0xff]
          %v1840 = vld [vmem:[%s367 + $0x10] sm:$0xff]
          %v1841 = vld [vmem:[%s367 + $0x18] sm:$0xff]
          %v1842 = vld [vmem:[%s367 + $0x20] sm:$0xff]
          %v1843 = vld [vmem:[%s367 + $0x28] sm:$0xff]
          %v1844 = vld [vmem:[%s367 + $0x30] sm:$0xff]
          %v1845 = vld [vmem:[%s367 + $0x38] sm:$0xff]
          %v1846 = vadd.f32 %v1838, %v1830
          %v1847 = vadd.f32 %v1839, %v1831
          %v1848 = vadd.f32 %v1840, %v1832
          %v1849 = vadd.f32 %v1841, %v1833
          %v1850 = vadd.f32 %v1842, %v1834
          %v1851 = vadd.f32 %v1843, %v1835
          %v1852 = vadd.f32 %v1844, %v1836
          %v1853 = vadd.f32 %v1845, %v1837
          %1854 = vst [vmem:[%s367] sm:$0xff] %v1846
          %1855 = vst [vmem:[%s367 + $0x8] sm:$0xff] %v1847
          %1856 = vst [vmem:[%s367 + $0x10] sm:$0xff] %v1848
          %1857 = vst [vmem:[%s367 + $0x18] sm:$0xff] %v1849
          %1858 = vst [vmem:[%s367 + $0x20] sm:$0xff] %v1850
          %1859 = vst [vmem:[%s367 + $0x28] sm:$0xff] %v1851
          %1860 = vst [vmem:[%s367 + $0x30] sm:$0xff] %v1852
          %1861 = vst [vmem:[%s367 + $0x38] sm:$0xff] %v1853
          %s1862 = scalar_lea.vmem [#allocation2], 48
          %v1863 = vld [vmem:[%s1862] sm:$0xff]
          %v1864 = vld [vmem:[%s1862 + $0x8] sm:$0xff]
          %v1865 = vld [vmem:[%s1862 + $0x10] sm:$0xff]
          %v1866 = vld [vmem:[%s1862 + $0x18] sm:$0xff]
          %v1867 = vld [vmem:[%s1862 + $0x20] sm:$0xff]
          %v1868 = vld [vmem:[%s1862 + $0x28] sm:$0xff]
          %v1869 = vld [vmem:[%s1862 + $0x30] sm:$0xff]
          %v1870 = vld [vmem:[%s1862 + $0x38] sm:$0xff]
          %v1871 = vld [vmem:[%s1862 + $0x40] sm:$0xff]
          %v1872 = vld [vmem:[%s1862 + $0x48] sm:$0xff]
          %v1873 = vld [vmem:[%s1862 + $0x50] sm:$0xff]
          %v1874 = vld [vmem:[%s1862 + $0x58] sm:$0xff]
          %v1875 = vld [vmem:[%s1862 + $0x60] sm:$0xff]
          %v1876 = vld [vmem:[%s1862 + $0x68] sm:$0xff]
          %v1877 = vld [vmem:[%s1862 + $0x70] sm:$0xff]
          %v1878 = vld [vmem:[%s1862 + $0x78] sm:$0xff]
          %v1879 = vlaneseq
          %v1880 = vshrl.u32 %v1879, 7
          %v1881 = vsub.s32 5, %v1880
          %v1882 = vrot.slane %v800, %v1881
          %v1883 = vmul.f32 %v1863, %v1882
          %v1884 = vmul.f32 %v1865, %v1882
          %v1885 = vmul.f32 %v1867, %v1882
          %v1886 = vmul.f32 %v1869, %v1882
          %v1887 = vmul.f32 %v1871, %v1882
          %v1888 = vmul.f32 %v1873, %v1882
          %v1889 = vmul.f32 %v1875, %v1882
          %v1890 = vmul.f32 %v1877, %v1882
          %v1891 = vrot.slane %v1863, 1
          %v1892 = vrot.slane %v1865, 1
          %v1893 = vrot.slane %v1867, 1
          %v1894 = vrot.slane %v1869, 1
          %v1895 = vrot.slane %v1871, 1
          %v1896 = vrot.slane %v1873, 1
          %v1897 = vrot.slane %v1875, 1
          %v1898 = vrot.slane %v1877, 1
          %v1899 = vrot.slane %v1864, 1
          %v1900 = vrot.slane %v1866, 1
          %v1901 = vrot.slane %v1868, 1
          %v1902 = vrot.slane %v1870, 1
          %v1903 = vrot.slane %v1872, 1
          %v1904 = vrot.slane %v1874, 1
          %v1905 = vrot.slane %v1876, 1
          %v1906 = vrot.slane %v1878, 1
          %v1907 = vsel %vm851, %v1891, %v1899
          %v1908 = vsel %vm851, %v1892, %v1900
          %v1909 = vsel %vm851, %v1893, %v1901
          %v1910 = vsel %vm851, %v1894, %v1902
          %v1911 = vsel %vm851, %v1895, %v1903
          %v1912 = vsel %vm851, %v1896, %v1904
          %v1913 = vsel %vm851, %v1897, %v1905
          %v1914 = vsel %vm851, %v1898, %v1906
          %v1915 = vsel %vm851, %v1899, %v1891
          %v1916 = vsel %vm851, %v1900, %v1892
          %v1917 = vsel %vm851, %v1901, %v1893
          %v1918 = vsel %vm851, %v1902, %v1894
          %v1919 = vsel %vm851, %v1903, %v1895
          %v1920 = vsel %vm851, %v1904, %v1896
          %v1921 = vsel %vm851, %v1905, %v1897
          %v1922 = vsel %vm851, %v1906, %v1898
          %v1923 = vlaneseq
          %v1924 = vshrl.u32 %v1923, 7
          %v1925 = vsub.s32 6, %v1924
          %v1926 = vrot.slane %v800, %v1925
          %v1927 = vmul.f32 %v1907, %v1926
          %v1928 = vmul.f32 %v1908, %v1926
          %v1929 = vmul.f32 %v1909, %v1926
          %v1930 = vmul.f32 %v1910, %v1926
          %v1931 = vmul.f32 %v1911, %v1926
          %v1932 = vmul.f32 %v1912, %v1926
          %v1933 = vmul.f32 %v1913, %v1926
          %v1934 = vmul.f32 %v1914, %v1926
          %v1935 = vadd.f32 %v1883, %v1927
          %v1936 = vadd.f32 %v1884, %v1928
          %v1937 = vadd.f32 %v1885, %v1929
          %v1938 = vadd.f32 %v1886, %v1930
          %v1939 = vadd.f32 %v1887, %v1931
          %v1940 = vadd.f32 %v1888, %v1932
          %v1941 = vadd.f32 %v1889, %v1933
          %v1942 = vadd.f32 %v1890, %v1934
          %v1943 = vrot.slane %v1907, 1
          %v1944 = vrot.slane %v1908, 1
          %v1945 = vrot.slane %v1909, 1
          %v1946 = vrot.slane %v1910, 1
          %v1947 = vrot.slane %v1911, 1
          %v1948 = vrot.slane %v1912, 1
          %v1949 = vrot.slane %v1913, 1
          %v1950 = vrot.slane %v1914, 1
          %v1951 = vrot.slane %v1915, 1
          %v1952 = vrot.slane %v1916, 1
          %v1953 = vrot.slane %v1917, 1
          %v1954 = vrot.slane %v1918, 1
          %v1955 = vrot.slane %v1919, 1
          %v1956 = vrot.slane %v1920, 1
          %v1957 = vrot.slane %v1921, 1
          %v1958 = vrot.slane %v1922, 1
          %v1959 = vsel %vm851, %v1943, %v1951
          %v1960 = vsel %vm851, %v1944, %v1952
          %v1961 = vsel %vm851, %v1945, %v1953
          %v1962 = vsel %vm851, %v1946, %v1954
          %v1963 = vsel %vm851, %v1947, %v1955
          %v1964 = vsel %vm851, %v1948, %v1956
          %v1965 = vsel %vm851, %v1949, %v1957
          %v1966 = vsel %vm851, %v1950, %v1958
          %v1967 = vsel %vm851, %v1951, %v1943
          %v1968 = vsel %vm851, %v1952, %v1944
          %v1969 = vsel %vm851, %v1953, %v1945
          %v1970 = vsel %vm851, %v1954, %v1946
          %v1971 = vsel %vm851, %v1955, %v1947
          %v1972 = vsel %vm851, %v1956, %v1948
          %v1973 = vsel %vm851, %v1957, %v1949
          %v1974 = vsel %vm851, %v1958, %v1950
          %v1975 = vlaneseq
          %v1976 = vshrl.u32 %v1975, 7
          %v1977 = vsub.s32 7, %v1976
          %v1978 = vrot.slane %v800, %v1977
          %v1979 = vmul.f32 %v1959, %v1978
          %v1980 = vmul.f32 %v1960, %v1978
          %v1981 = vmul.f32 %v1961, %v1978
          %v1982 = vmul.f32 %v1962, %v1978
          %v1983 = vmul.f32 %v1963, %v1978
          %v1984 = vmul.f32 %v1964, %v1978
          %v1985 = vmul.f32 %v1965, %v1978
          %v1986 = vmul.f32 %v1966, %v1978
          %v1987 = vadd.f32 %v1935, %v1979
          %v1988 = vadd.f32 %v1936, %v1980
          %v1989 = vadd.f32 %v1937, %v1981
          %v1990 = vadd.f32 %v1938, %v1982
          %v1991 = vadd.f32 %v1939, %v1983
          %v1992 = vadd.f32 %v1940, %v1984
          %v1993 = vadd.f32 %v1941, %v1985
          %v1994 = vadd.f32 %v1942, %v1986
          %v1995 = vrot.slane %v1959, 1
          %v1996 = vrot.slane %v1960, 1
          %v1997 = vrot.slane %v1961, 1
          %v1998 = vrot.slane %v1962, 1
          %v1999 = vrot.slane %v1963, 1
          %v2000 = vrot.slane %v1964, 1
          %v2001 = vrot.slane %v1965, 1
          %v2002 = vrot.slane %v1966, 1
          %v2003 = vrot.slane %v1967, 1
          %v2004 = vrot.slane %v1968, 1
          %v2005 = vrot.slane %v1969, 1
          %v2006 = vrot.slane %v1970, 1
          %v2007 = vrot.slane %v1971, 1
          %v2008 = vrot.slane %v1972, 1
          %v2009 = vrot.slane %v1973, 1
          %v2010 = vrot.slane %v1974, 1
          %v2011 = vsel %vm851, %v1995, %v2003
          %v2012 = vsel %vm851, %v1996, %v2004
          %v2013 = vsel %vm851, %v1997, %v2005
          %v2014 = vsel %vm851, %v1998, %v2006
          %v2015 = vsel %vm851, %v1999, %v2007
          %v2016 = vsel %vm851, %v2000, %v2008
          %v2017 = vsel %vm851, %v2001, %v2009
          %v2018 = vsel %vm851, %v2002, %v2010
          %v2019 = vsel %vm851, %v2003, %v1995
          %v2020 = vsel %vm851, %v2004, %v1996
          %v2021 = vsel %vm851, %v2005, %v1997
          %v2022 = vsel %vm851, %v2006, %v1998
          %v2023 = vsel %vm851, %v2007, %v1999
          %v2024 = vsel %vm851, %v2008, %v2000
          %v2025 = vsel %vm851, %v2009, %v2001
          %v2026 = vsel %vm851, %v2010, %v2002
          %v2027 = vlaneseq
          %v2028 = vshrl.u32 %v2027, 7
          %v2029 = vsub.s32 0, %v2028
          %v2030 = vrot.slane %v801, %v2029
          %v2031 = vmul.f32 %v2011, %v2030
          %v2032 = vmul.f32 %v2012, %v2030
          %v2033 = vmul.f32 %v2013, %v2030
          %v2034 = vmul.f32 %v2014, %v2030
          %v2035 = vmul.f32 %v2015, %v2030
          %v2036 = vmul.f32 %v2016, %v2030
          %v2037 = vmul.f32 %v2017, %v2030
          %v2038 = vmul.f32 %v2018, %v2030
          %v2039 = vadd.f32 %v1987, %v2031
          %v2040 = vadd.f32 %v1988, %v2032
          %v2041 = vadd.f32 %v1989, %v2033
          %v2042 = vadd.f32 %v1990, %v2034
          %v2043 = vadd.f32 %v1991, %v2035
          %v2044 = vadd.f32 %v1992, %v2036
          %v2045 = vadd.f32 %v1993, %v2037
          %v2046 = vadd.f32 %v1994, %v2038
          %v2047 = vrot.slane %v2011, 1
          %v2048 = vrot.slane %v2012, 1
          %v2049 = vrot.slane %v2013, 1
          %v2050 = vrot.slane %v2014, 1
          %v2051 = vrot.slane %v2015, 1
          %v2052 = vrot.slane %v2016, 1
          %v2053 = vrot.slane %v2017, 1
          %v2054 = vrot.slane %v2018, 1
          %v2055 = vrot.slane %v2019, 1
          %v2056 = vrot.slane %v2020, 1
          %v2057 = vrot.slane %v2021, 1
          %v2058 = vrot.slane %v2022, 1
          %v2059 = vrot.slane %v2023, 1
          %v2060 = vrot.slane %v2024, 1
          %v2061 = vrot.slane %v2025, 1
          %v2062 = vrot.slane %v2026, 1
          %v2063 = vsel %vm851, %v2047, %v2055
          %v2064 = vsel %vm851, %v2048, %v2056
          %v2065 = vsel %vm851, %v2049, %v2057
          %v2066 = vsel %vm851, %v2050, %v2058
          %v2067 = vsel %vm851, %v2051, %v2059
          %v2068 = vsel %vm851, %v2052, %v2060
          %v2069 = vsel %vm851, %v2053, %v2061
          %v2070 = vsel %vm851, %v2054, %v2062
          %v2071 = vsel %vm851, %v2055, %v2047
          %v2072 = vsel %vm851, %v2056, %v2048
          %v2073 = vsel %vm851, %v2057, %v2049
          %v2074 = vsel %vm851, %v2058, %v2050
          %v2075 = vsel %vm851, %v2059, %v2051
          %v2076 = vsel %vm851, %v2060, %v2052
          %v2077 = vsel %vm851, %v2061, %v2053
          %v2078 = vsel %vm851, %v2062, %v2054
          %v2079 = vlaneseq
          %v2080 = vshrl.u32 %v2079, 7
          %v2081 = vsub.s32 1, %v2080
          %v2082 = vrot.slane %v801, %v2081
          %v2083 = vmul.f32 %v2063, %v2082
          %v2084 = vmul.f32 %v2064, %v2082
          %v2085 = vmul.f32 %v2065, %v2082
          %v2086 = vmul.f32 %v2066, %v2082
          %v2087 = vmul.f32 %v2067, %v2082
          %v2088 = vmul.f32 %v2068, %v2082
          %v2089 = vmul.f32 %v2069, %v2082
          %v2090 = vmul.f32 %v2070, %v2082
          %v2091 = vadd.f32 %v2039, %v2083
          %v2092 = vadd.f32 %v2040, %v2084
          %v2093 = vadd.f32 %v2041, %v2085
          %v2094 = vadd.f32 %v2042, %v2086
          %v2095 = vadd.f32 %v2043, %v2087
          %v2096 = vadd.f32 %v2044, %v2088
          %v2097 = vadd.f32 %v2045, %v2089
          %v2098 = vadd.f32 %v2046, %v2090
          %v2099 = vrot.slane %v2063, 1
          %v2100 = vrot.slane %v2064, 1
          %v2101 = vrot.slane %v2065, 1
          %v2102 = vrot.slane %v2066, 1
          %v2103 = vrot.slane %v2067, 1
          %v2104 = vrot.slane %v2068, 1
          %v2105 = vrot.slane %v2069, 1
          %v2106 = vrot.slane %v2070, 1
          %v2107 = vrot.slane %v2071, 1
          %v2108 = vrot.slane %v2072, 1
          %v2109 = vrot.slane %v2073, 1
          %v2110 = vrot.slane %v2074, 1
          %v2111 = vrot.slane %v2075, 1
          %v2112 = vrot.slane %v2076, 1
          %v2113 = vrot.slane %v2077, 1
          %v2114 = vrot.slane %v2078, 1
          %v2115 = vsel %vm851, %v2099, %v2107
          %v2116 = vsel %vm851, %v2100, %v2108
          %v2117 = vsel %vm851, %v2101, %v2109
          %v2118 = vsel %vm851, %v2102, %v2110
          %v2119 = vsel %vm851, %v2103, %v2111
          %v2120 = vsel %vm851, %v2104, %v2112
          %v2121 = vsel %vm851, %v2105, %v2113
          %v2122 = vsel %vm851, %v2106, %v2114
          %v2123 = vsel %vm851, %v2107, %v2099
          %v2124 = vsel %vm851, %v2108, %v2100
          %v2125 = vsel %vm851, %v2109, %v2101
          %v2126 = vsel %vm851, %v2110, %v2102
          %v2127 = vsel %vm851, %v2111, %v2103
          %v2128 = vsel %vm851, %v2112, %v2104
          %v2129 = vsel %vm851, %v2113, %v2105
          %v2130 = vsel %vm851, %v2114, %v2106
          %v2131 = vlaneseq
          %v2132 = vshrl.u32 %v2131, 7
          %v2133 = vsub.s32 2, %v2132
          %v2134 = vrot.slane %v801, %v2133
          %v2135 = vmul.f32 %v2115, %v2134
          %v2136 = vmul.f32 %v2116, %v2134
          %v2137 = vmul.f32 %v2117, %v2134
          %v2138 = vmul.f32 %v2118, %v2134
          %v2139 = vmul.f32 %v2119, %v2134
          %v2140 = vmul.f32 %v2120, %v2134
          %v2141 = vmul.f32 %v2121, %v2134
          %v2142 = vmul.f32 %v2122, %v2134
          %v2143 = vadd.f32 %v2091, %v2135
          %v2144 = vadd.f32 %v2092, %v2136
          %v2145 = vadd.f32 %v2093, %v2137
          %v2146 = vadd.f32 %v2094, %v2138
          %v2147 = vadd.f32 %v2095, %v2139
          %v2148 = vadd.f32 %v2096, %v2140
          %v2149 = vadd.f32 %v2097, %v2141
          %v2150 = vadd.f32 %v2098, %v2142
          %v2151 = vrot.slane %v2115, 1
          %v2152 = vrot.slane %v2116, 1
          %v2153 = vrot.slane %v2117, 1
          %v2154 = vrot.slane %v2118, 1
          %v2155 = vrot.slane %v2119, 1
          %v2156 = vrot.slane %v2120, 1
          %v2157 = vrot.slane %v2121, 1
          %v2158 = vrot.slane %v2122, 1
          %v2159 = vrot.slane %v2123, 1
          %v2160 = vrot.slane %v2124, 1
          %v2161 = vrot.slane %v2125, 1
          %v2162 = vrot.slane %v2126, 1
          %v2163 = vrot.slane %v2127, 1
          %v2164 = vrot.slane %v2128, 1
          %v2165 = vrot.slane %v2129, 1
          %v2166 = vrot.slane %v2130, 1
          %v2167 = vsel %vm851, %v2151, %v2159
          %v2168 = vsel %vm851, %v2152, %v2160
          %v2169 = vsel %vm851, %v2153, %v2161
          %v2170 = vsel %vm851, %v2154, %v2162
          %v2171 = vsel %vm851, %v2155, %v2163
          %v2172 = vsel %vm851, %v2156, %v2164
          %v2173 = vsel %vm851, %v2157, %v2165
          %v2174 = vsel %vm851, %v2158, %v2166
          %v2175 = vlaneseq
          %v2176 = vshrl.u32 %v2175, 7
          %v2177 = vsub.s32 3, %v2176
          %v2178 = vrot.slane %v801, %v2177
          %v2179 = vmul.f32 %v2167, %v2178
          %v2180 = vmul.f32 %v2168, %v2178
          %v2181 = vmul.f32 %v2169, %v2178
          %v2182 = vmul.f32 %v2170, %v2178
          %v2183 = vmul.f32 %v2171, %v2178
          %v2184 = vmul.f32 %v2172, %v2178
          %v2185 = vmul.f32 %v2173, %v2178
          %v2186 = vmul.f32 %v2174, %v2178
          %v2187 = vadd.f32 %v2143, %v2179
          %v2188 = vadd.f32 %v2144, %v2180
          %v2189 = vadd.f32 %v2145, %v2181
          %v2190 = vadd.f32 %v2146, %v2182
          %v2191 = vadd.f32 %v2147, %v2183
          %v2192 = vadd.f32 %v2148, %v2184
          %v2193 = vadd.f32 %v2149, %v2185
          %v2194 = vadd.f32 %v2150, %v2186
          %v2195 = vld [vmem:[%s367] sm:$0xff]
          %v2196 = vld [vmem:[%s367 + $0x8] sm:$0xff]
          %v2197 = vld [vmem:[%s367 + $0x10] sm:$0xff]
          %v2198 = vld [vmem:[%s367 + $0x18] sm:$0xff]
          %v2199 = vld [vmem:[%s367 + $0x20] sm:$0xff]
          %v2200 = vld [vmem:[%s367 + $0x28] sm:$0xff]
          %v2201 = vld [vmem:[%s367 + $0x30] sm:$0xff]
          %v2202 = vld [vmem:[%s367 + $0x38] sm:$0xff]
          %v2203 = vadd.f32 %v2195, %v2187
          %v2204 = vadd.f32 %v2196, %v2188
          %v2205 = vadd.f32 %v2197, %v2189
          %v2206 = vadd.f32 %v2198, %v2190
          %v2207 = vadd.f32 %v2199, %v2191
          %v2208 = vadd.f32 %v2200, %v2192
          %v2209 = vadd.f32 %v2201, %v2193
          %v2210 = vadd.f32 %v2202, %v2194
          %2211 = vst [vmem:[%s367] sm:$0xff] %v2203
          %2212 = vst [vmem:[%s367 + $0x8] sm:$0xff] %v2204
          %2213 = vst [vmem:[%s367 + $0x10] sm:$0xff] %v2205
          %2214 = vst [vmem:[%s367 + $0x18] sm:$0xff] %v2206
          %2215 = vst [vmem:[%s367 + $0x20] sm:$0xff] %v2207
          %2216 = vst [vmem:[%s367 + $0x28] sm:$0xff] %v2208
          %2217 = vst [vmem:[%s367 + $0x30] sm:$0xff] %v2209
          %2218 = vst [vmem:[%s367 + $0x38] sm:$0xff] %v2210
          %s2219 = scalar_lea.vmem [#allocation2], 64
          %v2220 = vld [vmem:[%s2219] sm:$0xff]
          %v2221 = vld [vmem:[%s2219 + $0x8] sm:$0xff]
          %v2222 = vld [vmem:[%s2219 + $0x10] sm:$0xff]
          %v2223 = vld [vmem:[%s2219 + $0x18] sm:$0xff]
          %v2224 = vld [vmem:[%s2219 + $0x20] sm:$0xff]
          %v2225 = vld [vmem:[%s2219 + $0x28] sm:$0xff]
          %v2226 = vld [vmem:[%s2219 + $0x30] sm:$0xff]
          %v2227 = vld [vmem:[%s2219 + $0x38] sm:$0xff]
          %v2228 = vld [vmem:[%s2219 + $0x40] sm:$0xff]
          %v2229 = vld [vmem:[%s2219 + $0x48] sm:$0xff]
          %v2230 = vld [vmem:[%s2219 + $0x50] sm:$0xff]
          %v2231 = vld [vmem:[%s2219 + $0x58] sm:$0xff]
          %v2232 = vld [vmem:[%s2219 + $0x60] sm:$0xff]
          %v2233 = vld [vmem:[%s2219 + $0x68] sm:$0xff]
          %v2234 = vld [vmem:[%s2219 + $0x70] sm:$0xff]
          %v2235 = vld [vmem:[%s2219 + $0x78] sm:$0xff]
          %v2236 = vlaneseq
          %v2237 = vshrl.u32 %v2236, 7
          %v2238 = vsub.s32 4, %v2237
          %v2239 = vrot.slane %v801, %v2238
          %v2240 = vmul.f32 %v2220, %v2239
          %v2241 = vmul.f32 %v2222, %v2239
          %v2242 = vmul.f32 %v2224, %v2239
          %v2243 = vmul.f32 %v2226, %v2239
          %v2244 = vmul.f32 %v2228, %v2239
          %v2245 = vmul.f32 %v2230, %v2239
          %v2246 = vmul.f32 %v2232, %v2239
          %v2247 = vmul.f32 %v2234, %v2239
          %v2248 = vrot.slane %v2220, 1
          %v2249 = vrot.slane %v2222, 1
          %v2250 = vrot.slane %v2224, 1
          %v2251 = vrot.slane %v2226, 1
          %v2252 = vrot.slane %v2228, 1
          %v2253 = vrot.slane %v2230, 1
          %v2254 = vrot.slane %v2232, 1
          %v2255 = vrot.slane %v2234, 1
          %v2256 = vrot.slane %v2221, 1
          %v2257 = vrot.slane %v2223, 1
          %v2258 = vrot.slane %v2225, 1
          %v2259 = vrot.slane %v2227, 1
          %v2260 = vrot.slane %v2229, 1
          %v2261 = vrot.slane %v2231, 1
          %v2262 = vrot.slane %v2233, 1
          %v2263 = vrot.slane %v2235, 1
          %v2264 = vsel %vm851, %v2248, %v2256
          %v2265 = vsel %vm851, %v2249, %v2257
          %v2266 = vsel %vm851, %v2250, %v2258
          %v2267 = vsel %vm851, %v2251, %v2259
          %v2268 = vsel %vm851, %v2252, %v2260
          %v2269 = vsel %vm851, %v2253, %v2261
          %v2270 = vsel %vm851, %v2254, %v2262
          %v2271 = vsel %vm851, %v2255, %v2263
          %v2272 = vsel %vm851, %v2256, %v2248
          %v2273 = vsel %vm851, %v2257, %v2249
          %v2274 = vsel %vm851, %v2258, %v2250
          %v2275 = vsel %vm851, %v2259, %v2251
          %v2276 = vsel %vm851, %v2260, %v2252
          %v2277 = vsel %vm851, %v2261, %v2253
          %v2278 = vsel %vm851, %v2262, %v2254
          %v2279 = vsel %vm851, %v2263, %v2255
          %v2280 = vlaneseq
          %v2281 = vshrl.u32 %v2280, 7
          %v2282 = vsub.s32 5, %v2281
          %v2283 = vrot.slane %v801, %v2282
          %v2284 = vmul.f32 %v2264, %v2283
          %v2285 = vmul.f32 %v2265, %v2283
          %v2286 = vmul.f32 %v2266, %v2283
          %v2287 = vmul.f32 %v2267, %v2283
          %v2288 = vmul.f32 %v2268, %v2283
          %v2289 = vmul.f32 %v2269, %v2283
          %v2290 = vmul.f32 %v2270, %v2283
          %v2291 = vmul.f32 %v2271, %v2283
          %v2292 = vadd.f32 %v2240, %v2284
          %v2293 = vadd.f32 %v2241, %v2285
          %v2294 = vadd.f32 %v2242, %v2286
          %v2295 = vadd.f32 %v2243, %v2287
          %v2296 = vadd.f32 %v2244, %v2288
          %v2297 = vadd.f32 %v2245, %v2289
          %v2298 = vadd.f32 %v2246, %v2290
          %v2299 = vadd.f32 %v2247, %v2291
          %v2300 = vrot.slane %v2264, 1
          %v2301 = vrot.slane %v2265, 1
          %v2302 = vrot.slane %v2266, 1
          %v2303 = vrot.slane %v2267, 1
          %v2304 = vrot.slane %v2268, 1
          %v2305 = vrot.slane %v2269, 1
          %v2306 = vrot.slane %v2270, 1
          %v2307 = vrot.slane %v2271, 1
          %v2308 = vrot.slane %v2272, 1
          %v2309 = vrot.slane %v2273, 1
          %v2310 = vrot.slane %v2274, 1
          %v2311 = vrot.slane %v2275, 1
          %v2312 = vrot.slane %v2276, 1
          %v2313 = vrot.slane %v2277, 1
          %v2314 = vrot.slane %v2278, 1
          %v2315 = vrot.slane %v2279, 1
          %v2316 = vsel %vm851, %v2300, %v2308
          %v2317 = vsel %vm851, %v2301, %v2309
          %v2318 = vsel %vm851, %v2302, %v2310
          %v2319 = vsel %vm851, %v2303, %v2311
          %v2320 = vsel %vm851, %v2304, %v2312
          %v2321 = vsel %vm851, %v2305, %v2313
          %v2322 = vsel %vm851, %v2306, %v2314
          %v2323 = vsel %vm851, %v2307, %v2315
          %v2324 = vsel %vm851, %v2308, %v2300
          %v2325 = vsel %vm851, %v2309, %v2301
          %v2326 = vsel %vm851, %v2310, %v2302
          %v2327 = vsel %vm851, %v2311, %v2303
          %v2328 = vsel %vm851, %v2312, %v2304
          %v2329 = vsel %vm851, %v2313, %v2305
          %v2330 = vsel %vm851, %v2314, %v2306
          %v2331 = vsel %vm851, %v2315, %v2307
          %v2332 = vlaneseq
          %v2333 = vshrl.u32 %v2332, 7
          %v2334 = vsub.s32 6, %v2333
          %v2335 = vrot.slane %v801, %v2334
          %v2336 = vmul.f32 %v2316, %v2335
          %v2337 = vmul.f32 %v2317, %v2335
          %v2338 = vmul.f32 %v2318, %v2335
          %v2339 = vmul.f32 %v2319, %v2335
          %v2340 = vmul.f32 %v2320, %v2335
          %v2341 = vmul.f32 %v2321, %v2335
          %v2342 = vmul.f32 %v2322, %v2335
          %v2343 = vmul.f32 %v2323, %v2335
          %v2344 = vadd.f32 %v2292, %v2336
          %v2345 = vadd.f32 %v2293, %v2337
          %v2346 = vadd.f32 %v2294, %v2338
          %v2347 = vadd.f32 %v2295, %v2339
          %v2348 = vadd.f32 %v2296, %v2340
          %v2349 = vadd.f32 %v2297, %v2341
          %v2350 = vadd.f32 %v2298, %v2342
          %v2351 = vadd.f32 %v2299, %v2343
          %v2352 = vrot.slane %v2316, 1
          %v2353 = vrot.slane %v2317, 1
          %v2354 = vrot.slane %v2318, 1
          %v2355 = vrot.slane %v2319, 1
          %v2356 = vrot.slane %v2320, 1
          %v2357 = vrot.slane %v2321, 1
          %v2358 = vrot.slane %v2322, 1
          %v2359 = vrot.slane %v2323, 1
          %v2360 = vrot.slane %v2324, 1
          %v2361 = vrot.slane %v2325, 1
          %v2362 = vrot.slane %v2326, 1
          %v2363 = vrot.slane %v2327, 1
          %v2364 = vrot.slane %v2328, 1
          %v2365 = vrot.slane %v2329, 1
          %v2366 = vrot.slane %v2330, 1
          %v2367 = vrot.slane %v2331, 1
          %v2368 = vsel %vm851, %v2352, %v2360
          %v2369 = vsel %vm851, %v2353, %v2361
          %v2370 = vsel %vm851, %v2354, %v2362
          %v2371 = vsel %vm851, %v2355, %v2363
          %v2372 = vsel %vm851, %v2356, %v2364
          %v2373 = vsel %vm851, %v2357, %v2365
          %v2374 = vsel %vm851, %v2358, %v2366
          %v2375 = vsel %vm851, %v2359, %v2367
          %v2376 = vsel %vm851, %v2360, %v2352
          %v2377 = vsel %vm851, %v2361, %v2353
          %v2378 = vsel %vm851, %v2362, %v2354
          %v2379 = vsel %vm851, %v2363, %v2355
          %v2380 = vsel %vm851, %v2364, %v2356
          %v2381 = vsel %vm851, %v2365, %v2357
          %v2382 = vsel %vm851, %v2366, %v2358
          %v2383 = vsel %vm851, %v2367, %v2359
          %v2384 = vlaneseq
          %v2385 = vshrl.u32 %v2384, 7
          %v2386 = vsub.s32 7, %v2385
          %v2387 = vrot.slane %v801, %v2386
          %v2388 = vmul.f32 %v2368, %v2387
          %v2389 = vmul.f32 %v2369, %v2387
          %v2390 = vmul.f32 %v2370, %v2387
          %v2391 = vmul.f32 %v2371, %v2387
          %v2392 = vmul.f32 %v2372, %v2387
          %v2393 = vmul.f32 %v2373, %v2387
          %v2394 = vmul.f32 %v2374, %v2387
          %v2395 = vmul.f32 %v2375, %v2387
          %v2396 = vadd.f32 %v2344, %v2388
          %v2397 = vadd.f32 %v2345, %v2389
          %v2398 = vadd.f32 %v2346, %v2390
          %v2399 = vadd.f32 %v2347, %v2391
          %v2400 = vadd.f32 %v2348, %v2392
          %v2401 = vadd.f32 %v2349, %v2393
          %v2402 = vadd.f32 %v2350, %v2394
          %v2403 = vadd.f32 %v2351, %v2395
          %v2404 = vrot.slane %v2368, 1
          %v2405 = vrot.slane %v2369, 1
          %v2406 = vrot.slane %v2370, 1
          %v2407 = vrot.slane %v2371, 1
          %v2408 = vrot.slane %v2372, 1
          %v2409 = vrot.slane %v2373, 1
          %v2410 = vrot.slane %v2374, 1
          %v2411 = vrot.slane %v2375, 1
          %v2412 = vrot.slane %v2376, 1
          %v2413 = vrot.slane %v2377, 1
          %v2414 = vrot.slane %v2378, 1
          %v2415 = vrot.slane %v2379, 1
          %v2416 = vrot.slane %v2380, 1
          %v2417 = vrot.slane %v2381, 1
          %v2418 = vrot.slane %v2382, 1
          %v2419 = vrot.slane %v2383, 1
          %v2420 = vsel %vm851, %v2404, %v2412
          %v2421 = vsel %vm851, %v2405, %v2413
          %v2422 = vsel %vm851, %v2406, %v2414
          %v2423 = vsel %vm851, %v2407, %v2415
          %v2424 = vsel %vm851, %v2408, %v2416
          %v2425 = vsel %vm851, %v2409, %v2417
          %v2426 = vsel %vm851, %v2410, %v2418
          %v2427 = vsel %vm851, %v2411, %v2419
          %v2428 = vsel %vm851, %v2412, %v2404
          %v2429 = vsel %vm851, %v2413, %v2405
          %v2430 = vsel %vm851, %v2414, %v2406
          %v2431 = vsel %vm851, %v2415, %v2407
          %v2432 = vsel %vm851, %v2416, %v2408
          %v2433 = vsel %vm851, %v2417, %v2409
          %v2434 = vsel %vm851, %v2418, %v2410
          %v2435 = vsel %vm851, %v2419, %v2411
          %v2436 = vlaneseq
          %v2437 = vshrl.u32 %v2436, 7
          %v2438 = vsub.s32 0, %v2437
          %v2439 = vrot.slane %v802, %v2438
          %v2440 = vmul.f32 %v2420, %v2439
          %v2441 = vmul.f32 %v2421, %v2439
          %v2442 = vmul.f32 %v2422, %v2439
          %v2443 = vmul.f32 %v2423, %v2439
          %v2444 = vmul.f32 %v2424, %v2439
          %v2445 = vmul.f32 %v2425, %v2439
          %v2446 = vmul.f32 %v2426, %v2439
          %v2447 = vmul.f32 %v2427, %v2439
          %v2448 = vadd.f32 %v2396, %v2440
          %v2449 = vadd.f32 %v2397, %v2441
          %v2450 = vadd.f32 %v2398, %v2442
          %v2451 = vadd.f32 %v2399, %v2443
          %v2452 = vadd.f32 %v2400, %v2444
          %v2453 = vadd.f32 %v2401, %v2445
          %v2454 = vadd.f32 %v2402, %v2446
          %v2455 = vadd.f32 %v2403, %v2447
          %v2456 = vrot.slane %v2420, 1
          %v2457 = vrot.slane %v2421, 1
          %v2458 = vrot.slane %v2422, 1
          %v2459 = vrot.slane %v2423, 1
          %v2460 = vrot.slane %v2424, 1
          %v2461 = vrot.slane %v2425, 1
          %v2462 = vrot.slane %v2426, 1
          %v2463 = vrot.slane %v2427, 1
          %v2464 = vrot.slane %v2428, 1
          %v2465 = vrot.slane %v2429, 1
          %v2466 = vrot.slane %v2430, 1
          %v2467 = vrot.slane %v2431, 1
          %v2468 = vrot.slane %v2432, 1
          %v2469 = vrot.slane %v2433, 1
          %v2470 = vrot.slane %v2434, 1
          %v2471 = vrot.slane %v2435, 1
          %v2472 = vsel %vm851, %v2456, %v2464
          %v2473 = vsel %vm851, %v2457, %v2465
          %v2474 = vsel %vm851, %v2458, %v2466
          %v2475 = vsel %vm851, %v2459, %v2467
          %v2476 = vsel %vm851, %v2460, %v2468
          %v2477 = vsel %vm851, %v2461, %v2469
          %v2478 = vsel %vm851, %v2462, %v2470
          %v2479 = vsel %vm851, %v2463, %v2471
          %v2480 = vsel %vm851, %v2464, %v2456
          %v2481 = vsel %vm851, %v2465, %v2457
          %v2482 = vsel %vm851, %v2466, %v2458
          %v2483 = vsel %vm851, %v2467, %v2459
          %v2484 = vsel %vm851, %v2468, %v2460
          %v2485 = vsel %vm851, %v2469, %v2461
          %v2486 = vsel %vm851, %v2470, %v2462
          %v2487 = vsel %vm851, %v2471, %v2463
          %v2488 = vlaneseq
          %v2489 = vshrl.u32 %v2488, 7
          %v2490 = vsub.s32 1, %v2489
          %v2491 = vrot.slane %v802, %v2490
          %v2492 = vmul.f32 %v2472, %v2491
          %v2493 = vmul.f32 %v2473, %v2491
          %v2494 = vmul.f32 %v2474, %v2491
          %v2495 = vmul.f32 %v2475, %v2491
          %v2496 = vmul.f32 %v2476, %v2491
          %v2497 = vmul.f32 %v2477, %v2491
          %v2498 = vmul.f32 %v2478, %v2491
          %v2499 = vmul.f32 %v2479, %v2491
          %v2500 = vadd.f32 %v2448, %v2492
          %v2501 = vadd.f32 %v2449, %v2493
          %v2502 = vadd.f32 %v2450, %v2494
          %v2503 = vadd.f32 %v2451, %v2495
          %v2504 = vadd.f32 %v2452, %v2496
          %v2505 = vadd.f32 %v2453, %v2497
          %v2506 = vadd.f32 %v2454, %v2498
          %v2507 = vadd.f32 %v2455, %v2499
          %v2508 = vrot.slane %v2472, 1
          %v2509 = vrot.slane %v2473, 1
          %v2510 = vrot.slane %v2474, 1
          %v2511 = vrot.slane %v2475, 1
          %v2512 = vrot.slane %v2476, 1
          %v2513 = vrot.slane %v2477, 1
          %v2514 = vrot.slane %v2478, 1
          %v2515 = vrot.slane %v2479, 1
          %v2516 = vrot.slane %v2480, 1
          %v2517 = vrot.slane %v2481, 1
          %v2518 = vrot.slane %v2482, 1
          %v2519 = vrot.slane %v2483, 1
          %v2520 = vrot.slane %v2484, 1
          %v2521 = vrot.slane %v2485, 1
          %v2522 = vrot.slane %v2486, 1
          %v2523 = vrot.slane %v2487, 1
          %v2524 = vsel %vm851, %v2508, %v2516
          %v2525 = vsel %vm851, %v2509, %v2517
          %v2526 = vsel %vm851, %v2510, %v2518
          %v2527 = vsel %vm851, %v2511, %v2519
          %v2528 = vsel %vm851, %v2512, %v2520
          %v2529 = vsel %vm851, %v2513, %v2521
          %v2530 = vsel %vm851, %v2514, %v2522
          %v2531 = vsel %vm851, %v2515, %v2523
          %v2532 = vlaneseq
          %v2533 = vshrl.u32 %v2532, 7
          %v2534 = vsub.s32 2, %v2533
          %v2535 = vrot.slane %v802, %v2534
          %v2536 = vmul.f32 %v2524, %v2535
          %v2537 = vmul.f32 %v2525, %v2535
          %v2538 = vmul.f32 %v2526, %v2535
          %v2539 = vmul.f32 %v2527, %v2535
          %v2540 = vmul.f32 %v2528, %v2535
          %v2541 = vmul.f32 %v2529, %v2535
          %v2542 = vmul.f32 %v2530, %v2535
          %v2543 = vmul.f32 %v2531, %v2535
          %v2544 = vadd.f32 %v2500, %v2536
          %v2545 = vadd.f32 %v2501, %v2537
          %v2546 = vadd.f32 %v2502, %v2538
          %v2547 = vadd.f32 %v2503, %v2539
          %v2548 = vadd.f32 %v2504, %v2540
          %v2549 = vadd.f32 %v2505, %v2541
          %v2550 = vadd.f32 %v2506, %v2542
          %v2551 = vadd.f32 %v2507, %v2543
          %v2552 = vld [vmem:[%s367] sm:$0xff]
          %v2553 = vld [vmem:[%s367 + $0x8] sm:$0xff]
          %v2554 = vld [vmem:[%s367 + $0x10] sm:$0xff]
          %v2555 = vld [vmem:[%s367 + $0x18] sm:$0xff]
          %v2556 = vld [vmem:[%s367 + $0x20] sm:$0xff]
          %v2557 = vld [vmem:[%s367 + $0x28] sm:$0xff]
          %v2558 = vld [vmem:[%s367 + $0x30] sm:$0xff]
          %v2559 = vld [vmem:[%s367 + $0x38] sm:$0xff]
          %v2560 = vadd.f32 %v2552, %v2544
          %v2561 = vadd.f32 %v2553, %v2545
          %v2562 = vadd.f32 %v2554, %v2546
          %v2563 = vadd.f32 %v2555, %v2547
          %v2564 = vadd.f32 %v2556, %v2548
          %v2565 = vadd.f32 %v2557, %v2549
          %v2566 = vadd.f32 %v2558, %v2550
          %v2567 = vadd.f32 %v2559, %v2551
          %2568 = vst [vmem:[%s367] sm:$0xff] %v2560
          %2569 = vst [vmem:[%s367 + $0x8] sm:$0xff] %v2561
          %2570 = vst [vmem:[%s367 + $0x10] sm:$0xff] %v2562
          %2571 = vst [vmem:[%s367 + $0x18] sm:$0xff] %v2563
          %2572 = vst [vmem:[%s367 + $0x20] sm:$0xff] %v2564
          %2573 = vst [vmem:[%s367 + $0x28] sm:$0xff] %v2565
          %2574 = vst [vmem:[%s367 + $0x30] sm:$0xff] %v2566
          %2575 = vst [vmem:[%s367 + $0x38] sm:$0xff] %v2567
          %s2576 = scalar_lea.vmem [#allocation2], 80
          %v2577 = vld [vmem:[%s2576] sm:$0xff]
          %v2578 = vld [vmem:[%s2576 + $0x8] sm:$0xff]
          %v2579 = vld [vmem:[%s2576 + $0x10] sm:$0xff]
          %v2580 = vld [vmem:[%s2576 + $0x18] sm:$0xff]
          %v2581 = vld [vmem:[%s2576 + $0x20] sm:$0xff]
          %v2582 = vld [vmem:[%s2576 + $0x28] sm:$0xff]
          %v2583 = vld [vmem:[%s2576 + $0x30] sm:$0xff]
          %v2584 = vld [vmem:[%s2576 + $0x38] sm:$0xff]
          %v2585 = vld [vmem:[%s2576 + $0x40] sm:$0xff]
          %v2586 = vld [vmem:[%s2576 + $0x48] sm:$0xff]
          %v2587 = vld [vmem:[%s2576 + $0x50] sm:$0xff]
          %v2588 = vld [vmem:[%s2576 + $0x58] sm:$0xff]
          %v2589 = vld [vmem:[%s2576 + $0x60] sm:$0xff]
          %v2590 = vld [vmem:[%s2576 + $0x68] sm:$0xff]
          %v2591 = vld [vmem:[%s2576 + $0x70] sm:$0xff]
          %v2592 = vld [vmem:[%s2576 + $0x78] sm:$0xff]
          %v2593 = vlaneseq
          %v2594 = vshrl.u32 %v2593, 7
          %v2595 = vsub.s32 3, %v2594
          %v2596 = vrot.slane %v802, %v2595
          %v2597 = vmul.f32 %v2577, %v2596
          %v2598 = vmul.f32 %v2579, %v2596
          %v2599 = vmul.f32 %v2581, %v2596
          %v2600 = vmul.f32 %v2583, %v2596
          %v2601 = vmul.f32 %v2585, %v2596
          %v2602 = vmul.f32 %v2587, %v2596
          %v2603 = vmul.f32 %v2589, %v2596
          %v2604 = vmul.f32 %v2591, %v2596
          %v2605 = vrot.slane %v2577, 1
          %v2606 = vrot.slane %v2579, 1
          %v2607 = vrot.slane %v2581, 1
          %v2608 = vrot.slane %v2583, 1
          %v2609 = vrot.slane %v2585, 1
          %v2610 = vrot.slane %v2587, 1
          %v2611 = vrot.slane %v2589, 1
          %v2612 = vrot.slane %v2591, 1
          %v2613 = vrot.slane %v2578, 1
          %v2614 = vrot.slane %v2580, 1
          %v2615 = vrot.slane %v2582, 1
          %v2616 = vrot.slane %v2584, 1
          %v2617 = vrot.slane %v2586, 1
          %v2618 = vrot.slane %v2588, 1
          %v2619 = vrot.slane %v2590, 1
          %v2620 = vrot.slane %v2592, 1
          %v2621 = vsel %vm851, %v2605, %v2613
          %v2622 = vsel %vm851, %v2606, %v2614
          %v2623 = vsel %vm851, %v2607, %v2615
          %v2624 = vsel %vm851, %v2608, %v2616
          %v2625 = vsel %vm851, %v2609, %v2617
          %v2626 = vsel %vm851, %v2610, %v2618
          %v2627 = vsel %vm851, %v2611, %v2619
          %v2628 = vsel %vm851, %v2612, %v2620
          %v2629 = vsel %vm851, %v2613, %v2605
          %v2630 = vsel %vm851, %v2614, %v2606
          %v2631 = vsel %vm851, %v2615, %v2607
          %v2632 = vsel %vm851, %v2616, %v2608
          %v2633 = vsel %vm851, %v2617, %v2609
          %v2634 = vsel %vm851, %v2618, %v2610
          %v2635 = vsel %vm851, %v2619, %v2611
          %v2636 = vsel %vm851, %v2620, %v2612
          %v2637 = vlaneseq
          %v2638 = vshrl.u32 %v2637, 7
          %v2639 = vsub.s32 4, %v2638
          %v2640 = vrot.slane %v802, %v2639
          %v2641 = vmul.f32 %v2621, %v2640
          %v2642 = vmul.f32 %v2622, %v2640
          %v2643 = vmul.f32 %v2623, %v2640
          %v2644 = vmul.f32 %v2624, %v2640
          %v2645 = vmul.f32 %v2625, %v2640
          %v2646 = vmul.f32 %v2626, %v2640
          %v2647 = vmul.f32 %v2627, %v2640
          %v2648 = vmul.f32 %v2628, %v2640
          %v2649 = vadd.f32 %v2597, %v2641
          %v2650 = vadd.f32 %v2598, %v2642
          %v2651 = vadd.f32 %v2599, %v2643
          %v2652 = vadd.f32 %v2600, %v2644
          %v2653 = vadd.f32 %v2601, %v2645
          %v2654 = vadd.f32 %v2602, %v2646
          %v2655 = vadd.f32 %v2603, %v2647
          %v2656 = vadd.f32 %v2604, %v2648
          %v2657 = vrot.slane %v2621, 1
          %v2658 = vrot.slane %v2622, 1
          %v2659 = vrot.slane %v2623, 1
          %v2660 = vrot.slane %v2624, 1
          %v2661 = vrot.slane %v2625, 1
          %v2662 = vrot.slane %v2626, 1
          %v2663 = vrot.slane %v2627, 1
          %v2664 = vrot.slane %v2628, 1
          %v2665 = vrot.slane %v2629, 1
          %v2666 = vrot.slane %v2630, 1
          %v2667 = vrot.slane %v2631, 1
          %v2668 = vrot.slane %v2632, 1
          %v2669 = vrot.slane %v2633, 1
          %v2670 = vrot.slane %v2634, 1
          %v2671 = vrot.slane %v2635, 1
          %v2672 = vrot.slane %v2636, 1
          %v2673 = vsel %vm851, %v2657, %v2665
          %v2674 = vsel %vm851, %v2658, %v2666
          %v2675 = vsel %vm851, %v2659, %v2667
          %v2676 = vsel %vm851, %v2660, %v2668
          %v2677 = vsel %vm851, %v2661, %v2669
          %v2678 = vsel %vm851, %v2662, %v2670
          %v2679 = vsel %vm851, %v2663, %v2671
          %v2680 = vsel %vm851, %v2664, %v2672
          %v2681 = vsel %vm851, %v2665, %v2657
          %v2682 = vsel %vm851, %v2666, %v2658
          %v2683 = vsel %vm851, %v2667, %v2659
          %v2684 = vsel %vm851, %v2668, %v2660
          %v2685 = vsel %vm851, %v2669, %v2661
          %v2686 = vsel %vm851, %v2670, %v2662
          %v2687 = vsel %vm851, %v2671, %v2663
          %v2688 = vsel %vm851, %v2672, %v2664
          %v2689 = vlaneseq
          %v2690 = vshrl.u32 %v2689, 7
          %v2691 = vsub.s32 5, %v2690
          %v2692 = vrot.slane %v802, %v2691
          %v2693 = vmul.f32 %v2673, %v2692
          %v2694 = vmul.f32 %v2674, %v2692
          %v2695 = vmul.f32 %v2675, %v2692
          %v2696 = vmul.f32 %v2676, %v2692
          %v2697 = vmul.f32 %v2677, %v2692
          %v2698 = vmul.f32 %v2678, %v2692
          %v2699 = vmul.f32 %v2679, %v2692
          %v2700 = vmul.f32 %v2680, %v2692
          %v2701 = vadd.f32 %v2649, %v2693
          %v2702 = vadd.f32 %v2650, %v2694
          %v2703 = vadd.f32 %v2651, %v2695
          %v2704 = vadd.f32 %v2652, %v2696
          %v2705 = vadd.f32 %v2653, %v2697
          %v2706 = vadd.f32 %v2654, %v2698
          %v2707 = vadd.f32 %v2655, %v2699
          %v2708 = vadd.f32 %v2656, %v2700
          %v2709 = vrot.slane %v2673, 1
          %v2710 = vrot.slane %v2674, 1
          %v2711 = vrot.slane %v2675, 1
          %v2712 = vrot.slane %v2676, 1
          %v2713 = vrot.slane %v2677, 1
          %v2714 = vrot.slane %v2678, 1
          %v2715 = vrot.slane %v2679, 1
          %v2716 = vrot.slane %v2680, 1
          %v2717 = vrot.slane %v2681, 1
          %v2718 = vrot.slane %v2682, 1
          %v2719 = vrot.slane %v2683, 1
          %v2720 = vrot.slane %v2684, 1
          %v2721 = vrot.slane %v2685, 1
          %v2722 = vrot.slane %v2686, 1
          %v2723 = vrot.slane %v2687, 1
          %v2724 = vrot.slane %v2688, 1
          %v2725 = vsel %vm851, %v2709, %v2717
          %v2726 = vsel %vm851, %v2710, %v2718
          %v2727 = vsel %vm851, %v2711, %v2719
          %v2728 = vsel %vm851, %v2712, %v2720
          %v2729 = vsel %vm851, %v2713, %v2721
          %v2730 = vsel %vm851, %v2714, %v2722
          %v2731 = vsel %vm851, %v2715, %v2723
          %v2732 = vsel %vm851, %v2716, %v2724
          %v2733 = vsel %vm851, %v2717, %v2709
          %v2734 = vsel %vm851, %v2718, %v2710
          %v2735 = vsel %vm851, %v2719, %v2711
          %v2736 = vsel %vm851, %v2720, %v2712
          %v2737 = vsel %vm851, %v2721, %v2713
          %v2738 = vsel %vm851, %v2722, %v2714
          %v2739 = vsel %vm851, %v2723, %v2715
          %v2740 = vsel %vm851, %v2724, %v2716
          %v2741 = vlaneseq
          %v2742 = vshrl.u32 %v2741, 7
          %v2743 = vsub.s32 6, %v2742
          %v2744 = vrot.slane %v802, %v2743
          %v2745 = vmul.f32 %v2725, %v2744
          %v2746 = vmul.f32 %v2726, %v2744
          %v2747 = vmul.f32 %v2727, %v2744
          %v2748 = vmul.f32 %v2728, %v2744
          %v2749 = vmul.f32 %v2729, %v2744
          %v2750 = vmul.f32 %v2730, %v2744
          %v2751 = vmul.f32 %v2731, %v2744
          %v2752 = vmul.f32 %v2732, %v2744
          %v2753 = vadd.f32 %v2701, %v2745
          %v2754 = vadd.f32 %v2702, %v2746
          %v2755 = vadd.f32 %v2703, %v2747
          %v2756 = vadd.f32 %v2704, %v2748
          %v2757 = vadd.f32 %v2705, %v2749
          %v2758 = vadd.f32 %v2706, %v2750
          %v2759 = vadd.f32 %v2707, %v2751
          %v2760 = vadd.f32 %v2708, %v2752
          %v2761 = vrot.slane %v2725, 1
          %v2762 = vrot.slane %v2726, 1
          %v2763 = vrot.slane %v2727, 1
          %v2764 = vrot.slane %v2728, 1
          %v2765 = vrot.slane %v2729, 1
          %v2766 = vrot.slane %v2730, 1
          %v2767 = vrot.slane %v2731, 1
          %v2768 = vrot.slane %v2732, 1
          %v2769 = vrot.slane %v2733, 1
          %v2770 = vrot.slane %v2734, 1
          %v2771 = vrot.slane %v2735, 1
          %v2772 = vrot.slane %v2736, 1
          %v2773 = vrot.slane %v2737, 1
          %v2774 = vrot.slane %v2738, 1
          %v2775 = vrot.slane %v2739, 1
          %v2776 = vrot.slane %v2740, 1
          %v2777 = vsel %vm851, %v2761, %v2769
          %v2778 = vsel %vm851, %v2762, %v2770
          %v2779 = vsel %vm851, %v2763, %v2771
          %v2780 = vsel %vm851, %v2764, %v2772
          %v2781 = vsel %vm851, %v2765, %v2773
          %v2782 = vsel %vm851, %v2766, %v2774
          %v2783 = vsel %vm851, %v2767, %v2775
          %v2784 = vsel %vm851, %v2768, %v2776
          %v2785 = vsel %vm851, %v2769, %v2761
          %v2786 = vsel %vm851, %v2770, %v2762
          %v2787 = vsel %vm851, %v2771, %v2763
          %v2788 = vsel %vm851, %v2772, %v2764
          %v2789 = vsel %vm851, %v2773, %v2765
          %v2790 = vsel %vm851, %v2774, %v2766
          %v2791 = vsel %vm851, %v2775, %v2767
          %v2792 = vsel %vm851, %v2776, %v2768
          %v2793 = vlaneseq
          %v2794 = vshrl.u32 %v2793, 7
          %v2795 = vsub.s32 7, %v2794
          %v2796 = vrot.slane %v802, %v2795
          %v2797 = vmul.f32 %v2777, %v2796
          %v2798 = vmul.f32 %v2778, %v2796
          %v2799 = vmul.f32 %v2779, %v2796
          %v2800 = vmul.f32 %v2780, %v2796
          %v2801 = vmul.f32 %v2781, %v2796
          %v2802 = vmul.f32 %v2782, %v2796
          %v2803 = vmul.f32 %v2783, %v2796
          %v2804 = vmul.f32 %v2784, %v2796
          %v2805 = vadd.f32 %v2753, %v2797
          %v2806 = vadd.f32 %v2754, %v2798
          %v2807 = vadd.f32 %v2755, %v2799
          %v2808 = vadd.f32 %v2756, %v2800
          %v2809 = vadd.f32 %v2757, %v2801
          %v2810 = vadd.f32 %v2758, %v2802
          %v2811 = vadd.f32 %v2759, %v2803
          %v2812 = vadd.f32 %v2760, %v2804
          %v2813 = vrot.slane %v2777, 1
          %v2814 = vrot.slane %v2778, 1
          %v2815 = vrot.slane %v2779, 1
          %v2816 = vrot.slane %v2780, 1
          %v2817 = vrot.slane %v2781, 1
          %v2818 = vrot.slane %v2782, 1
          %v2819 = vrot.slane %v2783, 1
          %v2820 = vrot.slane %v2784, 1
          %v2821 = vrot.slane %v2785, 1
          %v2822 = vrot.slane %v2786, 1
          %v2823 = vrot.slane %v2787, 1
          %v2824 = vrot.slane %v2788, 1
          %v2825 = vrot.slane %v2789, 1
          %v2826 = vrot.slane %v2790, 1
          %v2827 = vrot.slane %v2791, 1
          %v2828 = vrot.slane %v2792, 1
          %v2829 = vsel %vm851, %v2813, %v2821
          %v2830 = vsel %vm851, %v2814, %v2822
          %v2831 = vsel %vm851, %v2815, %v2823
          %v2832 = vsel %vm851, %v2816, %v2824
          %v2833 = vsel %vm851, %v2817, %v2825
          %v2834 = vsel %vm851, %v2818, %v2826
          %v2835 = vsel %vm851, %v2819, %v2827
          %v2836 = vsel %vm851, %v2820, %v2828
          %v2837 = vsel %vm851, %v2821, %v2813
          %v2838 = vsel %vm851, %v2822, %v2814
          %v2839 = vsel %vm851, %v2823, %v2815
          %v2840 = vsel %vm851, %v2824, %v2816
          %v2841 = vsel %vm851, %v2825, %v2817
          %v2842 = vsel %vm851, %v2826, %v2818
          %v2843 = vsel %vm851, %v2827, %v2819
          %v2844 = vsel %vm851, %v2828, %v2820
          %v2845 = vlaneseq
          %v2846 = vshrl.u32 %v2845, 7
          %v2847 = vsub.s32 0, %v2846
          %v2848 = vrot.slane %v803, %v2847
          %v2849 = vmul.f32 %v2829, %v2848
          %v2850 = vmul.f32 %v2830, %v2848
          %v2851 = vmul.f32 %v2831, %v2848
          %v2852 = vmul.f32 %v2832, %v2848
          %v2853 = vmul.f32 %v2833, %v2848
          %v2854 = vmul.f32 %v2834, %v2848
          %v2855 = vmul.f32 %v2835, %v2848
          %v2856 = vmul.f32 %v2836, %v2848
          %v2857 = vadd.f32 %v2805, %v2849
          %v2858 = vadd.f32 %v2806, %v2850
          %v2859 = vadd.f32 %v2807, %v2851
          %v2860 = vadd.f32 %v2808, %v2852
          %v2861 = vadd.f32 %v2809, %v2853
          %v2862 = vadd.f32 %v2810, %v2854
          %v2863 = vadd.f32 %v2811, %v2855
          %v2864 = vadd.f32 %v2812, %v2856
          %v2865 = vrot.slane %v2829, 1
          %v2866 = vrot.slane %v2830, 1
          %v2867 = vrot.slane %v2831, 1
          %v2868 = vrot.slane %v2832, 1
          %v2869 = vrot.slane %v2833, 1
          %v2870 = vrot.slane %v2834, 1
          %v2871 = vrot.slane %v2835, 1
          %v2872 = vrot.slane %v2836, 1
          %v2873 = vrot.slane %v2837, 1
          %v2874 = vrot.slane %v2838, 1
          %v2875 = vrot.slane %v2839, 1
          %v2876 = vrot.slane %v2840, 1
          %v2877 = vrot.slane %v2841, 1
          %v2878 = vrot.slane %v2842, 1
          %v2879 = vrot.slane %v2843, 1
          %v2880 = vrot.slane %v2844, 1
          %v2881 = vsel %vm851, %v2865, %v2873
          %v2882 = vsel %vm851, %v2866, %v2874
          %v2883 = vsel %vm851, %v2867, %v2875
          %v2884 = vsel %vm851, %v2868, %v2876
          %v2885 = vsel %vm851, %v2869, %v2877
          %v2886 = vsel %vm851, %v2870, %v2878
          %v2887 = vsel %vm851, %v2871, %v2879
          %v2888 = vsel %vm851, %v2872, %v2880
          %v2889 = vlaneseq
          %v2890 = vshrl.u32 %v2889, 7
          %v2891 = vsub.s32 1, %v2890
          %v2892 = vrot.slane %v803, %v2891
          %v2893 = vmul.f32 %v2881, %v2892
          %v2894 = vmul.f32 %v2882, %v2892
          %v2895 = vmul.f32 %v2883, %v2892
          %v2896 = vmul.f32 %v2884, %v2892
          %v2897 = vmul.f32 %v2885, %v2892
          %v2898 = vmul.f32 %v2886, %v2892
          %v2899 = vmul.f32 %v2887, %v2892
          %v2900 = vmul.f32 %v2888, %v2892
          %v2901 = vadd.f32 %v2857, %v2893
          %v2902 = vadd.f32 %v2858, %v2894
          %v2903 = vadd.f32 %v2859, %v2895
          %v2904 = vadd.f32 %v2860, %v2896
          %v2905 = vadd.f32 %v2861, %v2897
          %v2906 = vadd.f32 %v2862, %v2898
          %v2907 = vadd.f32 %v2863, %v2899
          %v2908 = vadd.f32 %v2864, %v2900
          %v2909 = vld [vmem:[%s367] sm:$0xff]
          %v2910 = vld [vmem:[%s367 + $0x8] sm:$0xff]
          %v2911 = vld [vmem:[%s367 + $0x10] sm:$0xff]
          %v2912 = vld [vmem:[%s367 + $0x18] sm:$0xff]
          %v2913 = vld [vmem:[%s367 + $0x20] sm:$0xff]
          %v2914 = vld [vmem:[%s367 + $0x28] sm:$0xff]
          %v2915 = vld [vmem:[%s367 + $0x30] sm:$0xff]
          %v2916 = vld [vmem:[%s367 + $0x38] sm:$0xff]
          %v2917 = vadd.f32 %v2909, %v2901
          %v2918 = vadd.f32 %v2910, %v2902
          %v2919 = vadd.f32 %v2911, %v2903
          %v2920 = vadd.f32 %v2912, %v2904
          %v2921 = vadd.f32 %v2913, %v2905
          %v2922 = vadd.f32 %v2914, %v2906
          %v2923 = vadd.f32 %v2915, %v2907
          %v2924 = vadd.f32 %v2916, %v2908
          %2925 = vst [vmem:[%s367] sm:$0xff] %v2917
          %2926 = vst [vmem:[%s367 + $0x8] sm:$0xff] %v2918
          %2927 = vst [vmem:[%s367 + $0x10] sm:$0xff] %v2919
          %2928 = vst [vmem:[%s367 + $0x18] sm:$0xff] %v2920
          %2929 = vst [vmem:[%s367 + $0x20] sm:$0xff] %v2921
          %2930 = vst [vmem:[%s367 + $0x28] sm:$0xff] %v2922
          %2931 = vst [vmem:[%s367 + $0x30] sm:$0xff] %v2923
          %2932 = vst [vmem:[%s367 + $0x38] sm:$0xff] %v2924
          %s2933 = scalar_lea.vmem [#allocation2], 96
          %v2934 = vld [vmem:[%s2933] sm:$0xff]
          %v2935 = vld [vmem:[%s2933 + $0x8] sm:$0xff]
          %v2936 = vld [vmem:[%s2933 + $0x10] sm:$0xff]
          %v2937 = vld [vmem:[%s2933 + $0x18] sm:$0xff]
          %v2938 = vld [vmem:[%s2933 + $0x20] sm:$0xff]
          %v2939 = vld [vmem:[%s2933 + $0x28] sm:$0xff]
          %v2940 = vld [vmem:[%s2933 + $0x30] sm:$0xff]
          %v2941 = vld [vmem:[%s2933 + $0x38] sm:$0xff]
          %v2942 = vld [vmem:[%s2933 + $0x40] sm:$0xff]
          %v2943 = vld [vmem:[%s2933 + $0x48] sm:$0xff]
          %v2944 = vld [vmem:[%s2933 + $0x50] sm:$0xff]
          %v2945 = vld [vmem:[%s2933 + $0x58] sm:$0xff]
          %v2946 = vld [vmem:[%s2933 + $0x60] sm:$0xff]
          %v2947 = vld [vmem:[%s2933 + $0x68] sm:$0xff]
          %v2948 = vld [vmem:[%s2933 + $0x70] sm:$0xff]
          %v2949 = vld [vmem:[%s2933 + $0x78] sm:$0xff]
          %v2950 = vlaneseq
          %v2951 = vshrl.u32 %v2950, 7
          %v2952 = vsub.s32 2, %v2951
          %v2953 = vrot.slane %v803, %v2952
          %v2954 = vmul.f32 %v2934, %v2953
          %v2955 = vmul.f32 %v2936, %v2953
          %v2956 = vmul.f32 %v2938, %v2953
          %v2957 = vmul.f32 %v2940, %v2953
          %v2958 = vmul.f32 %v2942, %v2953
          %v2959 = vmul.f32 %v2944, %v2953
          %v2960 = vmul.f32 %v2946, %v2953
          %v2961 = vmul.f32 %v2948, %v2953
          %v2962 = vrot.slane %v2934, 1
          %v2963 = vrot.slane %v2936, 1
          %v2964 = vrot.slane %v2938, 1
          %v2965 = vrot.slane %v2940, 1
          %v2966 = vrot.slane %v2942, 1
          %v2967 = vrot.slane %v2944, 1
          %v2968 = vrot.slane %v2946, 1
          %v2969 = vrot.slane %v2948, 1
          %v2970 = vrot.slane %v2935, 1
          %v2971 = vrot.slane %v2937, 1
          %v2972 = vrot.slane %v2939, 1
          %v2973 = vrot.slane %v2941, 1
          %v2974 = vrot.slane %v2943, 1
          %v2975 = vrot.slane %v2945, 1
          %v2976 = vrot.slane %v2947, 1
          %v2977 = vrot.slane %v2949, 1
          %v2978 = vsel %vm851, %v2962, %v2970
          %v2979 = vsel %vm851, %v2963, %v2971
          %v2980 = vsel %vm851, %v2964, %v2972
          %v2981 = vsel %vm851, %v2965, %v2973
          %v2982 = vsel %vm851, %v2966, %v2974
          %v2983 = vsel %vm851, %v2967, %v2975
          %v2984 = vsel %vm851, %v2968, %v2976
          %v2985 = vsel %vm851, %v2969, %v2977
          %v2986 = vsel %vm851, %v2970, %v2962
          %v2987 = vsel %vm851, %v2971, %v2963
          %v2988 = vsel %vm851, %v2972, %v2964
          %v2989 = vsel %vm851, %v2973, %v2965
          %v2990 = vsel %vm851, %v2974, %v2966
          %v2991 = vsel %vm851, %v2975, %v2967
          %v2992 = vsel %vm851, %v2976, %v2968
          %v2993 = vsel %vm851, %v2977, %v2969
          %v2994 = vlaneseq
          %v2995 = vshrl.u32 %v2994, 7
          %v2996 = vsub.s32 3, %v2995
          %v2997 = vrot.slane %v803, %v2996
          %v2998 = vmul.f32 %v2978, %v2997
          %v2999 = vmul.f32 %v2979, %v2997
          %v3000 = vmul.f32 %v2980, %v2997
          %v3001 = vmul.f32 %v2981, %v2997
          %v3002 = vmul.f32 %v2982, %v2997
          %v3003 = vmul.f32 %v2983, %v2997
          %v3004 = vmul.f32 %v2984, %v2997
          %v3005 = vmul.f32 %v2985, %v2997
          %v3006 = vadd.f32 %v2954, %v2998
          %v3007 = vadd.f32 %v2955, %v2999
          %v3008 = vadd.f32 %v2956, %v3000
          %v3009 = vadd.f32 %v2957, %v3001
          %v3010 = vadd.f32 %v2958, %v3002
          %v3011 = vadd.f32 %v2959, %v3003
          %v3012 = vadd.f32 %v2960, %v3004
          %v3013 = vadd.f32 %v2961, %v3005
          %v3014 = vrot.slane %v2978, 1
          %v3015 = vrot.slane %v2979, 1
          %v3016 = vrot.slane %v2980, 1
          %v3017 = vrot.slane %v2981, 1
          %v3018 = vrot.slane %v2982, 1
          %v3019 = vrot.slane %v2983, 1
          %v3020 = vrot.slane %v2984, 1
          %v3021 = vrot.slane %v2985, 1
          %v3022 = vrot.slane %v2986, 1
          %v3023 = vrot.slane %v2987, 1
          %v3024 = vrot.slane %v2988, 1
          %v3025 = vrot.slane %v2989, 1
          %v3026 = vrot.slane %v2990, 1
          %v3027 = vrot.slane %v2991, 1
          %v3028 = vrot.slane %v2992, 1
          %v3029 = vrot.slane %v2993, 1
          %v3030 = vsel %vm851, %v3014, %v3022
          %v3031 = vsel %vm851, %v3015, %v3023
          %v3032 = vsel %vm851, %v3016, %v3024
          %v3033 = vsel %vm851, %v3017, %v3025
          %v3034 = vsel %vm851, %v3018, %v3026
          %v3035 = vsel %vm851, %v3019, %v3027
          %v3036 = vsel %vm851, %v3020, %v3028
          %v3037 = vsel %vm851, %v3021, %v3029
          %v3038 = vsel %vm851, %v3022, %v3014
          %v3039 = vsel %vm851, %v3023, %v3015
          %v3040 = vsel %vm851, %v3024, %v3016
          %v3041 = vsel %vm851, %v3025, %v3017
          %v3042 = vsel %vm851, %v3026, %v3018
          %v3043 = vsel %vm851, %v3027, %v3019
          %v3044 = vsel %vm851, %v3028, %v3020
          %v3045 = vsel %vm851, %v3029, %v3021
          %v3046 = vlaneseq
          %v3047 = vshrl.u32 %v3046, 7
          %v3048 = vsub.s32 4, %v3047
          %v3049 = vrot.slane %v803, %v3048
          %v3050 = vmul.f32 %v3030, %v3049
          %v3051 = vmul.f32 %v3031, %v3049
          %v3052 = vmul.f32 %v3032, %v3049
          %v3053 = vmul.f32 %v3033, %v3049
          %v3054 = vmul.f32 %v3034, %v3049
          %v3055 = vmul.f32 %v3035, %v3049
          %v3056 = vmul.f32 %v3036, %v3049
          %v3057 = vmul.f32 %v3037, %v3049
          %v3058 = vadd.f32 %v3006, %v3050
          %v3059 = vadd.f32 %v3007, %v3051
          %v3060 = vadd.f32 %v3008, %v3052
          %v3061 = vadd.f32 %v3009, %v3053
          %v3062 = vadd.f32 %v3010, %v3054
          %v3063 = vadd.f32 %v3011, %v3055
          %v3064 = vadd.f32 %v3012, %v3056
          %v3065 = vadd.f32 %v3013, %v3057
          %v3066 = vrot.slane %v3030, 1
          %v3067 = vrot.slane %v3031, 1
          %v3068 = vrot.slane %v3032, 1
          %v3069 = vrot.slane %v3033, 1
          %v3070 = vrot.slane %v3034, 1
          %v3071 = vrot.slane %v3035, 1
          %v3072 = vrot.slane %v3036, 1
          %v3073 = vrot.slane %v3037, 1
          %v3074 = vrot.slane %v3038, 1
          %v3075 = vrot.slane %v3039, 1
          %v3076 = vrot.slane %v3040, 1
          %v3077 = vrot.slane %v3041, 1
          %v3078 = vrot.slane %v3042, 1
          %v3079 = vrot.slane %v3043, 1
          %v3080 = vrot.slane %v3044, 1
          %v3081 = vrot.slane %v3045, 1
          %v3082 = vsel %vm851, %v3066, %v3074
          %v3083 = vsel %vm851, %v3067, %v3075
          %v3084 = vsel %vm851, %v3068, %v3076
          %v3085 = vsel %vm851, %v3069, %v3077
          %v3086 = vsel %vm851, %v3070, %v3078
          %v3087 = vsel %vm851, %v3071, %v3079
          %v3088 = vsel %vm851, %v3072, %v3080
          %v3089 = vsel %vm851, %v3073, %v3081
          %v3090 = vsel %vm851, %v3074, %v3066
          %v3091 = vsel %vm851, %v3075, %v3067
          %v3092 = vsel %vm851, %v3076, %v3068
          %v3093 = vsel %vm851, %v3077, %v3069
          %v3094 = vsel %vm851, %v3078, %v3070
          %v3095 = vsel %vm851, %v3079, %v3071
          %v3096 = vsel %vm851, %v3080, %v3072
          %v3097 = vsel %vm851, %v3081, %v3073
          %v3098 = vlaneseq
          %v3099 = vshrl.u32 %v3098, 7
          %v3100 = vsub.s32 5, %v3099
          %v3101 = vrot.slane %v803, %v3100
          %v3102 = vmul.f32 %v3082, %v3101
          %v3103 = vmul.f32 %v3083, %v3101
          %v3104 = vmul.f32 %v3084, %v3101
          %v3105 = vmul.f32 %v3085, %v3101
          %v3106 = vmul.f32 %v3086, %v3101
          %v3107 = vmul.f32 %v3087, %v3101
          %v3108 = vmul.f32 %v3088, %v3101
          %v3109 = vmul.f32 %v3089, %v3101
          %v3110 = vadd.f32 %v3058, %v3102
          %v3111 = vadd.f32 %v3059, %v3103
          %v3112 = vadd.f32 %v3060, %v3104
          %v3113 = vadd.f32 %v3061, %v3105
          %v3114 = vadd.f32 %v3062, %v3106
          %v3115 = vadd.f32 %v3063, %v3107
          %v3116 = vadd.f32 %v3064, %v3108
          %v3117 = vadd.f32 %v3065, %v3109
          %v3118 = vrot.slane %v3082, 1
          %v3119 = vrot.slane %v3083, 1
          %v3120 = vrot.slane %v3084, 1
          %v3121 = vrot.slane %v3085, 1
          %v3122 = vrot.slane %v3086, 1
          %v3123 = vrot.slane %v3087, 1
          %v3124 = vrot.slane %v3088, 1
          %v3125 = vrot.slane %v3089, 1
          %v3126 = vrot.slane %v3090, 1
          %v3127 = vrot.slane %v3091, 1
          %v3128 = vrot.slane %v3092, 1
          %v3129 = vrot.slane %v3093, 1
          %v3130 = vrot.slane %v3094, 1
          %v3131 = vrot.slane %v3095, 1
          %v3132 = vrot.slane %v3096, 1
          %v3133 = vrot.slane %v3097, 1
          %v3134 = vsel %vm851, %v3118, %v3126
          %v3135 = vsel %vm851, %v3119, %v3127
          %v3136 = vsel %vm851, %v3120, %v3128
          %v3137 = vsel %vm851, %v3121, %v3129
          %v3138 = vsel %vm851, %v3122, %v3130
          %v3139 = vsel %vm851, %v3123, %v3131
          %v3140 = vsel %vm851, %v3124, %v3132
          %v3141 = vsel %vm851, %v3125, %v3133
          %v3142 = vsel %vm851, %v3126, %v3118
          %v3143 = vsel %vm851, %v3127, %v3119
          %v3144 = vsel %vm851, %v3128, %v3120
          %v3145 = vsel %vm851, %v3129, %v3121
          %v3146 = vsel %vm851, %v3130, %v3122
          %v3147 = vsel %vm851, %v3131, %v3123
          %v3148 = vsel %vm851, %v3132, %v3124
          %v3149 = vsel %vm851, %v3133, %v3125
          %v3150 = vlaneseq
          %v3151 = vshrl.u32 %v3150, 7
          %v3152 = vsub.s32 6, %v3151
          %v3153 = vrot.slane %v803, %v3152
          %v3154 = vmul.f32 %v3134, %v3153
          %v3155 = vmul.f32 %v3135, %v3153
          %v3156 = vmul.f32 %v3136, %v3153
          %v3157 = vmul.f32 %v3137, %v3153
          %v3158 = vmul.f32 %v3138, %v3153
          %v3159 = vmul.f32 %v3139, %v3153
          %v3160 = vmul.f32 %v3140, %v3153
          %v3161 = vmul.f32 %v3141, %v3153
          %v3162 = vadd.f32 %v3110, %v3154
          %v3163 = vadd.f32 %v3111, %v3155
          %v3164 = vadd.f32 %v3112, %v3156
          %v3165 = vadd.f32 %v3113, %v3157
          %v3166 = vadd.f32 %v3114, %v3158
          %v3167 = vadd.f32 %v3115, %v3159
          %v3168 = vadd.f32 %v3116, %v3160
          %v3169 = vadd.f32 %v3117, %v3161
          %v3170 = vrot.slane %v3134, 1
          %v3171 = vrot.slane %v3135, 1
          %v3172 = vrot.slane %v3136, 1
          %v3173 = vrot.slane %v3137, 1
          %v3174 = vrot.slane %v3138, 1
          %v3175 = vrot.slane %v3139, 1
          %v3176 = vrot.slane %v3140, 1
          %v3177 = vrot.slane %v3141, 1
          %v3178 = vrot.slane %v3142, 1
          %v3179 = vrot.slane %v3143, 1
          %v3180 = vrot.slane %v3144, 1
          %v3181 = vrot.slane %v3145, 1
          %v3182 = vrot.slane %v3146, 1
          %v3183 = vrot.slane %v3147, 1
          %v3184 = vrot.slane %v3148, 1
          %v3185 = vrot.slane %v3149, 1
          %v3186 = vsel %vm851, %v3170, %v3178
          %v3187 = vsel %vm851, %v3171, %v3179
          %v3188 = vsel %vm851, %v3172, %v3180
          %v3189 = vsel %vm851, %v3173, %v3181
          %v3190 = vsel %vm851, %v3174, %v3182
          %v3191 = vsel %vm851, %v3175, %v3183
          %v3192 = vsel %vm851, %v3176, %v3184
          %v3193 = vsel %vm851, %v3177, %v3185
          %v3194 = vsel %vm851, %v3178, %v3170
          %v3195 = vsel %vm851, %v3179, %v3171
          %v3196 = vsel %vm851, %v3180, %v3172
          %v3197 = vsel %vm851, %v3181, %v3173
          %v3198 = vsel %vm851, %v3182, %v3174
          %v3199 = vsel %vm851, %v3183, %v3175
          %v3200 = vsel %vm851, %v3184, %v3176
          %v3201 = vsel %vm851, %v3185, %v3177
          %v3202 = vlaneseq
          %v3203 = vshrl.u32 %v3202, 7
          %v3204 = vsub.s32 7, %v3203
          %v3205 = vrot.slane %v803, %v3204
          %v3206 = vmul.f32 %v3186, %v3205
          %v3207 = vmul.f32 %v3187, %v3205
          %v3208 = vmul.f32 %v3188, %v3205
          %v3209 = vmul.f32 %v3189, %v3205
          %v3210 = vmul.f32 %v3190, %v3205
          %v3211 = vmul.f32 %v3191, %v3205
          %v3212 = vmul.f32 %v3192, %v3205
          %v3213 = vmul.f32 %v3193, %v3205
          %v3214 = vadd.f32 %v3162, %v3206
          %v3215 = vadd.f32 %v3163, %v3207
          %v3216 = vadd.f32 %v3164, %v3208
          %v3217 = vadd.f32 %v3165, %v3209
          %v3218 = vadd.f32 %v3166, %v3210
          %v3219 = vadd.f32 %v3167, %v3211
          %v3220 = vadd.f32 %v3168, %v3212
          %v3221 = vadd.f32 %v3169, %v3213
          %v3222 = vrot.slane %v3186, 1
          %v3223 = vrot.slane %v3187, 1
          %v3224 = vrot.slane %v3188, 1
          %v3225 = vrot.slane %v3189, 1
          %v3226 = vrot.slane %v3190, 1
          %v3227 = vrot.slane %v3191, 1
          %v3228 = vrot.slane %v3192, 1
          %v3229 = vrot.slane %v3193, 1
          %v3230 = vrot.slane %v3194, 1
          %v3231 = vrot.slane %v3195, 1
          %v3232 = vrot.slane %v3196, 1
          %v3233 = vrot.slane %v3197, 1
          %v3234 = vrot.slane %v3198, 1
          %v3235 = vrot.slane %v3199, 1
          %v3236 = vrot.slane %v3200, 1
          %v3237 = vrot.slane %v3201, 1
          %v3238 = vsel %vm851, %v3222, %v3230
          %v3239 = vsel %vm851, %v3223, %v3231
          %v3240 = vsel %vm851, %v3224, %v3232
          %v3241 = vsel %vm851, %v3225, %v3233
          %v3242 = vsel %vm851, %v3226, %v3234
          %v3243 = vsel %vm851, %v3227, %v3235
          %v3244 = vsel %vm851, %v3228, %v3236
          %v3245 = vsel %vm851, %v3229, %v3237
          %v3246 = vlaneseq
          %v3247 = vshrl.u32 %v3246, 7
          %v3248 = vsub.s32 0, %v3247
          %v3249 = vrot.slane %v804, %v3248
          %v3250 = vmul.f32 %v3238, %v3249
          %v3251 = vmul.f32 %v3239, %v3249
          %v3252 = vmul.f32 %v3240, %v3249
          %v3253 = vmul.f32 %v3241, %v3249
          %v3254 = vmul.f32 %v3242, %v3249
          %v3255 = vmul.f32 %v3243, %v3249
          %v3256 = vmul.f32 %v3244, %v3249
          %v3257 = vmul.f32 %v3245, %v3249
          %v3258 = vadd.f32 %v3214, %v3250
          %v3259 = vadd.f32 %v3215, %v3251
          %v3260 = vadd.f32 %v3216, %v3252
          %v3261 = vadd.f32 %v3217, %v3253
          %v3262 = vadd.f32 %v3218, %v3254
          %v3263 = vadd.f32 %v3219, %v3255
          %v3264 = vadd.f32 %v3220, %v3256
          %v3265 = vadd.f32 %v3221, %v3257
          %v3266 = vld [vmem:[%s367] sm:$0xff]
          %v3267 = vld [vmem:[%s367 + $0x8] sm:$0xff]
          %v3268 = vld [vmem:[%s367 + $0x10] sm:$0xff]
          %v3269 = vld [vmem:[%s367 + $0x18] sm:$0xff]
          %v3270 = vld [vmem:[%s367 + $0x20] sm:$0xff]
          %v3271 = vld [vmem:[%s367 + $0x28] sm:$0xff]
          %v3272 = vld [vmem:[%s367 + $0x30] sm:$0xff]
          %v3273 = vld [vmem:[%s367 + $0x38] sm:$0xff]
          %v3274 = vadd.f32 %v3266, %v3258
          %v3275 = vadd.f32 %v3267, %v3259
          %v3276 = vadd.f32 %v3268, %v3260
          %v3277 = vadd.f32 %v3269, %v3261
          %v3278 = vadd.f32 %v3270, %v3262
          %v3279 = vadd.f32 %v3271, %v3263
          %v3280 = vadd.f32 %v3272, %v3264
          %v3281 = vadd.f32 %v3273, %v3265
          %3282 = vst [vmem:[%s367] sm:$0xff] %v3274
          %3283 = vst [vmem:[%s367 + $0x8] sm:$0xff] %v3275
          %3284 = vst [vmem:[%s367 + $0x10] sm:$0xff] %v3276
          %3285 = vst [vmem:[%s367 + $0x18] sm:$0xff] %v3277
          %3286 = vst [vmem:[%s367 + $0x20] sm:$0xff] %v3278
          %3287 = vst [vmem:[%s367 + $0x28] sm:$0xff] %v3279
          %3288 = vst [vmem:[%s367 + $0x30] sm:$0xff] %v3280
          %3289 = vst [vmem:[%s367 + $0x38] sm:$0xff] %v3281
        $region93: #{tpu_custom_call.1} parent=80 // pred_fallthru
          _
        %s3290 = sand.u32 %s173, 1
        %s3291 = scalar_lea.sflag [#allocation5], %s3290
        %s3292 = sand.u32 %s173, 1
        %s3293 = smul.addr %s3292, 64
        %s3294 = scalar_lea.vmem [#allocation4], %s3293
        // Predicated region
        $region94: #{tpu_custom_call.1} parent=80 // pred_check
          %p3295 = pneg %p183
        $region95: #{tpu_custom_call.1} parent=80 // pred_check_branch
          %3297 = sbr.rel (%p3295) target = $region97
        $region96: #{tpu_custom_call.1} parent=80 // pred_region
          %s3299 = ssub.s32 1024, 1024
          %3300 = vsyncadd %s3291, %s3299
          %s3301 = smul.addr %s24, 8
          %s3302 = smul.addr %s3301, 128
          %s3303 = scalar_lea.hbm %s6, %s3302
          %s3304 = sshll.u32 %s3294, 4
          %s3305 = int_to_ptr.vmem [resolvable:$true] %s3304
          %3310 = dma.vmem_to_hbm [thread:$0]  %s3305, 1024, %s3303, %s3291, 128, 128, 8
        $region97: #{tpu_custom_call.1} parent=80 // pred_fallthru
          _
      $region81: #{tpu_custom_call.1} parent=5 // pred_fallthru
        _
      %p3311 = scmp.le.s32.totalorder 2, %s15
      // Predicated region
      $region98: #{tpu_custom_call.1} parent=5 // pred_check
        %p3312 = pneg %p3311
      $region99: #{tpu_custom_call.1} parent=5 // pred_check_branch
        %3314 = sbr.rel (%p3312) target = $region101
      $region100: #{tpu_custom_call.1} parent=5 // pred_region
        %s3315 = ssub.s32 %s15, 2
        // Predicated region
        $region102: #{tpu_custom_call.1} parent=100 // pred_check
          %p3316 = pneg %p189
        $region103: #{tpu_custom_call.1} parent=100 // pred_check_branch
          %3318 = sbr.rel (%p3316) target = $region105
        $region104: #{tpu_custom_call.1} parent=100 // pred_region
          %s3319 = sand.u32 %s174, 1
          %s3320 = scalar_lea.sflag [#allocation5], %s3319
          %s3321 = sand.u32 %s174, 1
          %s3322 = smul.addr %s3321, 64
          %s3323 = scalar_lea.vmem [#allocation4], %s3322
          %3324 = dma.done %s3320, 1024
        $region105: #{tpu_custom_call.1} parent=100 // pred_fallthru
          _
      $region101: #{tpu_custom_call.1} parent=5 // pred_fallthru
        _
    $region6: #{tpu_custom_call.1} parent=1 // loop_footer
      %s19 = sadd.s32 1, %s15
    $region7: #{tpu_custom_call.1} parent=1 // loop_footer_branch
      %14 = sbr.rel target = $region3
    $region8: #{tpu_custom_call.1} parent=1 // loop_exit
      _
    %3325 = vsyncpa [#allocation5], 1
    %s3326 = scalar_lea.sflag [#allocation5], 1
    %3327 = vsyncpa %s3326, 1

</llo_original>
